<compile_context>
chip_gen: v6e
topology: v6e:2x2x1
jax: 0.10.0
libtpu: 0.0.40
codegen_flags: <defaults>
</compile_context>

<pallas_src>
import jax
import jax.numpy as jnp
from jax.experimental import pallas as pl
from jax.experimental.pallas import tpu as pltpu


# ----------------------------------------------------------------------------
# Pallas kernel: fused embedding + wavefront multi-layer LSTM + LayerNorm.
# Weights stay in native PyTorch gate order [i, f, g, o].
# ----------------------------------------------------------------------------
def encoder_kernel(acts_ref,    # (T*Bp, 1)            i32  activity index, time-major rows
                   durs_ref,    # (T*Bp, 1)            f32  duration channel
                   ew_ref,      # (Vp, 4H)             f32  emb_table @ Wih0[:H-1]  (vocab padded to 128)
                   wd_ref,      # (1, 4H)              f32  duration row of Wih0
                   wih_hi_ref,  # (max(L-1,1), H, 4H)  f32  input->gates weights, layers >= 1
                   whh_ref,     # (L, H, 4H)           f32  hidden->gates weights (transposed)
                   b_ref,       # (L, 1, 4H)           f32  combined bias (b_ih + b_hh)
                   h0_ref,      # (L, Bp, H)           f32  initial hidden state
                   c0_ref,      # (L, Bp, H)           f32  initial cell state
                   gamma_ref,   # (1, H)               f32  LayerNorm weight
                   beta_ref,    # (1, H)               f32  LayerNorm bias
                   out_ref,     # (Bp, 2*L*H)          f32  output
                   pre0_ref):   # scratch VMEM (T*Bp, 4H): layer-0 input gates (incl. bias)
    L, Bp, H = h0_ref.shape
    TB = acts_ref.shape[0]
    T = TB // Bp
    Vp = ew_ref.shape[0]
    eps = 1e-5

    # ---- Fused embedding + layer-0 input->gates precompute: ONE big MXU matmul.
    # onehot(act) @ (E @ Wih0[:H-1]) + dur * Wih0[H-1] + b0  ==  emb(x) @ Wih0 + b0
    acts = acts_ref[...]                                              # (TB, 1) i32
    iota = jax.lax.broadcasted_iota(jnp.int32, (TB, Vp), 1)
    onehot = jnp.where(iota == acts, 1.0, 0.0).astype(jnp.float32)    # (TB, Vp)
    pre0_ref[...] = (jnp.dot(onehot, ew_ref[...],
                             preferred_element_type=jnp.float32)      # (TB, 4H)
                     + durs_ref[...] * wd_ref[...]
                     + b_ref[0])

    # Hoist loop-invariant weight / bias / state loads (Python lists of values).
    whh = [whh_ref[l] for l in range(L)]                              # (H, 4H) each
    wih_hi = [wih_hi_ref[l - 1] for l in range(1, L)]                 # (H, 4H) each
    bias = [b_ref[l] for l in range(L)]                               # (1, 4H) each
    h = [h0_ref[l] for l in range(L)]                                 # (Bp, H) each
    c = [c0_ref[l] for l in range(L)]
    x_from_below = [None] * L   # x_from_below[l] = h of layer l-1 at the time step layer l needs next

    # ---- Wavefront over (layer, time): at step s, layer l processes t = s - l.
    # Only true dependency is h^{l-1}_t -> h^l_t, so critical path = T + L - 1 cells.
    for s in range(T + L - 1):
        # Top-down layer order: layer l+1 consumes x_from_below written at step s-1
        # before layer l overwrites it this step.
        for l in range(L - 1, -1, -1):
            t = s - l
            if t < 0 or t >= T:
                continue
            if l == 0:
                # Input gates already precomputed (bias folded in); static,
                # sublane-aligned row slice (Bp is a multiple of 8).
                gates = (pre0_ref[t * Bp:(t + 1) * Bp, :]
                         + jnp.dot(h[0], whh[0],
                                   preferred_element_type=jnp.float32))
            else:
                gates = (jnp.dot(x_from_below[l], wih_hi[l - 1],
                                 preferred_element_type=jnp.float32)
                         + jnp.dot(h[l], whh[l],
                                   preferred_element_type=jnp.float32)
                         + bias[l])
            # Activations on the FULL 128-lane gates vreg (EUP cost is per-vreg),
            # then slice gates in native PyTorch order [i, f, g, o].
            sig = jax.nn.sigmoid(gates)
            tnh = jnp.tanh(gates)
            i_g = sig[:, 0 * H:1 * H]
            f_g = sig[:, 1 * H:2 * H]
            g_g = tnh[:, 2 * H:3 * H]
            o_g = sig[:, 3 * H:4 * H]
            c[l] = f_g * c[l] + i_g * g_g
            h[l] = o_g * jnp.tanh(c[l])
            if l + 1 < L:
                x_from_below[l + 1] = h[l]

    # ---- Epilogue: per-state LayerNorm, then ONE lane-dense output store.
    # out[:, k*H:(k+1)*H] with states ordered [h_0..h_{L-1}, c_0..c_{L-1}]
    # (== torch.cat((h_n, c_n)).permute(1, 0, 2).flatten(1)).
    gamma = gamma_ref[...]
    beta = beta_ref[...]

    def ln(v):  # biased variance + eps inside rsqrt, matching PyTorch LayerNorm
        mu = jnp.mean(v, axis=-1, keepdims=True)
        var = jnp.mean((v - mu) ** 2, axis=-1, keepdims=True)
        return (v - mu) * jax.lax.rsqrt(var + eps) * gamma + beta

    # NOTE: 2*L*H == 128 lanes here -> single unmasked store. If 2*L*H is not a
    # multiple of 128 for another config, pad the output to 128 lanes instead.
    out_ref[...] = jnp.concatenate([ln(h[l]) for l in range(L)]
                                   + [ln(c[l]) for l in range(L)], axis=-1)


# ----------------------------------------------------------------------------
# One-time parameter preprocessing (hoisted out of the per-call jitted forward).
# Takes PyTorch-layout weights: wih/whh are W^T per layer, gate order [i, f, g, o].
# ----------------------------------------------------------------------------
def prepare_encoder_params(emb_table, wih, whh, b_ih, b_hh, gamma, beta):
    L, H, H4 = wih.shape
    V, Hm1 = emb_table.shape
    assert Hm1 == H - 1
    Vp = ((V + 127) // 128) * 128                      # pad vocab to a full lane tile
    ew = jnp.pad(emb_table @ wih[0, :Hm1, :], ((0, Vp - V), (0, 0)))   # (Vp, 4H)
    wd = wih[0, Hm1:H, :]                                              # (1, 4H)
    wih_hi = wih[1:] if L > 1 else jnp.zeros((1, H, H4), wih.dtype)    # layers >= 1
    b = b_ih + b_hh                                                    # (L, 1, 4H)
    return ew, wd, wih_hi, whh, b, gamma, beta


# ----------------------------------------------------------------------------
# Jitted forward: only cheap index/pad glue in XLA, everything else in-kernel.
# ----------------------------------------------------------------------------
@jax.jit
def encoder_forward(x, h0, c0, ew, wd, wih_hi, whh, b, gamma, beta):
    """x: (B, T, 2) where x[...,0] = activity index, x[...,1] = duration."""
    B, T, _ = x.shape
    L, _, H = h0.shape
    Bp = ((B + 7) // 8) * 8        # pad batch to a sublane multiple
    pad = Bp - B

    acts = jnp.pad(x[:, :, 0].astype(jnp.int32).T, ((0, 0), (0, pad)))     # (T, Bp)
    durs = jnp.pad(x[:, :, 1].astype(jnp.float32).T, ((0, 0), (0, pad)))   # (T, Bp)
    acts = acts.reshape(T * Bp, 1)
    durs = durs.reshape(T * Bp, 1)

    h0p = jnp.pad(h0, ((0, 0), (0, pad), (0, 0)))      # (L, Bp, H)
    c0p = jnp.pad(c0, ((0, 0), (0, pad), (0, 0)))

    vmem = pl.BlockSpec(memory_space=pltpu.MemorySpace.VMEM)
    out = pl.pallas_call(
        encoder_kernel,
        out_shape=jax.ShapeDtypeStruct((Bp, 2 * L * H), jnp.float32),
        in_specs=[vmem] * 11,
        out_specs=vmem,
        scratch_shapes=[pltpu.VMEM((T * Bp, 4 * H), jnp.float32)],
        compiler_params=pltpu.CompilerParams(vmem_limit_bytes=32 * 1024 * 1024),
    )(acts, durs, ew, wd, wih_hi, whh, b, h0p, c0p, gamma, beta)
    return out[:B]


# ----------------------------------------------------------------------------
# Pure-JAX reference (same math, PyTorch layout) for the correctness check.
# ----------------------------------------------------------------------------
def reference_forward(x, h0, c0, emb_table, wih, whh, b, gamma, beta):
    B, T, _ = x.shape
    L, _, H = h0.shape
    acts = x[:, :, 0].astype(jnp.int32)
    durs = x[:, :, 1:2].astype(jnp.float32)
    seq = jnp.transpose(jnp.concatenate([emb_table[acts], durs], -1), (1, 0, 2))

    hs, cs = [], []
    inp = seq
    for l in range(L):
        def step(carry, x_t):
            h, c = carry
            gates = x_t @ wih[l] + h @ whh[l] + b[l]
            i_g = jax.nn.sigmoid(gates[:, :H])
            f_g = jax.nn.sigmoid(gates[:, H:2 * H])
            g_g = jnp.tanh(gates[:, 2 * H:3 * H])
            o_g = jax.nn.sigmoid(gates[:, 3 * H:])
            c = f_g * c + i_g * g_g
            h = o_g * jnp.tanh(c)
            return (h, c), h
        (h, c), outs = jax.lax.scan(step, (h0[l], c0[l]), inp)
        inp = outs
        hs.append(h)
        cs.append(c)

    def ln(v):
        mu = v.mean(-1, keepdims=True)
        var = ((v - mu) ** 2).mean(-1, keepdims=True)
        return (v - mu) / jnp.sqrt(var + 1e-5) * gamma + beta

    hn = jnp.stack([ln(h) for h in hs])
    cn = jnp.stack([ln(c) for c in cs])
    full = jnp.concatenate([hn, cn], 0)             # (2L, B, H)
    return jnp.transpose(full, (1, 0, 2)).reshape(B, -1)


if __name__ == "__main__":
    # Small shapes consistent with the module.
    B, T = 4, 8            # batch, sequence length
    input_size = 5         # number of activity categories (embedding vocab)
    H = 32                 # hidden_size
    L = 2                  # num_layers

    key = jax.random.PRNGKey(0)
    keys = jax.random.split(key, 10)

    # Inputs: x[..., 0] = activity index, x[..., 1] = duration.
    acts = jax.random.randint(keys[0], (B, T, 1), 0, input_size).astype(jnp.float32)
    durs = jax.random.uniform(keys[1], (B, T, 1), dtype=jnp.float32)
    x = jnp.concatenate([acts, durs], axis=-1)                     # (B, T, 2)
    h0 = jax.random.normal(keys[2], (L, B, H), dtype=jnp.float32)  # initial hidden
    c0 = jax.random.normal(keys[3], (L, B, H), dtype=jnp.float32)  # initial cell

    # Deterministic parameter init (shapes from the module's __init__).
    k = 1.0 / jnp.sqrt(H)
    emb_table = jax.random.normal(keys[4], (input_size, H - 1), dtype=jnp.float32)
    wih = jax.random.uniform(keys[5], (L, H, 4 * H), jnp.float32, -k, k)   # W_ih^T per layer
    whh = jax.random.uniform(keys[6], (L, H, 4 * H), jnp.float32, -k, k)   # W_hh^T per layer
    b_ih = jax.random.uniform(keys[7], (L, 1, 4 * H), jnp.float32, -k, k)
    b_hh = jax.random.uniform(keys[8], (L, 1, 4 * H), jnp.float32, -k, k)
    gamma = jnp.ones((1, H), jnp.float32)    # LayerNorm defaults
    beta = jnp.zeros((1, H), jnp.float32)

    # One-time parameter preprocessing (outside the jitted per-call forward).
    params = prepare_encoder_params(emb_table, wih, whh, b_ih, b_hh, gamma, beta)

    out = encoder_forward(x, h0, c0, *params)
    out = jax.block_until_ready(out)

    ref = reference_forward(x, h0, c0, emb_table, wih, whh, b_ih + b_hh, gamma, beta)
    assert out.shape == (B, 2 * L * H), out.shape
    assert jnp.allclose(out, ref, rtol=1e-3, atol=1e-3), float(jnp.max(jnp.abs(out - ref)))

    print("KERNEL_OK")
</pallas_src>

<mosaic_0001>
module attributes {stable_mosaic.version = 11 : i64} {
  func.func @encoder_kernel(%arg0: memref<64x1xi32, #tpu.memory_space<vmem>>, %arg1: memref<64x1xf32, #tpu.memory_space<vmem>>, %arg2: memref<128x128xf32, #tpu.memory_space<vmem>>, %arg3: memref<1x128xf32, #tpu.memory_space<vmem>>, %arg4: memref<1x32x128xf32, #tpu.memory_space<vmem>>, %arg5: memref<2x32x128xf32, #tpu.memory_space<vmem>>, %arg6: memref<2x1x128xf32, #tpu.memory_space<vmem>>, %arg7: memref<2x8x32xf32, #tpu.memory_space<vmem>>, %arg8: memref<2x8x32xf32, #tpu.memory_space<vmem>>, %arg9: memref<1x32xf32, #tpu.memory_space<vmem>>, %arg10: memref<1x32xf32, #tpu.memory_space<vmem>>, %arg11: memref<8x128xf32, #tpu.memory_space<vmem>>, %arg12: memref<64x128xf32, #tpu.memory_space<vmem>>) attributes {dimension_semantics = [], scalar_prefetch = 0 : i64, scratch_operands = 1 : i64, tpu.core_type = #tpu.core_type<tc>} {
    %c0 = arith.constant 0 : index
    %c0_0 = arith.constant 0 : index
    %0 = vector.load %arg0[%c0, %c0_0] : memref<64x1xi32, #tpu.memory_space<vmem>>, vector<64x1xi32>
    %1 = tpu.iota {dimensions = array<i32: 1>} : vector<64x128xi32>
    %2 = vector.broadcast %0 : vector<64x1xi32> to vector<64x128xi32>
    %3 = arith.cmpi eq, %1, %2 : vector<64x128xi32>
    %cst = arith.constant 1.000000e+00 : f32
    %cst_1 = arith.constant 0.000000e+00 : f32
    %4 = vector.broadcast %cst : f32 to vector<64x128xf32>
    %5 = vector.broadcast %cst_1 : f32 to vector<64x128xf32>
    %6 = arith.select %3, %4, %5 : vector<64x128xi1>, vector<64x128xf32>
    %c0_2 = arith.constant 0 : index
    %c0_3 = arith.constant 0 : index
    %7 = vector.load %arg2[%c0_2, %c0_3] : memref<128x128xf32, #tpu.memory_space<vmem>>, vector<128x128xf32>
    %cst_4 = arith.constant dense<0.000000e+00> : vector<64x128xf32>
    %8 = tpu.matmul %6, %7, %cst_4 {dimension_numbers = #tpu.dot_dimension_numbers<[1], [0], [0], [1], [0, 0, 1, 1], [], []>} : vector<64x128xf32>, vector<128x128xf32>, vector<64x128xf32> -> vector<64x128xf32>
    %c0_5 = arith.constant 0 : index
    %c0_6 = arith.constant 0 : index
    %9 = vector.load %arg1[%c0_5, %c0_6] : memref<64x1xf32, #tpu.memory_space<vmem>>, vector<64x1xf32>
    %c0_7 = arith.constant 0 : index
    %c0_8 = arith.constant 0 : index
    %10 = vector.load %arg3[%c0_7, %c0_8] : memref<1x128xf32, #tpu.memory_space<vmem>>, vector<1x128xf32>
    %11 = vector.broadcast %9 : vector<64x1xf32> to vector<64x128xf32>
    %12 = vector.broadcast %10 : vector<1x128xf32> to vector<64x128xf32>
    %13 = arith.mulf %11, %12 : vector<64x128xf32>
    %14 = arith.addf %8, %13 : vector<64x128xf32>
    %c0_9 = arith.constant 0 : index
    %c0_10 = arith.constant 0 : index
    %c0_11 = arith.constant 0 : index
    %15 = vector.load %arg6[%c0_9, %c0_10, %c0_11] : memref<2x1x128xf32, #tpu.memory_space<vmem>>, vector<1x1x128xf32>
    %16 = vector.shape_cast %15 : vector<1x1x128xf32> to vector<1x128xf32>
    %17 = vector.broadcast %16 : vector<1x128xf32> to vector<64x128xf32>
    %18 = arith.addf %14, %17 : vector<64x128xf32>
    %c0_12 = arith.constant 0 : index
    %c0_13 = arith.constant 0 : index
    %19 = vector.load %arg12[%c0_12, %c0_13] : memref<64x128xf32, #tpu.memory_space<vmem>>, vector<64x128xf32>
    tpu.vector_store %arg12[%c0_12, %c0_13], %18 {strides = array<i32>} : memref<64x128xf32, #tpu.memory_space<vmem>>, vector<64x128xf32>,
    %c0_14 = arith.constant 0 : index
    %c0_15 = arith.constant 0 : index
    %c0_16 = arith.constant 0 : index
    %20 = vector.load %arg5[%c0_14, %c0_15, %c0_16] : memref<2x32x128xf32, #tpu.memory_space<vmem>>, vector<1x32x128xf32>
    %21 = vector.shape_cast %20 : vector<1x32x128xf32> to vector<32x128xf32>
    %c1 = arith.constant 1 : index
    %c0_17 = arith.constant 0 : index
    %c0_18 = arith.constant 0 : index
    %22 = vector.load %arg5[%c1, %c0_17, %c0_18] : memref<2x32x128xf32, #tpu.memory_space<vmem>>, vector<1x32x128xf32>
    %23 = vector.shape_cast %22 : vector<1x32x128xf32> to vector<32x128xf32>
    %c0_19 = arith.constant 0 : index
    %c0_20 = arith.constant 0 : index
    %c0_21 = arith.constant 0 : index
    %24 = vector.load %arg4[%c0_19, %c0_20, %c0_21] : memref<1x32x128xf32, #tpu.memory_space<vmem>>, vector<1x32x128xf32>
    %25 = vector.shape_cast %24 : vector<1x32x128xf32> to vector<32x128xf32>
    %c1_22 = arith.constant 1 : index
    %c0_23 = arith.constant 0 : index
    %c0_24 = arith.constant 0 : index
    %26 = vector.load %arg6[%c1_22, %c0_23, %c0_24] : memref<2x1x128xf32, #tpu.memory_space<vmem>>, vector<1x1x128xf32>
    %27 = vector.shape_cast %26 : vector<1x1x128xf32> to vector<1x128xf32>
    %c0_25 = arith.constant 0 : index
    %c0_26 = arith.constant 0 : index
    %c0_27 = arith.constant 0 : index
    %28 = vector.load %arg7[%c0_25, %c0_26, %c0_27] : memref<2x8x32xf32, #tpu.memory_space<vmem>>, vector<1x8x32xf32>
    %29 = vector.shape_cast %28 : vector<1x8x32xf32> to vector<8x32xf32>
    %c1_28 = arith.constant 1 : index
    %c0_29 = arith.constant 0 : index
    %c0_30 = arith.constant 0 : index
    %30 = vector.load %arg7[%c1_28, %c0_29, %c0_30] : memref<2x8x32xf32, #tpu.memory_space<vmem>>, vector<1x8x32xf32>
    %31 = vector.shape_cast %30 : vector<1x8x32xf32> to vector<8x32xf32>
    %c0_31 = arith.constant 0 : index
    %c0_32 = arith.constant 0 : index
    %c0_33 = arith.constant 0 : index
    %32 = vector.load %arg8[%c0_31, %c0_32, %c0_33] : memref<2x8x32xf32, #tpu.memory_space<vmem>>, vector<1x8x32xf32>
    %33 = vector.shape_cast %32 : vector<1x8x32xf32> to vector<8x32xf32>
    %c1_34 = arith.constant 1 : index
    %c0_35 = arith.constant 0 : index
    %c0_36 = arith.constant 0 : index
    %34 = vector.load %arg8[%c1_34, %c0_35, %c0_36] : memref<2x8x32xf32, #tpu.memory_space<vmem>>, vector<1x8x32xf32>
    %35 = vector.shape_cast %34 : vector<1x8x32xf32> to vector<8x32xf32>
    %c0_37 = arith.constant 0 : index
    %c0_38 = arith.constant 0 : index
    %36 = vector.load %arg12[%c0_37, %c0_38] : memref<64x128xf32, #tpu.memory_space<vmem>>, vector<8x128xf32>
    %cst_39 = arith.constant dense<0.000000e+00> : vector<8x128xf32>
    %37 = tpu.matmul %29, %21, %cst_39 {dimension_numbers = #tpu.dot_dimension_numbers<[1], [0], [0], [1], [0, 0, 1, 1], [], []>} : vector<8x32xf32>, vector<32x128xf32>, vector<8x128xf32> -> vector<8x128xf32>
    %38 = arith.addf %36, %37 : vector<8x128xf32>
    %39 = arith.negf %38 : vector<8x128xf32>
    %40 = math.exp %39 : vector<8x128xf32>
    %cst_40 = arith.constant 1.000000e+00 : f32
    %41 = vector.broadcast %cst_40 : f32 to vector<8x128xf32>
    %42 = arith.addf %41, %40 : vector<8x128xf32>
    %43 = arith.divf %41, %42 : vector<8x128xf32>
    %44 = math.tanh %38 : vector<8x128xf32>
    %45 = vector.extract_strided_slice %43 {offsets = [0, 0], sizes = [8, 32], strides = [1, 1]} : vector<8x128xf32> to vector<8x32xf32>
    %46 = vector.extract_strided_slice %43 {offsets = [0, 32], sizes = [8, 32], strides = [1, 1]} : vector<8x128xf32> to vector<8x32xf32>
    %47 = vector.extract_strided_slice %44 {offsets = [0, 64], sizes = [8, 32], strides = [1, 1]} : vector<8x128xf32> to vector<8x32xf32>
    %48 = vector.extract_strided_slice %43 {offsets = [0, 96], sizes = [8, 32], strides = [1, 1]} : vector<8x128xf32> to vector<8x32xf32>
    %49 = arith.mulf %46, %33 : vector<8x32xf32>
    %50 = arith.mulf %45, %47 : vector<8x32xf32>
    %51 = arith.addf %49, %50 : vector<8x32xf32>
    %52 = math.tanh %51 : vector<8x32xf32>
    %53 = arith.mulf %48, %52 : vector<8x32xf32>
    %cst_41 = arith.constant dense<0.000000e+00> : vector<8x128xf32>
    %54 = tpu.matmul %53, %25, %cst_41 {dimension_numbers = #tpu.dot_dimension_numbers<[1], [0], [0], [1], [0, 0, 1, 1], [], []>} : vector<8x32xf32>, vector<32x128xf32>, vector<8x128xf32> -> vector<8x128xf32>
    %cst_42 = arith.constant dense<0.000000e+00> : vector<8x128xf32>
    %55 = tpu.matmul %31, %23, %cst_42 {dimension_numbers = #tpu.dot_dimension_numbers<[1], [0], [0], [1], [0, 0, 1, 1], [], []>} : vector<8x32xf32>, vector<32x128xf32>, vector<8x128xf32> -> vector<8x128xf32>
    %56 = arith.addf %54, %55 : vector<8x128xf32>
    %57 = vector.broadcast %27 : vector<1x128xf32> to vector<8x128xf32>
    %58 = arith.addf %56, %57 : vector<8x128xf32>
    %59 = arith.negf %58 : vector<8x128xf32>
    %60 = math.exp %59 : vector<8x128xf32>
    %cst_43 = arith.constant 1.000000e+00 : f32
    %61 = vector.broadcast %cst_43 : f32 to vector<8x128xf32>
    %62 = arith.addf %61, %60 : vector<8x128xf32>
    %63 = arith.divf %61, %62 : vector<8x128xf32>
    %64 = math.tanh %58 : vector<8x128xf32>
    %65 = vector.extract_strided_slice %63 {offsets = [0, 0], sizes = [8, 32], strides = [1, 1]} : vector<8x128xf32> to vector<8x32xf32>
    %66 = vector.extract_strided_slice %63 {offsets = [0, 32], sizes = [8, 32], strides = [1, 1]} : vector<8x128xf32> to vector<8x32xf32>
    %67 = vector.extract_strided_slice %64 {offsets = [0, 64], sizes = [8, 32], strides = [1, 1]} : vector<8x128xf32> to vector<8x32xf32>
    %68 = vector.extract_strided_slice %63 {offsets = [0, 96], sizes = [8, 32], strides = [1, 1]} : vector<8x128xf32> to vector<8x32xf32>
    %69 = arith.mulf %66, %35 : vector<8x32xf32>
    %70 = arith.mulf %65, %67 : vector<8x32xf32>
    %71 = arith.addf %69, %70 : vector<8x32xf32>
    %72 = math.tanh %71 : vector<8x32xf32>
    %73 = arith.mulf %68, %72 : vector<8x32xf32>
    %c8 = arith.constant 8 : index
    %c0_44 = arith.constant 0 : index
    %74 = vector.load %arg12[%c8, %c0_44] : memref<64x128xf32, #tpu.memory_space<vmem>>, vector<8x128xf32>
    %cst_45 = arith.constant dense<0.000000e+00> : vector<8x128xf32>
    %75 = tpu.matmul %53, %21, %cst_45 {dimension_numbers = #tpu.dot_dimension_numbers<[1], [0], [0], [1], [0, 0, 1, 1], [], []>} : vector<8x32xf32>, vector<32x128xf32>, vector<8x128xf32> -> vector<8x128xf32>
    %76 = arith.addf %74, %75 : vector<8x128xf32>
    %77 = arith.negf %76 : vector<8x128xf32>
    %78 = math.exp %77 : vector<8x128xf32>
    %cst_46 = arith.constant 1.000000e+00 : f32
    %79 = vector.broadcast %cst_46 : f32 to vector<8x128xf32>
    %80 = arith.addf %79, %78 : vector<8x128xf32>
    %81 = arith.divf %79, %80 : vector<8x128xf32>
    %82 = math.tanh %76 : vector<8x128xf32>
    %83 = vector.extract_strided_slice %81 {offsets = [0, 0], sizes = [8, 32], strides = [1, 1]} : vector<8x128xf32> to vector<8x32xf32>
    %84 = vector.extract_strided_slice %81 {offsets = [0, 32], sizes = [8, 32], strides = [1, 1]} : vector<8x128xf32> to vector<8x32xf32>
    %85 = vector.extract_strided_slice %82 {offsets = [0, 64], sizes = [8, 32], strides = [1, 1]} : vector<8x128xf32> to vector<8x32xf32>
    %86 = vector.extract_strided_slice %81 {offsets = [0, 96], sizes = [8, 32], strides = [1, 1]} : vector<8x128xf32> to vector<8x32xf32>
    %87 = arith.mulf %84, %51 : vector<8x32xf32>
    %88 = arith.mulf %83, %85 : vector<8x32xf32>
    %89 = arith.addf %87, %88 : vector<8x32xf32>
    %90 = math.tanh %89 : vector<8x32xf32>
    %91 = arith.mulf %86, %90 : vector<8x32xf32>
    %cst_47 = arith.constant dense<0.000000e+00> : vector<8x128xf32>
    %92 = tpu.matmul %91, %25, %cst_47 {dimension_numbers = #tpu.dot_dimension_numbers<[1], [0], [0], [1], [0, 0, 1, 1], [], []>} : vector<8x32xf32>, vector<32x128xf32>, vector<8x128xf32> -> vector<8x128xf32>
    %cst_48 = arith.constant dense<0.000000e+00> : vector<8x128xf32>
    %93 = tpu.matmul %73, %23, %cst_48 {dimension_numbers = #tpu.dot_dimension_numbers<[1], [0], [0], [1], [0, 0, 1, 1], [], []>} : vector<8x32xf32>, vector<32x128xf32>, vector<8x128xf32> -> vector<8x128xf32>
    %94 = arith.addf %92, %93 : vector<8x128xf32>
    %95 = vector.broadcast %27 : vector<1x128xf32> to vector<8x128xf32>
    %96 = arith.addf %94, %95 : vector<8x128xf32>
    %97 = arith.negf %96 : vector<8x128xf32>
    %98 = math.exp %97 : vector<8x128xf32>
    %cst_49 = arith.constant 1.000000e+00 : f32
    %99 = vector.broadcast %cst_49 : f32 to vector<8x128xf32>
    %100 = arith.addf %99, %98 : vector<8x128xf32>
    %101 = arith.divf %99, %100 : vector<8x128xf32>
    %102 = math.tanh %96 : vector<8x128xf32>
    %103 = vector.extract_strided_slice %101 {offsets = [0, 0], sizes = [8, 32], strides = [1, 1]} : vector<8x128xf32> to vector<8x32xf32>
    %104 = vector.extract_strided_slice %101 {offsets = [0, 32], sizes = [8, 32], strides = [1, 1]} : vector<8x128xf32> to vector<8x32xf32>
    %105 = vector.extract_strided_slice %102 {offsets = [0, 64], sizes = [8, 32], strides = [1, 1]} : vector<8x128xf32> to vector<8x32xf32>
    %106 = vector.extract_strided_slice %101 {offsets = [0, 96], sizes = [8, 32], strides = [1, 1]} : vector<8x128xf32> to vector<8x32xf32>
    %107 = arith.mulf %104, %71 : vector<8x32xf32>
    %108 = arith.mulf %103, %105 : vector<8x32xf32>
    %109 = arith.addf %107, %108 : vector<8x32xf32>
    %110 = math.tanh %109 : vector<8x32xf32>
    %111 = arith.mulf %106, %110 : vector<8x32xf32>
    %c16 = arith.constant 16 : index
    %c0_50 = arith.constant 0 : index
    %112 = vector.load %arg12[%c16, %c0_50] : memref<64x128xf32, #tpu.memory_space<vmem>>, vector<8x128xf32>
    %cst_51 = arith.constant dense<0.000000e+00> : vector<8x128xf32>
    %113 = tpu.matmul %91, %21, %cst_51 {dimension_numbers = #tpu.dot_dimension_numbers<[1], [0], [0], [1], [0, 0, 1, 1], [], []>} : vector<8x32xf32>, vector<32x128xf32>, vector<8x128xf32> -> vector<8x128xf32>
    %114 = arith.addf %112, %113 : vector<8x128xf32>
    %115 = arith.negf %114 : vector<8x128xf32>
    %116 = math.exp %115 : vector<8x128xf32>
    %cst_52 = arith.constant 1.000000e+00 : f32
    %117 = vector.broadcast %cst_52 : f32 to vector<8x128xf32>
    %118 = arith.addf %117, %116 : vector<8x128xf32>
    %119 = arith.divf %117, %118 : vector<8x128xf32>
    %120 = math.tanh %114 : vector<8x128xf32>
    %121 = vector.extract_strided_slice %119 {offsets = [0, 0], sizes = [8, 32], strides = [1, 1]} : vector<8x128xf32> to vector<8x32xf32>
    %122 = vector.extract_strided_slice %119 {offsets = [0, 32], sizes = [8, 32], strides = [1, 1]} : vector<8x128xf32> to vector<8x32xf32>
    %123 = vector.extract_strided_slice %120 {offsets = [0, 64], sizes = [8, 32], strides = [1, 1]} : vector<8x128xf32> to vector<8x32xf32>
    %124 = vector.extract_strided_slice %119 {offsets = [0, 96], sizes = [8, 32], strides = [1, 1]} : vector<8x128xf32> to vector<8x32xf32>
    %125 = arith.mulf %122, %89 : vector<8x32xf32>
    %126 = arith.mulf %121, %123 : vector<8x32xf32>
    %127 = arith.addf %125, %126 : vector<8x32xf32>
    %128 = math.tanh %127 : vector<8x32xf32>
    %129 = arith.mulf %124, %128 : vector<8x32xf32>
    %cst_53 = arith.constant dense<0.000000e+00> : vector<8x128xf32>
    %130 = tpu.matmul %129, %25, %cst_53 {dimension_numbers = #tpu.dot_dimension_numbers<[1], [0], [0], [1], [0, 0, 1, 1], [], []>} : vector<8x32xf32>, vector<32x128xf32>, vector<8x128xf32> -> vector<8x128xf32>
    %cst_54 = arith.constant dense<0.000000e+00> : vector<8x128xf32>
    %131 = tpu.matmul %111, %23, %cst_54 {dimension_numbers = #tpu.dot_dimension_numbers<[1], [0], [0], [1], [0, 0, 1, 1], [], []>} : vector<8x32xf32>, vector<32x128xf32>, vector<8x128xf32> -> vector<8x128xf32>
    %132 = arith.addf %130, %131 : vector<8x128xf32>
    %133 = vector.broadcast %27 : vector<1x128xf32> to vector<8x128xf32>
    %134 = arith.addf %132, %133 : vector<8x128xf32>
    %135 = arith.negf %134 : vector<8x128xf32>
    %136 = math.exp %135 : vector<8x128xf32>
    %cst_55 = arith.constant 1.000000e+00 : f32
    %137 = vector.broadcast %cst_55 : f32 to vector<8x128xf32>
    %138 = arith.addf %137, %136 : vector<8x128xf32>
    %139 = arith.divf %137, %138 : vector<8x128xf32>
    %140 = math.tanh %134 : vector<8x128xf32>
    %141 = vector.extract_strided_slice %139 {offsets = [0, 0], sizes = [8, 32], strides = [1, 1]} : vector<8x128xf32> to vector<8x32xf32>
    %142 = vector.extract_strided_slice %139 {offsets = [0, 32], sizes = [8, 32], strides = [1, 1]} : vector<8x128xf32> to vector<8x32xf32>
    %143 = vector.extract_strided_slice %140 {offsets = [0, 64], sizes = [8, 32], strides = [1, 1]} : vector<8x128xf32> to vector<8x32xf32>
    %144 = vector.extract_strided_slice %139 {offsets = [0, 96], sizes = [8, 32], strides = [1, 1]} : vector<8x128xf32> to vector<8x32xf32>
    %145 = arith.mulf %142, %109 : vector<8x32xf32>
    %146 = arith.mulf %141, %143 : vector<8x32xf32>
    %147 = arith.addf %145, %146 : vector<8x32xf32>
    %148 = math.tanh %147 : vector<8x32xf32>
    %149 = arith.mulf %144, %148 : vector<8x32xf32>
    %c24 = arith.constant 24 : index
    %c0_56 = arith.constant 0 : index
    %150 = vector.load %arg12[%c24, %c0_56] : memref<64x128xf32, #tpu.memory_space<vmem>>, vector<8x128xf32>
    %cst_57 = arith.constant dense<0.000000e+00> : vector<8x128xf32>
    %151 = tpu.matmul %129, %21, %cst_57 {dimension_numbers = #tpu.dot_dimension_numbers<[1], [0], [0], [1], [0, 0, 1, 1], [], []>} : vector<8x32xf32>, vector<32x128xf32>, vector<8x128xf32> -> vector<8x128xf32>
    %152 = arith.addf %150, %151 : vector<8x128xf32>
    %153 = arith.negf %152 : vector<8x128xf32>
    %154 = math.exp %153 : vector<8x128xf32>
    %cst_58 = arith.constant 1.000000e+00 : f32
    %155 = vector.broadcast %cst_58 : f32 to vector<8x128xf32>
    %156 = arith.addf %155, %154 : vector<8x128xf32>
    %157 = arith.divf %155, %156 : vector<8x128xf32>
    %158 = math.tanh %152 : vector<8x128xf32>
    %159 = vector.extract_strided_slice %157 {offsets = [0, 0], sizes = [8, 32], strides = [1, 1]} : vector<8x128xf32> to vector<8x32xf32>
    %160 = vector.extract_strided_slice %157 {offsets = [0, 32], sizes = [8, 32], strides = [1, 1]} : vector<8x128xf32> to vector<8x32xf32>
    %161 = vector.extract_strided_slice %158 {offsets = [0, 64], sizes = [8, 32], strides = [1, 1]} : vector<8x128xf32> to vector<8x32xf32>
    %162 = vector.extract_strided_slice %157 {offsets = [0, 96], sizes = [8, 32], strides = [1, 1]} : vector<8x128xf32> to vector<8x32xf32>
    %163 = arith.mulf %160, %127 : vector<8x32xf32>
    %164 = arith.mulf %159, %161 : vector<8x32xf32>
    %165 = arith.addf %163, %164 : vector<8x32xf32>
    %166 = math.tanh %165 : vector<8x32xf32>
    %167 = arith.mulf %162, %166 : vector<8x32xf32>
    %cst_59 = arith.constant dense<0.000000e+00> : vector<8x128xf32>
    %168 = tpu.matmul %167, %25, %cst_59 {dimension_numbers = #tpu.dot_dimension_numbers<[1], [0], [0], [1], [0, 0, 1, 1], [], []>} : vector<8x32xf32>, vector<32x128xf32>, vector<8x128xf32> -> vector<8x128xf32>
    %cst_60 = arith.constant dense<0.000000e+00> : vector<8x128xf32>
    %169 = tpu.matmul %149, %23, %cst_60 {dimension_numbers = #tpu.dot_dimension_numbers<[1], [0], [0], [1], [0, 0, 1, 1], [], []>} : vector<8x32xf32>, vector<32x128xf32>, vector<8x128xf32> -> vector<8x128xf32>
    %170 = arith.addf %168, %169 : vector<8x128xf32>
    %171 = vector.broadcast %27 : vector<1x128xf32> to vector<8x128xf32>
    %172 = arith.addf %170, %171 : vector<8x128xf32>
    %173 = arith.negf %172 : vector<8x128xf32>
    %174 = math.exp %173 : vector<8x128xf32>
    %cst_61 = arith.constant 1.000000e+00 : f32
    %175 = vector.broadcast %cst_61 : f32 to vector<8x128xf32>
    %176 = arith.addf %175, %174 : vector<8x128xf32>
    %177 = arith.divf %175, %176 : vector<8x128xf32>
    %178 = math.tanh %172 : vector<8x128xf32>
    %179 = vector.extract_strided_slice %177 {offsets = [0, 0], sizes = [8, 32], strides = [1, 1]} : vector<8x128xf32> to vector<8x32xf32>
    %180 = vector.extract_strided_slice %177 {offsets = [0, 32], sizes = [8, 32], strides = [1, 1]} : vector<8x128xf32> to vector<8x32xf32>
    %181 = vector.extract_strided_slice %178 {offsets = [0, 64], sizes = [8, 32], strides = [1, 1]} : vector<8x128xf32> to vector<8x32xf32>
    %182 = vector.extract_strided_slice %177 {offsets = [0, 96], sizes = [8, 32], strides = [1, 1]} : vector<8x128xf32> to vector<8x32xf32>
    %183 = arith.mulf %180, %147 : vector<8x32xf32>
    %184 = arith.mulf %179, %181 : vector<8x32xf32>
    %185 = arith.addf %183, %184 : vector<8x32xf32>
    %186 = math.tanh %185 : vector<8x32xf32>
    %187 = arith.mulf %182, %186 : vector<8x32xf32>
    %c32 = arith.constant 32 : index
    %c0_62 = arith.constant 0 : index
    %188 = vector.load %arg12[%c32, %c0_62] : memref<64x128xf32, #tpu.memory_space<vmem>>, vector<8x128xf32>
    %cst_63 = arith.constant dense<0.000000e+00> : vector<8x128xf32>
    %189 = tpu.matmul %167, %21, %cst_63 {dimension_numbers = #tpu.dot_dimension_numbers<[1], [0], [0], [1], [0, 0, 1, 1], [], []>} : vector<8x32xf32>, vector<32x128xf32>, vector<8x128xf32> -> vector<8x128xf32>
    %190 = arith.addf %188, %189 : vector<8x128xf32>
    %191 = arith.negf %190 : vector<8x128xf32>
    %192 = math.exp %191 : vector<8x128xf32>
    %cst_64 = arith.constant 1.000000e+00 : f32
    %193 = vector.broadcast %cst_64 : f32 to vector<8x128xf32>
    %194 = arith.addf %193, %192 : vector<8x128xf32>
    %195 = arith.divf %193, %194 : vector<8x128xf32>
    %196 = math.tanh %190 : vector<8x128xf32>
    %197 = vector.extract_strided_slice %195 {offsets = [0, 0], sizes = [8, 32], strides = [1, 1]} : vector<8x128xf32> to vector<8x32xf32>
    %198 = vector.extract_strided_slice %195 {offsets = [0, 32], sizes = [8, 32], strides = [1, 1]} : vector<8x128xf32> to vector<8x32xf32>
    %199 = vector.extract_strided_slice %196 {offsets = [0, 64], sizes = [8, 32], strides = [1, 1]} : vector<8x128xf32> to vector<8x32xf32>
    %200 = vector.extract_strided_slice %195 {offsets = [0, 96], sizes = [8, 32], strides = [1, 1]} : vector<8x128xf32> to vector<8x32xf32>
    %201 = arith.mulf %198, %165 : vector<8x32xf32>
    %202 = arith.mulf %197, %199 : vector<8x32xf32>
    %203 = arith.addf %201, %202 : vector<8x32xf32>
    %204 = math.tanh %203 : vector<8x32xf32>
    %205 = arith.mulf %200, %204 : vector<8x32xf32>
    %cst_65 = arith.constant dense<0.000000e+00> : vector<8x128xf32>
    %206 = tpu.matmul %205, %25, %cst_65 {dimension_numbers = #tpu.dot_dimension_numbers<[1], [0], [0], [1], [0, 0, 1, 1], [], []>} : vector<8x32xf32>, vector<32x128xf32>, vector<8x128xf32> -> vector<8x128xf32>
    %cst_66 = arith.constant dense<0.000000e+00> : vector<8x128xf32>
    %207 = tpu.matmul %187, %23, %cst_66 {dimension_numbers = #tpu.dot_dimension_numbers<[1], [0], [0], [1], [0, 0, 1, 1], [], []>} : vector<8x32xf32>, vector<32x128xf32>, vector<8x128xf32> -> vector<8x128xf32>
    %208 = arith.addf %206, %207 : vector<8x128xf32>
    %209 = vector.broadcast %27 : vector<1x128xf32> to vector<8x128xf32>
    %210 = arith.addf %208, %209 : vector<8x128xf32>
    %211 = arith.negf %210 : vector<8x128xf32>
    %212 = math.exp %211 : vector<8x128xf32>
    %cst_67 = arith.constant 1.000000e+00 : f32
    %213 = vector.broadcast %cst_67 : f32 to vector<8x128xf32>
    %214 = arith.addf %213, %212 : vector<8x128xf32>
    %215 = arith.divf %213, %214 : vector<8x128xf32>
    %216 = math.tanh %210 : vector<8x128xf32>
    %217 = vector.extract_strided_slice %215 {offsets = [0, 0], sizes = [8, 32], strides = [1, 1]} : vector<8x128xf32> to vector<8x32xf32>
    %218 = vector.extract_strided_slice %215 {offsets = [0, 32], sizes = [8, 32], strides = [1, 1]} : vector<8x128xf32> to vector<8x32xf32>
    %219 = vector.extract_strided_slice %216 {offsets = [0, 64], sizes = [8, 32], strides = [1, 1]} : vector<8x128xf32> to vector<8x32xf32>
    %220 = vector.extract_strided_slice %215 {offsets = [0, 96], sizes = [8, 32], strides = [1, 1]} : vector<8x128xf32> to vector<8x32xf32>
    %221 = arith.mulf %218, %185 : vector<8x32xf32>
    %222 = arith.mulf %217, %219 : vector<8x32xf32>
    %223 = arith.addf %221, %222 : vector<8x32xf32>
    %224 = math.tanh %223 : vector<8x32xf32>
    %225 = arith.mulf %220, %224 : vector<8x32xf32>
    %c40 = arith.constant 40 : index
    %c0_68 = arith.constant 0 : index
    %226 = vector.load %arg12[%c40, %c0_68] : memref<64x128xf32, #tpu.memory_space<vmem>>, vector<8x128xf32>
    %cst_69 = arith.constant dense<0.000000e+00> : vector<8x128xf32>
    %227 = tpu.matmul %205, %21, %cst_69 {dimension_numbers = #tpu.dot_dimension_numbers<[1], [0], [0], [1], [0, 0, 1, 1], [], []>} : vector<8x32xf32>, vector<32x128xf32>, vector<8x128xf32> -> vector<8x128xf32>
    %228 = arith.addf %226, %227 : vector<8x128xf32>
    %229 = arith.negf %228 : vector<8x128xf32>
    %230 = math.exp %229 : vector<8x128xf32>
    %cst_70 = arith.constant 1.000000e+00 : f32
    %231 = vector.broadcast %cst_70 : f32 to vector<8x128xf32>
    %232 = arith.addf %231, %230 : vector<8x128xf32>
    %233 = arith.divf %231, %232 : vector<8x128xf32>
    %234 = math.tanh %228 : vector<8x128xf32>
    %235 = vector.extract_strided_slice %233 {offsets = [0, 0], sizes = [8, 32], strides = [1, 1]} : vector<8x128xf32> to vector<8x32xf32>
    %236 = vector.extract_strided_slice %233 {offsets = [0, 32], sizes = [8, 32], strides = [1, 1]} : vector<8x128xf32> to vector<8x32xf32>
    %237 = vector.extract_strided_slice %234 {offsets = [0, 64], sizes = [8, 32], strides = [1, 1]} : vector<8x128xf32> to vector<8x32xf32>
    %238 = vector.extract_strided_slice %233 {offsets = [0, 96], sizes = [8, 32], strides = [1, 1]} : vector<8x128xf32> to vector<8x32xf32>
    %239 = arith.mulf %236, %203 : vector<8x32xf32>
    %240 = arith.mulf %235, %237 : vector<8x32xf32>
    %241 = arith.addf %239, %240 : vector<8x32xf32>
    %242 = math.tanh %241 : vector<8x32xf32>
    %243 = arith.mulf %238, %242 : vector<8x32xf32>
    %cst_71 = arith.constant dense<0.000000e+00> : vector<8x128xf32>
    %244 = tpu.matmul %243, %25, %cst_71 {dimension_numbers = #tpu.dot_dimension_numbers<[1], [0], [0], [1], [0, 0, 1, 1], [], []>} : vector<8x32xf32>, vector<32x128xf32>, vector<8x128xf32> -> vector<8x128xf32>
    %cst_72 = arith.constant dense<0.000000e+00> : vector<8x128xf32>
    %245 = tpu.matmul %225, %23, %cst_72 {dimension_numbers = #tpu.dot_dimension_numbers<[1], [0], [0], [1], [0, 0, 1, 1], [], []>} : vector<8x32xf32>, vector<32x128xf32>, vector<8x128xf32> -> vector<8x128xf32>
    %246 = arith.addf %244, %245 : vector<8x128xf32>
    %247 = vector.broadcast %27 : vector<1x128xf32> to vector<8x128xf32>
    %248 = arith.addf %246, %247 : vector<8x128xf32>
    %249 = arith.negf %248 : vector<8x128xf32>
    %250 = math.exp %249 : vector<8x128xf32>
    %cst_73 = arith.constant 1.000000e+00 : f32
    %251 = vector.broadcast %cst_73 : f32 to vector<8x128xf32>
    %252 = arith.addf %251, %250 : vector<8x128xf32>
    %253 = arith.divf %251, %252 : vector<8x128xf32>
    %254 = math.tanh %248 : vector<8x128xf32>
    %255 = vector.extract_strided_slice %253 {offsets = [0, 0], sizes = [8, 32], strides = [1, 1]} : vector<8x128xf32> to vector<8x32xf32>
    %256 = vector.extract_strided_slice %253 {offsets = [0, 32], sizes = [8, 32], strides = [1, 1]} : vector<8x128xf32> to vector<8x32xf32>
    %257 = vector.extract_strided_slice %254 {offsets = [0, 64], sizes = [8, 32], strides = [1, 1]} : vector<8x128xf32> to vector<8x32xf32>
    %258 = vector.extract_strided_slice %253 {offsets = [0, 96], sizes = [8, 32], strides = [1, 1]} : vector<8x128xf32> to vector<8x32xf32>
    %259 = arith.mulf %256, %223 : vector<8x32xf32>
    %260 = arith.mulf %255, %257 : vector<8x32xf32>
    %261 = arith.addf %259, %260 : vector<8x32xf32>
    %262 = math.tanh %261 : vector<8x32xf32>
    %263 = arith.mulf %258, %262 : vector<8x32xf32>
    %c48 = arith.constant 48 : index
    %c0_74 = arith.constant 0 : index
    %264 = vector.load %arg12[%c48, %c0_74] : memref<64x128xf32, #tpu.memory_space<vmem>>, vector<8x128xf32>
    %cst_75 = arith.constant dense<0.000000e+00> : vector<8x128xf32>
    %265 = tpu.matmul %243, %21, %cst_75 {dimension_numbers = #tpu.dot_dimension_numbers<[1], [0], [0], [1], [0, 0, 1, 1], [], []>} : vector<8x32xf32>, vector<32x128xf32>, vector<8x128xf32> -> vector<8x128xf32>
    %266 = arith.addf %264, %265 : vector<8x128xf32>
    %267 = arith.negf %266 : vector<8x128xf32>
    %268 = math.exp %267 : vector<8x128xf32>
    %cst_76 = arith.constant 1.000000e+00 : f32
    %269 = vector.broadcast %cst_76 : f32 to vector<8x128xf32>
    %270 = arith.addf %269, %268 : vector<8x128xf32>
    %271 = arith.divf %269, %270 : vector<8x128xf32>
    %272 = math.tanh %266 : vector<8x128xf32>
    %273 = vector.extract_strided_slice %271 {offsets = [0, 0], sizes = [8, 32], strides = [1, 1]} : vector<8x128xf32> to vector<8x32xf32>
    %274 = vector.extract_strided_slice %271 {offsets = [0, 32], sizes = [8, 32], strides = [1, 1]} : vector<8x128xf32> to vector<8x32xf32>
    %275 = vector.extract_strided_slice %272 {offsets = [0, 64], sizes = [8, 32], strides = [1, 1]} : vector<8x128xf32> to vector<8x32xf32>
    %276 = vector.extract_strided_slice %271 {offsets = [0, 96], sizes = [8, 32], strides = [1, 1]} : vector<8x128xf32> to vector<8x32xf32>
    %277 = arith.mulf %274, %241 : vector<8x32xf32>
    %278 = arith.mulf %273, %275 : vector<8x32xf32>
    %279 = arith.addf %277, %278 : vector<8x32xf32>
    %280 = math.tanh %279 : vector<8x32xf32>
    %281 = arith.mulf %276, %280 : vector<8x32xf32>
    %cst_77 = arith.constant dense<0.000000e+00> : vector<8x128xf32>
    %282 = tpu.matmul %281, %25, %cst_77 {dimension_numbers = #tpu.dot_dimension_numbers<[1], [0], [0], [1], [0, 0, 1, 1], [], []>} : vector<8x32xf32>, vector<32x128xf32>, vector<8x128xf32> -> vector<8x128xf32>
    %cst_78 = arith.constant dense<0.000000e+00> : vector<8x128xf32>
    %283 = tpu.matmul %263, %23, %cst_78 {dimension_numbers = #tpu.dot_dimension_numbers<[1], [0], [0], [1], [0, 0, 1, 1], [], []>} : vector<8x32xf32>, vector<32x128xf32>, vector<8x128xf32> -> vector<8x128xf32>
    %284 = arith.addf %282, %283 : vector<8x128xf32>
    %285 = vector.broadcast %27 : vector<1x128xf32> to vector<8x128xf32>
    %286 = arith.addf %284, %285 : vector<8x128xf32>
    %287 = arith.negf %286 : vector<8x128xf32>
    %288 = math.exp %287 : vector<8x128xf32>
    %cst_79 = arith.constant 1.000000e+00 : f32
    %289 = vector.broadcast %cst_79 : f32 to vector<8x128xf32>
    %290 = arith.addf %289, %288 : vector<8x128xf32>
    %291 = arith.divf %289, %290 : vector<8x128xf32>
    %292 = math.tanh %286 : vector<8x128xf32>
    %293 = vector.extract_strided_slice %291 {offsets = [0, 0], sizes = [8, 32], strides = [1, 1]} : vector<8x128xf32> to vector<8x32xf32>
    %294 = vector.extract_strided_slice %291 {offsets = [0, 32], sizes = [8, 32], strides = [1, 1]} : vector<8x128xf32> to vector<8x32xf32>
    %295 = vector.extract_strided_slice %292 {offsets = [0, 64], sizes = [8, 32], strides = [1, 1]} : vector<8x128xf32> to vector<8x32xf32>
    %296 = vector.extract_strided_slice %291 {offsets = [0, 96], sizes = [8, 32], strides = [1, 1]} : vector<8x128xf32> to vector<8x32xf32>
    %297 = arith.mulf %294, %261 : vector<8x32xf32>
    %298 = arith.mulf %293, %295 : vector<8x32xf32>
    %299 = arith.addf %297, %298 : vector<8x32xf32>
    %300 = math.tanh %299 : vector<8x32xf32>
    %301 = arith.mulf %296, %300 : vector<8x32xf32>
    %c56 = arith.constant 56 : index
    %c0_80 = arith.constant 0 : index
    %302 = vector.load %arg12[%c56, %c0_80] : memref<64x128xf32, #tpu.memory_space<vmem>>, vector<8x128xf32>
    %cst_81 = arith.constant dense<0.000000e+00> : vector<8x128xf32>
    %303 = tpu.matmul %281, %21, %cst_81 {dimension_numbers = #tpu.dot_dimension_numbers<[1], [0], [0], [1], [0, 0, 1, 1], [], []>} : vector<8x32xf32>, vector<32x128xf32>, vector<8x128xf32> -> vector<8x128xf32>
    %304 = arith.addf %302, %303 : vector<8x128xf32>
    %305 = arith.negf %304 : vector<8x128xf32>
    %306 = math.exp %305 : vector<8x128xf32>
    %cst_82 = arith.constant 1.000000e+00 : f32
    %307 = vector.broadcast %cst_82 : f32 to vector<8x128xf32>
    %308 = arith.addf %307, %306 : vector<8x128xf32>
    %309 = arith.divf %307, %308 : vector<8x128xf32>
    %310 = math.tanh %304 : vector<8x128xf32>
    %311 = vector.extract_strided_slice %309 {offsets = [0, 0], sizes = [8, 32], strides = [1, 1]} : vector<8x128xf32> to vector<8x32xf32>
    %312 = vector.extract_strided_slice %309 {offsets = [0, 32], sizes = [8, 32], strides = [1, 1]} : vector<8x128xf32> to vector<8x32xf32>
    %313 = vector.extract_strided_slice %310 {offsets = [0, 64], sizes = [8, 32], strides = [1, 1]} : vector<8x128xf32> to vector<8x32xf32>
    %314 = vector.extract_strided_slice %309 {offsets = [0, 96], sizes = [8, 32], strides = [1, 1]} : vector<8x128xf32> to vector<8x32xf32>
    %315 = arith.mulf %312, %279 : vector<8x32xf32>
    %316 = arith.mulf %311, %313 : vector<8x32xf32>
    %317 = arith.addf %315, %316 : vector<8x32xf32>
    %318 = math.tanh %317 : vector<8x32xf32>
    %319 = arith.mulf %314, %318 : vector<8x32xf32>
    %cst_83 = arith.constant dense<0.000000e+00> : vector<8x128xf32>
    %320 = tpu.matmul %319, %25, %cst_83 {dimension_numbers = #tpu.dot_dimension_numbers<[1], [0], [0], [1], [0, 0, 1, 1], [], []>} : vector<8x32xf32>, vector<32x128xf32>, vector<8x128xf32> -> vector<8x128xf32>
    %cst_84 = arith.constant dense<0.000000e+00> : vector<8x128xf32>
    %321 = tpu.matmul %301, %23, %cst_84 {dimension_numbers = #tpu.dot_dimension_numbers<[1], [0], [0], [1], [0, 0, 1, 1], [], []>} : vector<8x32xf32>, vector<32x128xf32>, vector<8x128xf32> -> vector<8x128xf32>
    %322 = arith.addf %320, %321 : vector<8x128xf32>
    %323 = vector.broadcast %27 : vector<1x128xf32> to vector<8x128xf32>
    %324 = arith.addf %322, %323 : vector<8x128xf32>
    %325 = arith.negf %324 : vector<8x128xf32>
    %326 = math.exp %325 : vector<8x128xf32>
    %cst_85 = arith.constant 1.000000e+00 : f32
    %327 = vector.broadcast %cst_85 : f32 to vector<8x128xf32>
    %328 = arith.addf %327, %326 : vector<8x128xf32>
    %329 = arith.divf %327, %328 : vector<8x128xf32>
    %330 = math.tanh %324 : vector<8x128xf32>
    %331 = vector.extract_strided_slice %329 {offsets = [0, 0], sizes = [8, 32], strides = [1, 1]} : vector<8x128xf32> to vector<8x32xf32>
    %332 = vector.extract_strided_slice %329 {offsets = [0, 32], sizes = [8, 32], strides = [1, 1]} : vector<8x128xf32> to vector<8x32xf32>
    %333 = vector.extract_strided_slice %330 {offsets = [0, 64], sizes = [8, 32], strides = [1, 1]} : vector<8x128xf32> to vector<8x32xf32>
    %334 = vector.extract_strided_slice %329 {offsets = [0, 96], sizes = [8, 32], strides = [1, 1]} : vector<8x128xf32> to vector<8x32xf32>
    %335 = arith.mulf %332, %299 : vector<8x32xf32>
    %336 = arith.mulf %331, %333 : vector<8x32xf32>
    %337 = arith.addf %335, %336 : vector<8x32xf32>
    %338 = math.tanh %337 : vector<8x32xf32>
    %339 = arith.mulf %334, %338 : vector<8x32xf32>
    %c0_86 = arith.constant 0 : index
    %c0_87 = arith.constant 0 : index
    %340 = vector.load %arg9[%c0_86, %c0_87] : memref<1x32xf32, #tpu.memory_space<vmem>>, vector<1x32xf32>
    %c0_88 = arith.constant 0 : index
    %c0_89 = arith.constant 0 : index
    %341 = vector.load %arg10[%c0_88, %c0_89] : memref<1x32xf32, #tpu.memory_space<vmem>>, vector<1x32xf32>
    %cst_90 = arith.constant dense<0.000000e+00> : vector<8xf32>
    %342 = vector.multi_reduction <add>, %319, %cst_90 [1] : vector<8x32xf32> to vector<8xf32>
    %343 = vector.shape_cast %342 : vector<8xf32> to vector<8x1xf32>
    %cst_91 = arith.constant 3.200000e+01 : f32
    %344 = vector.broadcast %cst_91 : f32 to vector<8x1xf32>
    %345 = arith.divf %343, %344 : vector<8x1xf32>
    %346 = vector.broadcast %345 : vector<8x1xf32> to vector<8x32xf32>
    %347 = arith.subf %319, %346 : vector<8x32xf32>
    %348 = arith.mulf %347, %347 : vector<8x32xf32>
    %cst_92 = arith.constant dense<0.000000e+00> : vector<8xf32>
    %349 = vector.multi_reduction <add>, %348, %cst_92 [1] : vector<8x32xf32> to vector<8xf32>
    %350 = vector.shape_cast %349 : vector<8xf32> to vector<8x1xf32>
    %cst_93 = arith.constant 3.200000e+01 : f32
    %351 = vector.broadcast %cst_93 : f32 to vector<8x1xf32>
    %352 = arith.divf %350, %351 : vector<8x1xf32>
    %353 = vector.broadcast %345 : vector<8x1xf32> to vector<8x32xf32>
    %354 = arith.subf %319, %353 : vector<8x32xf32>
    %cst_94 = arith.constant 9.99999974E-6 : f32
    %355 = vector.broadcast %cst_94 : f32 to vector<8x1xf32>
    %356 = arith.addf %352, %355 : vector<8x1xf32>
    %357 = math.rsqrt %356 : vector<8x1xf32>
    %358 = vector.broadcast %357 : vector<8x1xf32> to vector<8x32xf32>
    %359 = arith.mulf %354, %358 : vector<8x32xf32>
    %360 = vector.broadcast %340 : vector<1x32xf32> to vector<8x32xf32>
    %361 = arith.mulf %359, %360 : vector<8x32xf32>
    %362 = vector.broadcast %341 : vector<1x32xf32> to vector<8x32xf32>
    %363 = arith.addf %361, %362 : vector<8x32xf32>
    %cst_95 = arith.constant dense<0.000000e+00> : vector<8xf32>
    %364 = vector.multi_reduction <add>, %339, %cst_95 [1] : vector<8x32xf32> to vector<8xf32>
    %365 = vector.shape_cast %364 : vector<8xf32> to vector<8x1xf32>
    %cst_96 = arith.constant 3.200000e+01 : f32
    %366 = vector.broadcast %cst_96 : f32 to vector<8x1xf32>
    %367 = arith.divf %365, %366 : vector<8x1xf32>
    %368 = vector.broadcast %367 : vector<8x1xf32> to vector<8x32xf32>
    %369 = arith.subf %339, %368 : vector<8x32xf32>
    %370 = arith.mulf %369, %369 : vector<8x32xf32>
    %cst_97 = arith.constant dense<0.000000e+00> : vector<8xf32>
    %371 = vector.multi_reduction <add>, %370, %cst_97 [1] : vector<8x32xf32> to vector<8xf32>
    %372 = vector.shape_cast %371 : vector<8xf32> to vector<8x1xf32>
    %cst_98 = arith.constant 3.200000e+01 : f32
    %373 = vector.broadcast %cst_98 : f32 to vector<8x1xf32>
    %374 = arith.divf %372, %373 : vector<8x1xf32>
    %375 = vector.broadcast %367 : vector<8x1xf32> to vector<8x32xf32>
    %376 = arith.subf %339, %375 : vector<8x32xf32>
    %cst_99 = arith.constant 9.99999974E-6 : f32
    %377 = vector.broadcast %cst_99 : f32 to vector<8x1xf32>
    %378 = arith.addf %374, %377 : vector<8x1xf32>
    %379 = math.rsqrt %378 : vector<8x1xf32>
    %380 = vector.broadcast %379 : vector<8x1xf32> to vector<8x32xf32>
    %381 = arith.mulf %376, %380 : vector<8x32xf32>
    %382 = vector.broadcast %340 : vector<1x32xf32> to vector<8x32xf32>
    %383 = arith.mulf %381, %382 : vector<8x32xf32>
    %384 = vector.broadcast %341 : vector<1x32xf32> to vector<8x32xf32>
    %385 = arith.addf %383, %384 : vector<8x32xf32>
    %cst_100 = arith.constant dense<0.000000e+00> : vector<8xf32>
    %386 = vector.multi_reduction <add>, %317, %cst_100 [1] : vector<8x32xf32> to vector<8xf32>
    %387 = vector.shape_cast %386 : vector<8xf32> to vector<8x1xf32>
    %cst_101 = arith.constant 3.200000e+01 : f32
    %388 = vector.broadcast %cst_101 : f32 to vector<8x1xf32>
    %389 = arith.divf %387, %388 : vector<8x1xf32>
    %390 = vector.broadcast %389 : vector<8x1xf32> to vector<8x32xf32>
    %391 = arith.subf %317, %390 : vector<8x32xf32>
    %392 = arith.mulf %391, %391 : vector<8x32xf32>
    %cst_102 = arith.constant dense<0.000000e+00> : vector<8xf32>
    %393 = vector.multi_reduction <add>, %392, %cst_102 [1] : vector<8x32xf32> to vector<8xf32>
    %394 = vector.shape_cast %393 : vector<8xf32> to vector<8x1xf32>
    %cst_103 = arith.constant 3.200000e+01 : f32
    %395 = vector.broadcast %cst_103 : f32 to vector<8x1xf32>
    %396 = arith.divf %394, %395 : vector<8x1xf32>
    %397 = vector.broadcast %389 : vector<8x1xf32> to vector<8x32xf32>
    %398 = arith.subf %317, %397 : vector<8x32xf32>
    %cst_104 = arith.constant 9.99999974E-6 : f32
    %399 = vector.broadcast %cst_104 : f32 to vector<8x1xf32>
    %400 = arith.addf %396, %399 : vector<8x1xf32>
    %401 = math.rsqrt %400 : vector<8x1xf32>
    %402 = vector.broadcast %401 : vector<8x1xf32> to vector<8x32xf32>
    %403 = arith.mulf %398, %402 : vector<8x32xf32>
    %404 = vector.broadcast %340 : vector<1x32xf32> to vector<8x32xf32>
    %405 = arith.mulf %403, %404 : vector<8x32xf32>
    %406 = vector.broadcast %341 : vector<1x32xf32> to vector<8x32xf32>
    %407 = arith.addf %405, %406 : vector<8x32xf32>
    %cst_105 = arith.constant dense<0.000000e+00> : vector<8xf32>
    %408 = vector.multi_reduction <add>, %337, %cst_105 [1] : vector<8x32xf32> to vector<8xf32>
    %409 = vector.shape_cast %408 : vector<8xf32> to vector<8x1xf32>
    %cst_106 = arith.constant 3.200000e+01 : f32
    %410 = vector.broadcast %cst_106 : f32 to vector<8x1xf32>
    %411 = arith.divf %409, %410 : vector<8x1xf32>
    %412 = vector.broadcast %411 : vector<8x1xf32> to vector<8x32xf32>
    %413 = arith.subf %337, %412 : vector<8x32xf32>
    %414 = arith.mulf %413, %413 : vector<8x32xf32>
    %cst_107 = arith.constant dense<0.000000e+00> : vector<8xf32>
    %415 = vector.multi_reduction <add>, %414, %cst_107 [1] : vector<8x32xf32> to vector<8xf32>
    %416 = vector.shape_cast %415 : vector<8xf32> to vector<8x1xf32>
    %cst_108 = arith.constant 3.200000e+01 : f32
    %417 = vector.broadcast %cst_108 : f32 to vector<8x1xf32>
    %418 = arith.divf %416, %417 : vector<8x1xf32>
    %419 = vector.broadcast %411 : vector<8x1xf32> to vector<8x32xf32>
    %420 = arith.subf %337, %419 : vector<8x32xf32>
    %cst_109 = arith.constant 9.99999974E-6 : f32
    %421 = vector.broadcast %cst_109 : f32 to vector<8x1xf32>
    %422 = arith.addf %418, %421 : vector<8x1xf32>
    %423 = math.rsqrt %422 : vector<8x1xf32>
    %424 = vector.broadcast %423 : vector<8x1xf32> to vector<8x32xf32>
    %425 = arith.mulf %420, %424 : vector<8x32xf32>
    %426 = vector.broadcast %340 : vector<1x32xf32> to vector<8x32xf32>
    %427 = arith.mulf %425, %426 : vector<8x32xf32>
    %428 = vector.broadcast %341 : vector<1x32xf32> to vector<8x32xf32>
    %429 = arith.addf %427, %428 : vector<8x32xf32>
    %430 = tpu.concatenate %363, %385, %407, %429 in 1 : vector<8x32xf32>, vector<8x32xf32>, vector<8x32xf32>, vector<8x32xf32> -> vector<8x128xf32>
    %c0_110 = arith.constant 0 : index
    %c0_111 = arith.constant 0 : index
    %431 = vector.load %arg11[%c0_110, %c0_111] : memref<8x128xf32, #tpu.memory_space<vmem>>, vector<8x128xf32>
    tpu.vector_store %arg11[%c0_110, %c0_111], %430 {strides = array<i32>} : memref<8x128xf32, #tpu.memory_space<vmem>>, vector<8x128xf32>,
    return
  }
}

</mosaic_0001>

<llo_original>
// kernel: encoder_forward.1
$region0: #{encoder_forward.1}
  #allocation0 [shape = 'u32[]', space=smem, size = 0x4, offset = 0x4, fixed_abs, tag = 'smem constant byte address 0x4 - core index']
  #allocation1 [shape = 'u32[144,128]{1,0:T(1,128)}', space=vmem, size = 0x12000, scoped, tag = 'internal scratch']
  #allocation2 [shape = 'f32[64,128]{1,0:T(8,128)}', space=vmem, size = 0x8000, scoped, tag = 'scratch operand']
  %s0 = inlined_call_operand.vmem [shape: s32[64,1], index: 0, kind: input, shape index: {}]
  %s1 = inlined_call_operand.vmem [shape: f32[64,1], index: 1, kind: input, shape index: {}]
  %s2 = inlined_call_operand.vmem [shape: f32[128,128], index: 2, kind: input, shape index: {}]
  %s3 = inlined_call_operand.vmem [shape: f32[1,128], index: 3, kind: input, shape index: {}]
  %s4 = inlined_call_operand.vmem [shape: f32[1,32,128], index: 4, kind: input, shape index: {}]
  %s5 = inlined_call_operand.vmem [shape: f32[2,32,128], index: 5, kind: input, shape index: {}]
  %s6 = inlined_call_operand.vmem [shape: f32[2,1,128], index: 6, kind: input, shape index: {}]
  %s7 = inlined_call_operand.vmem [shape: f32[2,8,32], index: 7, kind: input, shape index: {}]
  %s8 = inlined_call_operand.vmem [shape: f32[2,8,32], index: 8, kind: input, shape index: {}]
  %s9 = inlined_call_operand.vmem [shape: f32[1,32], index: 9, kind: input, shape index: {}]
  %s10 = inlined_call_operand.vmem [shape: f32[1,32], index: 10, kind: input, shape index: {}]
  %s11 = inlined_call_operand.vmem [shape: f32[8,128], index: 11, kind: output, shape index: {}]
  %s12 = sld [smem:[#allocation0]]
  $region54: #{encoder_forward.1} parent=0
    _
  %s14 = ssub.s32 1, %s12
  %s15 = scalar_select 0, %s14, %s12
  // Predicated region
  $region2: #{encoder_forward.1} parent=0 // pred_check
    _
  $region3: #{encoder_forward.1} parent=0 // pred_check_branch
    %17 = sbr.rel (0) target = $region5
  $region4: #{encoder_forward.1} parent=0 // pred_region
    _
  $region5: #{encoder_forward.1} parent=0 // pred_fallthru
    _
  // Predicated region
  $region6: #{encoder_forward.1} parent=0 // pred_check
    _
  $region7: #{encoder_forward.1} parent=0 // pred_check_branch
    %19 = sbr.rel (0) target = $region9
  $region8: #{encoder_forward.1} parent=0 // pred_region
    _
  $region9: #{encoder_forward.1} parent=0 // pred_fallthru
    _
  // Predicated region
  $region10: #{encoder_forward.1} parent=0 // pred_check
    _
  $region11: #{encoder_forward.1} parent=0 // pred_check_branch
    %21 = sbr.rel (0) target = $region13
  $region12: #{encoder_forward.1} parent=0 // pred_region
    _
  $region13: #{encoder_forward.1} parent=0 // pred_fallthru
    _
  // Predicated region
  $region14: #{encoder_forward.1} parent=0 // pred_check
    _
  $region15: #{encoder_forward.1} parent=0 // pred_check_branch
    %23 = sbr.rel (0) target = $region17
  $region16: #{encoder_forward.1} parent=0 // pred_region
    _
  $region17: #{encoder_forward.1} parent=0 // pred_fallthru
    _
  // Predicated region
  $region18: #{encoder_forward.1} parent=0 // pred_check
    _
  $region19: #{encoder_forward.1} parent=0 // pred_check_branch
    %25 = sbr.rel (0) target = $region21
  $region20: #{encoder_forward.1} parent=0 // pred_region
    _
  $region21: #{encoder_forward.1} parent=0 // pred_fallthru
    _
  // Predicated region
  $region22: #{encoder_forward.1} parent=0 // pred_check
    _
  $region23: #{encoder_forward.1} parent=0 // pred_check_branch
    %27 = sbr.rel (0) target = $region25
  $region24: #{encoder_forward.1} parent=0 // pred_region
    _
  $region25: #{encoder_forward.1} parent=0 // pred_fallthru
    _
  // Predicated region
  $region26: #{encoder_forward.1} parent=0 // pred_check
    _
  $region27: #{encoder_forward.1} parent=0 // pred_check_branch
    %29 = sbr.rel (0) target = $region29
  $region28: #{encoder_forward.1} parent=0 // pred_region
    _
  $region29: #{encoder_forward.1} parent=0 // pred_fallthru
    _
  // Predicated region
  $region30: #{encoder_forward.1} parent=0 // pred_check
    _
  $region31: #{encoder_forward.1} parent=0 // pred_check_branch
    %31 = sbr.rel (0) target = $region33
  $region32: #{encoder_forward.1} parent=0 // pred_region
    _
  $region33: #{encoder_forward.1} parent=0 // pred_fallthru
    _
  // Predicated region
  $region34: #{encoder_forward.1} parent=0 // pred_check
    _
  $region35: #{encoder_forward.1} parent=0 // pred_check_branch
    %33 = sbr.rel (0) target = $region37
  $region36: #{encoder_forward.1} parent=0 // pred_region
    _
  $region37: #{encoder_forward.1} parent=0 // pred_fallthru
    _
  // Predicated region
  $region38: #{encoder_forward.1} parent=0 // pred_check
    _
  $region39: #{encoder_forward.1} parent=0 // pred_check_branch
    %35 = sbr.rel (0) target = $region41
  $region40: #{encoder_forward.1} parent=0 // pred_region
    _
  $region41: #{encoder_forward.1} parent=0 // pred_fallthru
    _
  // Predicated region
  $region42: #{encoder_forward.1} parent=0 // pred_check
    _
  $region43: #{encoder_forward.1} parent=0 // pred_check_branch
    %37 = sbr.rel (0) target = $region45
  $region44: #{encoder_forward.1} parent=0 // pred_region
    _
  $region45: #{encoder_forward.1} parent=0 // pred_fallthru
    _
  %v38 = vld [vmem:[%s0] sm:$0xff]
  %v39 = vld [vmem:[%s0 + $0x8] sm:$0xff]
  %v40 = vld [vmem:[%s0 + $0x10] sm:$0xff]
  %v41 = vld [vmem:[%s0 + $0x18] sm:$0xff]
  %v42 = vld [vmem:[%s0 + $0x20] sm:$0xff]
  %v43 = vld [vmem:[%s0 + $0x28] sm:$0xff]
  %v44 = vld [vmem:[%s0 + $0x30] sm:$0xff]
  %v45 = vld [vmem:[%s0 + $0x38] sm:$0xff]
  %v46 = vlaneseq
  %v47 = vand.u32 %v46, 127
  %48 = vset.pattern.permute.xlu0 0
  %49 = vperm.xlu0 %48, %v38
  %v50 = vpop.permute.xlu0 %49
  %51 = vset.pattern.permute.xlu0 0
  %52 = vperm.xlu0 %51, %v39
  %v53 = vpop.permute.xlu0 %52
  %54 = vset.pattern.permute.xlu0 0
  %55 = vperm.xlu0 %54, %v40
  %v56 = vpop.permute.xlu0 %55
  %57 = vset.pattern.permute.xlu0 0
  %58 = vperm.xlu0 %57, %v41
  %v59 = vpop.permute.xlu0 %58
  %60 = vset.pattern.permute.xlu0 0
  %61 = vperm.xlu0 %60, %v42
  %v62 = vpop.permute.xlu0 %61
  %63 = vset.pattern.permute.xlu0 0
  %64 = vperm.xlu0 %63, %v43
  %v65 = vpop.permute.xlu0 %64
  %66 = vset.pattern.permute.xlu0 0
  %67 = vperm.xlu0 %66, %v44
  %v68 = vpop.permute.xlu0 %67
  %69 = vset.pattern.permute.xlu0 0
  %70 = vperm.xlu0 %69, %v45
  %v71 = vpop.permute.xlu0 %70
  %vm72 = vcmp.eq.s32.totalorder %v47, %v50
  %vm73 = vcmp.eq.s32.totalorder %v47, %v53
  %vm74 = vcmp.eq.s32.totalorder %v47, %v56
  %vm75 = vcmp.eq.s32.totalorder %v47, %v59
  %vm76 = vcmp.eq.s32.totalorder %v47, %v62
  %vm77 = vcmp.eq.s32.totalorder %v47, %v65
  %vm78 = vcmp.eq.s32.totalorder %v47, %v68
  %vm79 = vcmp.eq.s32.totalorder %v47, %v71
  %v80 = vsel %vm72, 1.0, 0.0
  %v81 = vsel %vm73, 1.0, 0.0
  %v82 = vsel %vm74, 1.0, 0.0
  %v83 = vsel %vm75, 1.0, 0.0
  %v84 = vsel %vm76, 1.0, 0.0
  %v85 = vsel %vm77, 1.0, 0.0
  %v86 = vsel %vm78, 1.0, 0.0
  %v87 = vsel %vm79, 1.0, 0.0
  %v88 = vld [vmem:[%s2] sm:$0xff]
  %v89 = vld [vmem:[%s2 + $0x8] sm:$0xff]
  %v90 = vld [vmem:[%s2 + $0x10] sm:$0xff]
  %v91 = vld [vmem:[%s2 + $0x18] sm:$0xff]
  %v92 = vld [vmem:[%s2 + $0x20] sm:$0xff]
  %v93 = vld [vmem:[%s2 + $0x28] sm:$0xff]
  %v94 = vld [vmem:[%s2 + $0x30] sm:$0xff]
  %v95 = vld [vmem:[%s2 + $0x38] sm:$0xff]
  %v96 = vld [vmem:[%s2 + $0x40] sm:$0xff]
  %v97 = vld [vmem:[%s2 + $0x48] sm:$0xff]
  %v98 = vld [vmem:[%s2 + $0x50] sm:$0xff]
  %v99 = vld [vmem:[%s2 + $0x58] sm:$0xff]
  %v100 = vld [vmem:[%s2 + $0x60] sm:$0xff]
  %v101 = vld [vmem:[%s2 + $0x68] sm:$0xff]
  %v102 = vld [vmem:[%s2 + $0x70] sm:$0xff]
  %v103 = vld [vmem:[%s2 + $0x78] sm:$0xff]
  %v104 = vld [vmem:[%s1] sm:$0xff]
  %v105 = vld [vmem:[%s1 + $0x8] sm:$0xff]
  %v106 = vld [vmem:[%s1 + $0x10] sm:$0xff]
  %v107 = vld [vmem:[%s1 + $0x18] sm:$0xff]
  %v108 = vld [vmem:[%s1 + $0x20] sm:$0xff]
  %v109 = vld [vmem:[%s1 + $0x28] sm:$0xff]
  %v110 = vld [vmem:[%s1 + $0x30] sm:$0xff]
  %v111 = vld [vmem:[%s1 + $0x38] sm:$0xff]
  %v112 = vld [vmem:[%s3] sm:$0x1]
  %114 = vset.pattern.permute.xlu0 0
  %115 = vperm.xlu0 %114, %v104
  %v116 = vpop.permute.xlu0 %115
  %119 = vset.pattern.permute.xlu0 0
  %120 = vperm.xlu0 %119, %v105
  %v121 = vpop.permute.xlu0 %120
  %124 = vset.pattern.permute.xlu0 0
  %125 = vperm.xlu0 %124, %v106
  %v126 = vpop.permute.xlu0 %125
  %129 = vset.pattern.permute.xlu0 0
  %130 = vperm.xlu0 %129, %v107
  %v131 = vpop.permute.xlu0 %130
  %134 = vset.pattern.permute.xlu0 0
  %135 = vperm.xlu0 %134, %v108
  %v136 = vpop.permute.xlu0 %135
  %139 = vset.pattern.permute.xlu0 0
  %140 = vperm.xlu0 %139, %v109
  %v141 = vpop.permute.xlu0 %140
  %144 = vset.pattern.permute.xlu0 0
  %145 = vperm.xlu0 %144, %v110
  %v146 = vpop.permute.xlu0 %145
  %149 = vset.pattern.permute.xlu0 0
  %150 = vperm.xlu0 %149, %v111
  %v151 = vpop.permute.xlu0 %150
  %v154 = vlaneseq
  %v155 = vshrl.u32 %v154, 7
  %v156 = vsub.s32 0, %v155
  %v157 = vrot.slane %v112, %v156
  %v159 = vmul.f32 %v116, %v157
  %v160 = vmul.f32 %v121, %v157
  %v161 = vmul.f32 %v126, %v157
  %v162 = vmul.f32 %v131, %v157
  %v163 = vmul.f32 %v136, %v157
  %v164 = vmul.f32 %v141, %v157
  %v165 = vmul.f32 %v146, %v157
  %v166 = vmul.f32 %v151, %v157
  %167 = vmatprep.subr.mxu0 0.0
  %168 = vmatpush1.msra.mxu0 %v103
  %169 = vmatprep.subr.mxu0 0.0
  %170 = vmatpush1.msra.mxu0 %v102
  %171 = vmatprep.subr.mxu0 0.0
  %172 = vmatpush1.msra.mxu0 %v101
  %173 = vmatprep.subr.mxu0 0.0
  %174 = vmatpush1.msra.mxu0 %v100
  %175 = vmatprep.subr.mxu0 0.0
  %176 = vmatpush1.msra.mxu0 %v99
  %177 = vmatprep.subr.mxu0 0.0
  %178 = vmatpush1.msra.mxu0 %v98
  %179 = vmatprep.subr.mxu0 0.0
  %180 = vmatpush1.msra.mxu0 %v97
  %181 = vmatprep.subr.mxu0 0.0
  %182 = vmatpush1.msra.mxu0 %v96
  %183 = vmatprep.subr.mxu0 0.0
  %184 = vmatpush1.msra.mxu0 %v95
  %185 = vmatprep.subr.mxu0 0.0
  %186 = vmatpush1.msra.mxu0 %v94
  %187 = vmatprep.subr.mxu0 0.0
  %188 = vmatpush1.msra.mxu0 %v93
  %189 = vmatprep.subr.mxu0 0.0
  %190 = vmatpush1.msra.mxu0 %v92
  %191 = vmatprep.subr.mxu0 0.0
  %192 = vmatpush1.msra.mxu0 %v91
  %193 = vmatprep.subr.mxu0 0.0
  %194 = vmatpush1.msra.mxu0 %v90
  %195 = vmatprep.subr.mxu0 0.0
  %196 = vmatpush1.msra.mxu0 %v89
  %197 = vmatprep.subr.mxu0 0.0
  %198 = vmatpush1.msra.mxu0 %v88
  %199 = vmatprep.subr.mxu0 0.0
  %200 = vmatpush2.msra.mxu0 0.0
  %201 = vmatprep.subr.mxu0 0.0
  %202 = vmatpush2.msra.mxu0 0.0
  %203 = vmatprep.subr.mxu0 0.0
  %204 = vmatpush2.msra.mxu0 0.0
  %205 = vmatprep.subr.mxu0 0.0
  %206 = vmatpush2.msra.mxu0 0.0
  %207 = vmatprep.subr.mxu0 0.0
  %208 = vmatpush2.msra.mxu0 0.0
  %209 = vmatprep.subr.mxu0 0.0
  %210 = vmatpush2.msra.mxu0 0.0
  %211 = vmatprep.subr.mxu0 0.0
  %212 = vmatpush2.msra.mxu0 0.0
  %213 = vmatprep.subr.mxu0 0.0
  %214 = vmatpush2.msra.mxu0 0.0
  %215 = vmatprep.subr.mxu0 0.0
  %216 = vmatpush2.msra.mxu0 0.0
  %217 = vmatprep.subr.mxu0 0.0
  %218 = vmatpush2.msra.mxu0 0.0
  %219 = vmatprep.subr.mxu0 0.0
  %220 = vmatpush2.msra.mxu0 0.0
  %221 = vmatprep.subr.mxu0 0.0
  %222 = vmatpush2.msra.mxu0 0.0
  %223 = vmatprep.subr.mxu0 0.0
  %224 = vmatpush2.msra.mxu0 0.0
  %225 = vmatprep.subr.mxu0 0.0
  %226 = vmatpush2.msra.mxu0 0.0
  %227 = vmatprep.subr.mxu0 0.0
  %228 = vmatpush2.msra.mxu0 0.0
  %229 = vmatprep.subr.mxu0 0.0
  %230 = vmatpush2.msra.mxu0 0.0
  %231 = vmatprep.mubr.f32.mxu0 0.0
  %232 = vmatmul.mubr.f32.gmra.mxu0 %v80
  %v233 = vpop.f32.mrf.mxu0
  %v234 = vadd.f32 %v159, %v233
  %v235 = vpop.f32.mrf.mxu0
  %236 = vmatprep.mubr.f32.mxu0 0.0
  %237 = vmatmul.mubr.f32.gmra.mxu0 %v81
  %v238 = vpop.f32.mrf.mxu0
  %v239 = vadd.f32 %v160, %v238
  %v240 = vpop.f32.mrf.mxu0
  %241 = vmatprep.mubr.f32.mxu0 0.0
  %242 = vmatmul.mubr.f32.gmra.mxu0 %v82
  %v243 = vpop.f32.mrf.mxu0
  %v244 = vadd.f32 %v161, %v243
  %v245 = vpop.f32.mrf.mxu0
  %246 = vmatprep.mubr.f32.mxu0 0.0
  %247 = vmatmul.mubr.f32.gmra.mxu0 %v83
  %v248 = vpop.f32.mrf.mxu0
  %v249 = vadd.f32 %v162, %v248
  %v250 = vpop.f32.mrf.mxu0
  %251 = vmatprep.mubr.f32.mxu0 0.0
  %252 = vmatmul.mubr.f32.gmra.mxu0 %v84
  %v253 = vpop.f32.mrf.mxu0
  %v254 = vadd.f32 %v163, %v253
  %v255 = vpop.f32.mrf.mxu0
  %256 = vmatprep.mubr.f32.mxu0 0.0
  %257 = vmatmul.mubr.f32.gmra.mxu0 %v85
  %v258 = vpop.f32.mrf.mxu0
  %v259 = vadd.f32 %v164, %v258
  %v260 = vpop.f32.mrf.mxu0
  %261 = vmatprep.mubr.f32.mxu0 0.0
  %262 = vmatmul.mubr.f32.gmra.mxu0 %v86
  %v263 = vpop.f32.mrf.mxu0
  %v264 = vadd.f32 %v165, %v263
  %v265 = vpop.f32.mrf.mxu0
  %266 = vmatprep.mubr.f32.mxu0 0.0
  %267 = vmatmul.mubr.f32.gmra.mxu0 %v87
  %v268 = vpop.f32.mrf.mxu0
  %v269 = vadd.f32 %v166, %v268
  %v270 = vpop.f32.mrf.mxu0
  %271 = vdwg.mxu0
  %v272 = vld [vmem:[%s6] sm:$0x1]
  %v274 = vlaneseq
  %v275 = vshrl.u32 %v274, 7
  %v276 = vsub.s32 0, %v275
  %v277 = vrot.slane %v272, %v276
  %v279 = vadd.f32 %v234, %v277
  %v280 = vadd.f32 %v239, %v277
  %v281 = vadd.f32 %v244, %v277
  %v282 = vadd.f32 %v249, %v277
  %v283 = vadd.f32 %v254, %v277
  %v284 = vadd.f32 %v259, %v277
  %v285 = vadd.f32 %v264, %v277
  %v286 = vadd.f32 %v269, %v277
  %287 = vst [vmem:[#allocation2] sm:$0xff] %v279
  %288 = vst [vmem:[#allocation2 + $0x8] sm:$0xff] %v280
  %289 = vst [vmem:[#allocation2 + $0x10] sm:$0xff] %v281
  %290 = vst [vmem:[#allocation2 + $0x18] sm:$0xff] %v282
  %291 = vst [vmem:[#allocation2 + $0x20] sm:$0xff] %v283
  %292 = vst [vmem:[#allocation2 + $0x28] sm:$0xff] %v284
  %293 = vst [vmem:[#allocation2 + $0x30] sm:$0xff] %v285
  %294 = vst [vmem:[#allocation2 + $0x38] sm:$0xff] %v286
  %v295 = vld [vmem:[%s5] sm:$0xff]
  %v296 = vld [vmem:[%s5 + $0x8] sm:$0xff]
  %v297 = vld [vmem:[%s5 + $0x10] sm:$0xff]
  %v298 = vld [vmem:[%s5 + $0x18] sm:$0xff]
  %s299 = scalar_lea.vmem %s5, 32
  %v300 = vld [vmem:[%s299] sm:$0xff]
  %v301 = vld [vmem:[%s299 + $0x8] sm:$0xff]
  %v302 = vld [vmem:[%s299 + $0x10] sm:$0xff]
  %v303 = vld [vmem:[%s299 + $0x18] sm:$0xff]
  %v304 = vld [vmem:[%s4] sm:$0xff]
  %v305 = vld [vmem:[%s4 + $0x8] sm:$0xff]
  %v306 = vld [vmem:[%s4 + $0x10] sm:$0xff]
  %v307 = vld [vmem:[%s4 + $0x18] sm:$0xff]
  %s308 = scalar_lea.vmem %s6, 1
  %v309 = vld [vmem:[%s308] sm:$0x1]
  %v310 = vld [vmem:[%s7] sm:$0xff]
  %s311 = scalar_lea.vmem %s7, 8
  %v312 = vld [vmem:[%s311] sm:$0xff]
  %v313 = vld [vmem:[%s8] sm:$0xff]
  %s314 = scalar_lea.vmem %s8, 8
  %v315 = vld [vmem:[%s314] sm:$0xff]
  %v316 = vld [vmem:[#allocation2] sm:$0xff]
  %vm317 = vcmask 261120
  %v319 = vsel %vm317, %v310, 0
  %321 = vmatprep.subr.mxu0 0.0
  %322 = vmatpush1.msra.mxu0 0.0
  %323 = vmatprep.subr.mxu0 0.0
  %324 = vmatpush1.msra.mxu0 0.0
  %325 = vmatprep.subr.mxu0 0.0
  %326 = vmatpush1.msra.mxu0 0.0
  %327 = vmatprep.subr.mxu0 0.0
  %328 = vmatpush1.msra.mxu0 0.0
  %329 = vmatprep.subr.mxu0 0.0
  %330 = vmatpush1.msra.mxu0 0.0
  %331 = vmatprep.subr.mxu0 0.0
  %332 = vmatpush1.msra.mxu0 0.0
  %333 = vmatprep.subr.mxu0 0.0
  %334 = vmatpush1.msra.mxu0 0.0
  %335 = vmatprep.subr.mxu0 0.0
  %336 = vmatpush1.msra.mxu0 0.0
  %337 = vmatprep.subr.mxu0 0.0
  %338 = vmatpush1.msra.mxu0 0.0
  %339 = vmatprep.subr.mxu0 0.0
  %340 = vmatpush1.msra.mxu0 0.0
  %341 = vmatprep.subr.mxu0 0.0
  %342 = vmatpush1.msra.mxu0 0.0
  %343 = vmatprep.subr.mxu0 0.0
  %344 = vmatpush1.msra.mxu0 0.0
  %345 = vmatprep.subr.mxu0 0.0
  %346 = vmatpush1.msra.mxu0 %v298
  %347 = vmatprep.subr.mxu0 0.0
  %348 = vmatpush1.msra.mxu0 %v297
  %349 = vmatprep.subr.mxu0 0.0
  %350 = vmatpush1.msra.mxu0 %v296
  %351 = vmatprep.subr.mxu0 0.0
  %352 = vmatpush1.msra.mxu0 %v295
  %353 = vmatprep.subr.mxu0 0.0
  %354 = vmatpush2.msra.mxu0 0.0
  %355 = vmatprep.subr.mxu0 0.0
  %356 = vmatpush2.msra.mxu0 0.0
  %357 = vmatprep.subr.mxu0 0.0
  %358 = vmatpush2.msra.mxu0 0.0
  %359 = vmatprep.subr.mxu0 0.0
  %360 = vmatpush2.msra.mxu0 0.0
  %361 = vmatprep.subr.mxu0 0.0
  %362 = vmatpush2.msra.mxu0 0.0
  %363 = vmatprep.subr.mxu0 0.0
  %364 = vmatpush2.msra.mxu0 0.0
  %365 = vmatprep.subr.mxu0 0.0
  %366 = vmatpush2.msra.mxu0 0.0
  %367 = vmatprep.subr.mxu0 0.0
  %368 = vmatpush2.msra.mxu0 0.0
  %369 = vmatprep.subr.mxu0 0.0
  %370 = vmatpush2.msra.mxu0 0.0
  %371 = vmatprep.subr.mxu0 0.0
  %372 = vmatpush2.msra.mxu0 0.0
  %373 = vmatprep.subr.mxu0 0.0
  %374 = vmatpush2.msra.mxu0 0.0
  %375 = vmatprep.subr.mxu0 0.0
  %376 = vmatpush2.msra.mxu0 0.0
  %377 = vmatprep.subr.mxu0 0.0
  %378 = vmatpush2.msra.mxu0 0.0
  %379 = vmatprep.subr.mxu0 0.0
  %380 = vmatpush2.msra.mxu0 0.0
  %381 = vmatprep.subr.mxu0 0.0
  %382 = vmatpush2.msra.mxu0 0.0
  %383 = vmatprep.subr.mxu0 0.0
  %384 = vmatpush2.msra.mxu0 0.0
  %385 = vmatprep.mubr.f32.mxu0 0.0
  %386 = vmatmul.mubr.f32.gmra.mxu0 %v319
  %v387 = vpop.f32.mrf.mxu0
  %v388 = vadd.f32 0.0, %v387
  %v389 = vpop.f32.mrf.mxu0
  %390 = vdwg.mxu0
  %v391 = vadd.f32 %v316, %v388
  %v392 = vxor.u32 %v391, 2147483648
  %v393 = vmul.f32 %v392, 1.442695
  %v394 = vpow.pop %v393
  %v395 = vadd.f32 %v394, 1.0
  %v396 = vrcp.pop %v395
  %v397 = vmul.f32 1.0, %v396
  %v398 = vtanh.pop %v391
  %400 = vrot.lane.b32.xlu0 %v313, 32
  %v401 = vpop.permute.xlu0 %400
  %v403 = vmul.f32 %v397, %v401
  %405 = vrot.lane.b32.xlu0 %v398, 64
  %v406 = vpop.permute.xlu0 %405
  %v408 = vmul.f32 %v397, %v406
  %410 = vrot.lane.b32.xlu0 %v408, 32
  %v411 = vpop.permute.xlu0 %410
  %v413 = vadd.f32 %v403, %v411
  %v414 = vtanh.pop %v413
  %416 = vrot.lane.b32.xlu0 %v414, 64
  %v417 = vpop.permute.xlu0 %416
  %v419 = vmul.f32 %v397, %v417
  %v421 = vsel %vm317, %v312, 0
  %423 = vmatprep.subr.mxu0 0.0
  %424 = vmatpush1.msra.mxu0 0.0
  %425 = vmatprep.subr.mxu0 0.0
  %426 = vmatpush1.msra.mxu0 0.0
  %427 = vmatprep.subr.mxu0 0.0
  %428 = vmatpush1.msra.mxu0 0.0
  %429 = vmatprep.subr.mxu0 0.0
  %430 = vmatpush1.msra.mxu0 0.0
  %431 = vmatprep.subr.mxu0 0.0
  %432 = vmatpush1.msra.mxu0 0.0
  %433 = vmatprep.subr.mxu0 0.0
  %434 = vmatpush1.msra.mxu0 0.0
  %435 = vmatprep.subr.mxu0 0.0
  %436 = vmatpush1.msra.mxu0 0.0
  %437 = vmatprep.subr.mxu0 0.0
  %438 = vmatpush1.msra.mxu0 0.0
  %439 = vmatprep.subr.mxu0 0.0
  %440 = vmatpush1.msra.mxu0 0.0
  %441 = vmatprep.subr.mxu0 0.0
  %442 = vmatpush1.msra.mxu0 0.0
  %443 = vmatprep.subr.mxu0 0.0
  %444 = vmatpush1.msra.mxu0 0.0
  %445 = vmatprep.subr.mxu0 0.0
  %446 = vmatpush1.msra.mxu0 0.0
  %447 = vmatprep.subr.mxu0 0.0
  %448 = vmatpush1.msra.mxu0 %v303
  %449 = vmatprep.subr.mxu0 0.0
  %450 = vmatpush1.msra.mxu0 %v302
  %451 = vmatprep.subr.mxu0 0.0
  %452 = vmatpush1.msra.mxu0 %v301
  %453 = vmatprep.subr.mxu0 0.0
  %454 = vmatpush1.msra.mxu0 %v300
  %455 = vmatprep.subr.mxu0 0.0
  %456 = vmatpush2.msra.mxu0 0.0
  %457 = vmatprep.subr.mxu0 0.0
  %458 = vmatpush2.msra.mxu0 0.0
  %459 = vmatprep.subr.mxu0 0.0
  %460 = vmatpush2.msra.mxu0 0.0
  %461 = vmatprep.subr.mxu0 0.0
  %462 = vmatpush2.msra.mxu0 0.0
  %463 = vmatprep.subr.mxu0 0.0
  %464 = vmatpush2.msra.mxu0 0.0
  %465 = vmatprep.subr.mxu0 0.0
  %466 = vmatpush2.msra.mxu0 0.0
  %467 = vmatprep.subr.mxu0 0.0
  %468 = vmatpush2.msra.mxu0 0.0
  %469 = vmatprep.subr.mxu0 0.0
  %470 = vmatpush2.msra.mxu0 0.0
  %471 = vmatprep.subr.mxu0 0.0
  %472 = vmatpush2.msra.mxu0 0.0
  %473 = vmatprep.subr.mxu0 0.0
  %474 = vmatpush2.msra.mxu0 0.0
  %475 = vmatprep.subr.mxu0 0.0
  %476 = vmatpush2.msra.mxu0 0.0
  %477 = vmatprep.subr.mxu0 0.0
  %478 = vmatpush2.msra.mxu0 0.0
  %479 = vmatprep.subr.mxu0 0.0
  %480 = vmatpush2.msra.mxu0 0.0
  %481 = vmatprep.subr.mxu0 0.0
  %482 = vmatpush2.msra.mxu0 0.0
  %483 = vmatprep.subr.mxu0 0.0
  %484 = vmatpush2.msra.mxu0 0.0
  %485 = vmatprep.subr.mxu0 0.0
  %486 = vmatpush2.msra.mxu0 0.0
  %487 = vmatprep.mubr.f32.mxu0 0.0
  %488 = vmatmul.mubr.f32.gmra.mxu0 %v421
  %v489 = vpop.f32.mrf.mxu0
  %v490 = vadd.f32 0.0, %v489
  %v491 = vpop.f32.mrf.mxu0
  %492 = vdwg.mxu0
  %494 = vrot.lane.b32.xlu0 %v419, 32
  %v495 = vpop.permute.xlu0 %494
  %v496 = vsel %vm317, %v495, 0
  %498 = vmatprep.subr.mxu0 0.0
  %499 = vmatpush1.msra.mxu0 0.0
  %500 = vmatprep.subr.mxu0 0.0
  %501 = vmatpush1.msra.mxu0 0.0
  %502 = vmatprep.subr.mxu0 0.0
  %503 = vmatpush1.msra.mxu0 0.0
  %504 = vmatprep.subr.mxu0 0.0
  %505 = vmatpush1.msra.mxu0 0.0
  %506 = vmatprep.subr.mxu0 0.0
  %507 = vmatpush1.msra.mxu0 0.0
  %508 = vmatprep.subr.mxu0 0.0
  %509 = vmatpush1.msra.mxu0 0.0
  %510 = vmatprep.subr.mxu0 0.0
  %511 = vmatpush1.msra.mxu0 0.0
  %512 = vmatprep.subr.mxu0 0.0
  %513 = vmatpush1.msra.mxu0 0.0
  %514 = vmatprep.subr.mxu0 0.0
  %515 = vmatpush1.msra.mxu0 0.0
  %516 = vmatprep.subr.mxu0 0.0
  %517 = vmatpush1.msra.mxu0 0.0
  %518 = vmatprep.subr.mxu0 0.0
  %519 = vmatpush1.msra.mxu0 0.0
  %520 = vmatprep.subr.mxu0 0.0
  %521 = vmatpush1.msra.mxu0 0.0
  %522 = vmatprep.subr.mxu0 0.0
  %523 = vmatpush1.msra.mxu0 %v307
  %524 = vmatprep.subr.mxu0 0.0
  %525 = vmatpush1.msra.mxu0 %v306
  %526 = vmatprep.subr.mxu0 0.0
  %527 = vmatpush1.msra.mxu0 %v305
  %528 = vmatprep.subr.mxu0 0.0
  %529 = vmatpush1.msra.mxu0 %v304
  %530 = vmatprep.subr.mxu0 0.0
  %531 = vmatpush2.msra.mxu0 0.0
  %532 = vmatprep.subr.mxu0 0.0
  %533 = vmatpush2.msra.mxu0 0.0
  %534 = vmatprep.subr.mxu0 0.0
  %535 = vmatpush2.msra.mxu0 0.0
  %536 = vmatprep.subr.mxu0 0.0
  %537 = vmatpush2.msra.mxu0 0.0
  %538 = vmatprep.subr.mxu0 0.0
  %539 = vmatpush2.msra.mxu0 0.0
  %540 = vmatprep.subr.mxu0 0.0
  %541 = vmatpush2.msra.mxu0 0.0
  %542 = vmatprep.subr.mxu0 0.0
  %543 = vmatpush2.msra.mxu0 0.0
  %544 = vmatprep.subr.mxu0 0.0
  %545 = vmatpush2.msra.mxu0 0.0
  %546 = vmatprep.subr.mxu0 0.0
  %547 = vmatpush2.msra.mxu0 0.0
  %548 = vmatprep.subr.mxu0 0.0
  %549 = vmatpush2.msra.mxu0 0.0
  %550 = vmatprep.subr.mxu0 0.0
  %551 = vmatpush2.msra.mxu0 0.0
  %552 = vmatprep.subr.mxu0 0.0
  %553 = vmatpush2.msra.mxu0 0.0
  %554 = vmatprep.subr.mxu0 0.0
  %555 = vmatpush2.msra.mxu0 0.0
  %556 = vmatprep.subr.mxu0 0.0
  %557 = vmatpush2.msra.mxu0 0.0
  %558 = vmatprep.subr.mxu0 0.0
  %559 = vmatpush2.msra.mxu0 0.0
  %560 = vmatprep.subr.mxu0 0.0
  %561 = vmatpush2.msra.mxu0 0.0
  %562 = vmatprep.mubr.f32.mxu0 0.0
  %563 = vmatmul.mubr.f32.gmra.mxu0 %v496
  %v564 = vpop.f32.mrf.mxu0
  %v565 = vadd.f32 %v490, %v564
  %v566 = vpop.f32.mrf.mxu0
  %567 = vdwg.mxu0
  %v569 = vlaneseq
  %v570 = vshrl.u32 %v569, 7
  %v571 = vsub.s32 0, %v570
  %v572 = vrot.slane %v309, %v571
  %v574 = vadd.f32 %v565, %v572
  %v575 = vxor.u32 %v574, 2147483648
  %v576 = vmul.f32 %v575, 1.442695
  %v577 = vpow.pop %v576
  %v578 = vadd.f32 %v577, 1.0
  %v579 = vrcp.pop %v578
  %v580 = vmul.f32 1.0, %v579
  %v581 = vtanh.pop %v574
  %583 = vrot.lane.b32.xlu0 %v315, 32
  %v584 = vpop.permute.xlu0 %583
  %v586 = vmul.f32 %v580, %v584
  %588 = vrot.lane.b32.xlu0 %v581, 64
  %v589 = vpop.permute.xlu0 %588
  %v591 = vmul.f32 %v580, %v589
  %593 = vrot.lane.b32.xlu0 %v591, 32
  %v594 = vpop.permute.xlu0 %593
  %v596 = vadd.f32 %v586, %v594
  %v597 = vtanh.pop %v596
  %599 = vrot.lane.b32.xlu0 %v597, 64
  %v600 = vpop.permute.xlu0 %599
  %v602 = vmul.f32 %v580, %v600
  %v603 = vld [vmem:[#allocation2 + $0x8] sm:$0xff]
  %604 = vmatprep.subr.mxu0 0.0
  %605 = vmatpush1.msra.mxu0 0.0
  %606 = vmatprep.subr.mxu0 0.0
  %607 = vmatpush1.msra.mxu0 0.0
  %608 = vmatprep.subr.mxu0 0.0
  %609 = vmatpush1.msra.mxu0 0.0
  %610 = vmatprep.subr.mxu0 0.0
  %611 = vmatpush1.msra.mxu0 0.0
  %612 = vmatprep.subr.mxu0 0.0
  %613 = vmatpush1.msra.mxu0 0.0
  %614 = vmatprep.subr.mxu0 0.0
  %615 = vmatpush1.msra.mxu0 0.0
  %616 = vmatprep.subr.mxu0 0.0
  %617 = vmatpush1.msra.mxu0 0.0
  %618 = vmatprep.subr.mxu0 0.0
  %619 = vmatpush1.msra.mxu0 0.0
  %620 = vmatprep.subr.mxu0 0.0
  %621 = vmatpush1.msra.mxu0 0.0
  %622 = vmatprep.subr.mxu0 0.0
  %623 = vmatpush1.msra.mxu0 0.0
  %624 = vmatprep.subr.mxu0 0.0
  %625 = vmatpush1.msra.mxu0 0.0
  %626 = vmatprep.subr.mxu0 0.0
  %627 = vmatpush1.msra.mxu0 0.0
  %628 = vmatprep.subr.mxu0 0.0
  %629 = vmatpush1.msra.mxu0 %v298
  %630 = vmatprep.subr.mxu0 0.0
  %631 = vmatpush1.msra.mxu0 %v297
  %632 = vmatprep.subr.mxu0 0.0
  %633 = vmatpush1.msra.mxu0 %v296
  %634 = vmatprep.subr.mxu0 0.0
  %635 = vmatpush1.msra.mxu0 %v295
  %636 = vmatprep.subr.mxu0 0.0
  %637 = vmatpush2.msra.mxu0 0.0
  %638 = vmatprep.subr.mxu0 0.0
  %639 = vmatpush2.msra.mxu0 0.0
  %640 = vmatprep.subr.mxu0 0.0
  %641 = vmatpush2.msra.mxu0 0.0
  %642 = vmatprep.subr.mxu0 0.0
  %643 = vmatpush2.msra.mxu0 0.0
  %644 = vmatprep.subr.mxu0 0.0
  %645 = vmatpush2.msra.mxu0 0.0
  %646 = vmatprep.subr.mxu0 0.0
  %647 = vmatpush2.msra.mxu0 0.0
  %648 = vmatprep.subr.mxu0 0.0
  %649 = vmatpush2.msra.mxu0 0.0
  %650 = vmatprep.subr.mxu0 0.0
  %651 = vmatpush2.msra.mxu0 0.0
  %652 = vmatprep.subr.mxu0 0.0
  %653 = vmatpush2.msra.mxu0 0.0
  %654 = vmatprep.subr.mxu0 0.0
  %655 = vmatpush2.msra.mxu0 0.0
  %656 = vmatprep.subr.mxu0 0.0
  %657 = vmatpush2.msra.mxu0 0.0
  %658 = vmatprep.subr.mxu0 0.0
  %659 = vmatpush2.msra.mxu0 0.0
  %660 = vmatprep.subr.mxu0 0.0
  %661 = vmatpush2.msra.mxu0 0.0
  %662 = vmatprep.subr.mxu0 0.0
  %663 = vmatpush2.msra.mxu0 0.0
  %664 = vmatprep.subr.mxu0 0.0
  %665 = vmatpush2.msra.mxu0 0.0
  %666 = vmatprep.subr.mxu0 0.0
  %667 = vmatpush2.msra.mxu0 0.0
  %668 = vmatprep.mubr.f32.mxu0 0.0
  %669 = vmatmul.mubr.f32.gmra.mxu0 %v496
  %v670 = vpop.f32.mrf.mxu0
  %v671 = vadd.f32 0.0, %v670
  %v672 = vpop.f32.mrf.mxu0
  %673 = vdwg.mxu0
  %v674 = vadd.f32 %v603, %v671
  %v675 = vxor.u32 %v674, 2147483648
  %v676 = vmul.f32 %v675, 1.442695
  %v677 = vpow.pop %v676
  %v678 = vadd.f32 %v677, 1.0
  %v679 = vrcp.pop %v678
  %v680 = vmul.f32 1.0, %v679
  %v681 = vtanh.pop %v674
  %v682 = vmul.f32 %v680, %v413
  %684 = vrot.lane.b32.xlu0 %v681, 64
  %v685 = vpop.permute.xlu0 %684
  %v687 = vmul.f32 %v680, %v685
  %689 = vrot.lane.b32.xlu0 %v687, 32
  %v690 = vpop.permute.xlu0 %689
  %v692 = vadd.f32 %v682, %v690
  %v693 = vtanh.pop %v692
  %695 = vrot.lane.b32.xlu0 %v693, 64
  %v696 = vpop.permute.xlu0 %695
  %v698 = vmul.f32 %v680, %v696
  %700 = vrot.lane.b32.xlu0 %v602, 32
  %v701 = vpop.permute.xlu0 %700
  %v702 = vsel %vm317, %v701, 0
  %704 = vmatprep.subr.mxu0 0.0
  %705 = vmatpush1.msra.mxu0 0.0
  %706 = vmatprep.subr.mxu0 0.0
  %707 = vmatpush1.msra.mxu0 0.0
  %708 = vmatprep.subr.mxu0 0.0
  %709 = vmatpush1.msra.mxu0 0.0
  %710 = vmatprep.subr.mxu0 0.0
  %711 = vmatpush1.msra.mxu0 0.0
  %712 = vmatprep.subr.mxu0 0.0
  %713 = vmatpush1.msra.mxu0 0.0
  %714 = vmatprep.subr.mxu0 0.0
  %715 = vmatpush1.msra.mxu0 0.0
  %716 = vmatprep.subr.mxu0 0.0
  %717 = vmatpush1.msra.mxu0 0.0
  %718 = vmatprep.subr.mxu0 0.0
  %719 = vmatpush1.msra.mxu0 0.0
  %720 = vmatprep.subr.mxu0 0.0
  %721 = vmatpush1.msra.mxu0 0.0
  %722 = vmatprep.subr.mxu0 0.0
  %723 = vmatpush1.msra.mxu0 0.0
  %724 = vmatprep.subr.mxu0 0.0
  %725 = vmatpush1.msra.mxu0 0.0
  %726 = vmatprep.subr.mxu0 0.0
  %727 = vmatpush1.msra.mxu0 0.0
  %728 = vmatprep.subr.mxu0 0.0
  %729 = vmatpush1.msra.mxu0 %v303
  %730 = vmatprep.subr.mxu0 0.0
  %731 = vmatpush1.msra.mxu0 %v302
  %732 = vmatprep.subr.mxu0 0.0
  %733 = vmatpush1.msra.mxu0 %v301
  %734 = vmatprep.subr.mxu0 0.0
  %735 = vmatpush1.msra.mxu0 %v300
  %736 = vmatprep.subr.mxu0 0.0
  %737 = vmatpush2.msra.mxu0 0.0
  %738 = vmatprep.subr.mxu0 0.0
  %739 = vmatpush2.msra.mxu0 0.0
  %740 = vmatprep.subr.mxu0 0.0
  %741 = vmatpush2.msra.mxu0 0.0
  %742 = vmatprep.subr.mxu0 0.0
  %743 = vmatpush2.msra.mxu0 0.0
  %744 = vmatprep.subr.mxu0 0.0
  %745 = vmatpush2.msra.mxu0 0.0
  %746 = vmatprep.subr.mxu0 0.0
  %747 = vmatpush2.msra.mxu0 0.0
  %748 = vmatprep.subr.mxu0 0.0
  %749 = vmatpush2.msra.mxu0 0.0
  %750 = vmatprep.subr.mxu0 0.0
  %751 = vmatpush2.msra.mxu0 0.0
  %752 = vmatprep.subr.mxu0 0.0
  %753 = vmatpush2.msra.mxu0 0.0
  %754 = vmatprep.subr.mxu0 0.0
  %755 = vmatpush2.msra.mxu0 0.0
  %756 = vmatprep.subr.mxu0 0.0
  %757 = vmatpush2.msra.mxu0 0.0
  %758 = vmatprep.subr.mxu0 0.0
  %759 = vmatpush2.msra.mxu0 0.0
  %760 = vmatprep.subr.mxu0 0.0
  %761 = vmatpush2.msra.mxu0 0.0
  %762 = vmatprep.subr.mxu0 0.0
  %763 = vmatpush2.msra.mxu0 0.0
  %764 = vmatprep.subr.mxu0 0.0
  %765 = vmatpush2.msra.mxu0 0.0
  %766 = vmatprep.subr.mxu0 0.0
  %767 = vmatpush2.msra.mxu0 0.0
  %768 = vmatprep.mubr.f32.mxu0 0.0
  %769 = vmatmul.mubr.f32.gmra.mxu0 %v702
  %v770 = vpop.f32.mrf.mxu0
  %v771 = vadd.f32 0.0, %v770
  %v772 = vpop.f32.mrf.mxu0
  %773 = vdwg.mxu0
  %775 = vrot.lane.b32.xlu0 %v698, 32
  %v776 = vpop.permute.xlu0 %775
  %v777 = vsel %vm317, %v776, 0
  %779 = vmatprep.subr.mxu0 0.0
  %780 = vmatpush1.msra.mxu0 0.0
  %781 = vmatprep.subr.mxu0 0.0
  %782 = vmatpush1.msra.mxu0 0.0
  %783 = vmatprep.subr.mxu0 0.0
  %784 = vmatpush1.msra.mxu0 0.0
  %785 = vmatprep.subr.mxu0 0.0
  %786 = vmatpush1.msra.mxu0 0.0
  %787 = vmatprep.subr.mxu0 0.0
  %788 = vmatpush1.msra.mxu0 0.0
  %789 = vmatprep.subr.mxu0 0.0
  %790 = vmatpush1.msra.mxu0 0.0
  %791 = vmatprep.subr.mxu0 0.0
  %792 = vmatpush1.msra.mxu0 0.0
  %793 = vmatprep.subr.mxu0 0.0
  %794 = vmatpush1.msra.mxu0 0.0
  %795 = vmatprep.subr.mxu0 0.0
  %796 = vmatpush1.msra.mxu0 0.0
  %797 = vmatprep.subr.mxu0 0.0
  %798 = vmatpush1.msra.mxu0 0.0
  %799 = vmatprep.subr.mxu0 0.0
  %800 = vmatpush1.msra.mxu0 0.0
  %801 = vmatprep.subr.mxu0 0.0
  %802 = vmatpush1.msra.mxu0 0.0
  %803 = vmatprep.subr.mxu0 0.0
  %804 = vmatpush1.msra.mxu0 %v307
  %805 = vmatprep.subr.mxu0 0.0
  %806 = vmatpush1.msra.mxu0 %v306
  %807 = vmatprep.subr.mxu0 0.0
  %808 = vmatpush1.msra.mxu0 %v305
  %809 = vmatprep.subr.mxu0 0.0
  %810 = vmatpush1.msra.mxu0 %v304
  %811 = vmatprep.subr.mxu0 0.0
  %812 = vmatpush2.msra.mxu0 0.0
  %813 = vmatprep.subr.mxu0 0.0
  %814 = vmatpush2.msra.mxu0 0.0
  %815 = vmatprep.subr.mxu0 0.0
  %816 = vmatpush2.msra.mxu0 0.0
  %817 = vmatprep.subr.mxu0 0.0
  %818 = vmatpush2.msra.mxu0 0.0
  %819 = vmatprep.subr.mxu0 0.0
  %820 = vmatpush2.msra.mxu0 0.0
  %821 = vmatprep.subr.mxu0 0.0
  %822 = vmatpush2.msra.mxu0 0.0
  %823 = vmatprep.subr.mxu0 0.0
  %824 = vmatpush2.msra.mxu0 0.0
  %825 = vmatprep.subr.mxu0 0.0
  %826 = vmatpush2.msra.mxu0 0.0
  %827 = vmatprep.subr.mxu0 0.0
  %828 = vmatpush2.msra.mxu0 0.0
  %829 = vmatprep.subr.mxu0 0.0
  %830 = vmatpush2.msra.mxu0 0.0
  %831 = vmatprep.subr.mxu0 0.0
  %832 = vmatpush2.msra.mxu0 0.0
  %833 = vmatprep.subr.mxu0 0.0
  %834 = vmatpush2.msra.mxu0 0.0
  %835 = vmatprep.subr.mxu0 0.0
  %836 = vmatpush2.msra.mxu0 0.0
  %837 = vmatprep.subr.mxu0 0.0
  %838 = vmatpush2.msra.mxu0 0.0
  %839 = vmatprep.subr.mxu0 0.0
  %840 = vmatpush2.msra.mxu0 0.0
  %841 = vmatprep.subr.mxu0 0.0
  %842 = vmatpush2.msra.mxu0 0.0
  %843 = vmatprep.mubr.f32.mxu0 0.0
  %844 = vmatmul.mubr.f32.gmra.mxu0 %v777
  %v845 = vpop.f32.mrf.mxu0
  %v846 = vadd.f32 %v771, %v845
  %v847 = vpop.f32.mrf.mxu0
  %848 = vdwg.mxu0
  %v849 = vadd.f32 %v846, %v572
  %v850 = vxor.u32 %v849, 2147483648
  %v851 = vmul.f32 %v850, 1.442695
  %v852 = vpow.pop %v851
  %v853 = vadd.f32 %v852, 1.0
  %v854 = vrcp.pop %v853
  %v855 = vmul.f32 1.0, %v854
  %v856 = vtanh.pop %v849
  %v857 = vmul.f32 %v855, %v596
  %859 = vrot.lane.b32.xlu0 %v856, 64
  %v860 = vpop.permute.xlu0 %859
  %v862 = vmul.f32 %v855, %v860
  %864 = vrot.lane.b32.xlu0 %v862, 32
  %v865 = vpop.permute.xlu0 %864
  %v867 = vadd.f32 %v857, %v865
  %v868 = vtanh.pop %v867
  %870 = vrot.lane.b32.xlu0 %v868, 64
  %v871 = vpop.permute.xlu0 %870
  %v873 = vmul.f32 %v855, %v871
  %v874 = vld [vmem:[#allocation2 + $0x10] sm:$0xff]
  %875 = vmatprep.subr.mxu0 0.0
  %876 = vmatpush1.msra.mxu0 0.0
  %877 = vmatprep.subr.mxu0 0.0
  %878 = vmatpush1.msra.mxu0 0.0
  %879 = vmatprep.subr.mxu0 0.0
  %880 = vmatpush1.msra.mxu0 0.0
  %881 = vmatprep.subr.mxu0 0.0
  %882 = vmatpush1.msra.mxu0 0.0
  %883 = vmatprep.subr.mxu0 0.0
  %884 = vmatpush1.msra.mxu0 0.0
  %885 = vmatprep.subr.mxu0 0.0
  %886 = vmatpush1.msra.mxu0 0.0
  %887 = vmatprep.subr.mxu0 0.0
  %888 = vmatpush1.msra.mxu0 0.0
  %889 = vmatprep.subr.mxu0 0.0
  %890 = vmatpush1.msra.mxu0 0.0
  %891 = vmatprep.subr.mxu0 0.0
  %892 = vmatpush1.msra.mxu0 0.0
  %893 = vmatprep.subr.mxu0 0.0
  %894 = vmatpush1.msra.mxu0 0.0
  %895 = vmatprep.subr.mxu0 0.0
  %896 = vmatpush1.msra.mxu0 0.0
  %897 = vmatprep.subr.mxu0 0.0
  %898 = vmatpush1.msra.mxu0 0.0
  %899 = vmatprep.subr.mxu0 0.0
  %900 = vmatpush1.msra.mxu0 %v298
  %901 = vmatprep.subr.mxu0 0.0
  %902 = vmatpush1.msra.mxu0 %v297
  %903 = vmatprep.subr.mxu0 0.0
  %904 = vmatpush1.msra.mxu0 %v296
  %905 = vmatprep.subr.mxu0 0.0
  %906 = vmatpush1.msra.mxu0 %v295
  %907 = vmatprep.subr.mxu0 0.0
  %908 = vmatpush2.msra.mxu0 0.0
  %909 = vmatprep.subr.mxu0 0.0
  %910 = vmatpush2.msra.mxu0 0.0
  %911 = vmatprep.subr.mxu0 0.0
  %912 = vmatpush2.msra.mxu0 0.0
  %913 = vmatprep.subr.mxu0 0.0
  %914 = vmatpush2.msra.mxu0 0.0
  %915 = vmatprep.subr.mxu0 0.0
  %916 = vmatpush2.msra.mxu0 0.0
  %917 = vmatprep.subr.mxu0 0.0
  %918 = vmatpush2.msra.mxu0 0.0
  %919 = vmatprep.subr.mxu0 0.0
  %920 = vmatpush2.msra.mxu0 0.0
  %921 = vmatprep.subr.mxu0 0.0
  %922 = vmatpush2.msra.mxu0 0.0
  %923 = vmatprep.subr.mxu0 0.0
  %924 = vmatpush2.msra.mxu0 0.0
  %925 = vmatprep.subr.mxu0 0.0
  %926 = vmatpush2.msra.mxu0 0.0
  %927 = vmatprep.subr.mxu0 0.0
  %928 = vmatpush2.msra.mxu0 0.0
  %929 = vmatprep.subr.mxu0 0.0
  %930 = vmatpush2.msra.mxu0 0.0
  %931 = vmatprep.subr.mxu0 0.0
  %932 = vmatpush2.msra.mxu0 0.0
  %933 = vmatprep.subr.mxu0 0.0
  %934 = vmatpush2.msra.mxu0 0.0
  %935 = vmatprep.subr.mxu0 0.0
  %936 = vmatpush2.msra.mxu0 0.0
  %937 = vmatprep.subr.mxu0 0.0
  %938 = vmatpush2.msra.mxu0 0.0
  %939 = vmatprep.mubr.f32.mxu0 0.0
  %940 = vmatmul.mubr.f32.gmra.mxu0 %v777
  %v941 = vpop.f32.mrf.mxu0
  %v942 = vadd.f32 0.0, %v941
  %v943 = vpop.f32.mrf.mxu0
  %944 = vdwg.mxu0
  %v945 = vadd.f32 %v874, %v942
  %v946 = vxor.u32 %v945, 2147483648
  %v947 = vmul.f32 %v946, 1.442695
  %v948 = vpow.pop %v947
  %v949 = vadd.f32 %v948, 1.0
  %v950 = vrcp.pop %v949
  %v951 = vmul.f32 1.0, %v950
  %v952 = vtanh.pop %v945
  %v953 = vmul.f32 %v951, %v692
  %955 = vrot.lane.b32.xlu0 %v952, 64
  %v956 = vpop.permute.xlu0 %955
  %v958 = vmul.f32 %v951, %v956
  %960 = vrot.lane.b32.xlu0 %v958, 32
  %v961 = vpop.permute.xlu0 %960
  %v963 = vadd.f32 %v953, %v961
  %v964 = vtanh.pop %v963
  %966 = vrot.lane.b32.xlu0 %v964, 64
  %v967 = vpop.permute.xlu0 %966
  %v969 = vmul.f32 %v951, %v967
  %971 = vrot.lane.b32.xlu0 %v873, 32
  %v972 = vpop.permute.xlu0 %971
  %v973 = vsel %vm317, %v972, 0
  %975 = vmatprep.subr.mxu0 0.0
  %976 = vmatpush1.msra.mxu0 0.0
  %977 = vmatprep.subr.mxu0 0.0
  %978 = vmatpush1.msra.mxu0 0.0
  %979 = vmatprep.subr.mxu0 0.0
  %980 = vmatpush1.msra.mxu0 0.0
  %981 = vmatprep.subr.mxu0 0.0
  %982 = vmatpush1.msra.mxu0 0.0
  %983 = vmatprep.subr.mxu0 0.0
  %984 = vmatpush1.msra.mxu0 0.0
  %985 = vmatprep.subr.mxu0 0.0
  %986 = vmatpush1.msra.mxu0 0.0
  %987 = vmatprep.subr.mxu0 0.0
  %988 = vmatpush1.msra.mxu0 0.0
  %989 = vmatprep.subr.mxu0 0.0
  %990 = vmatpush1.msra.mxu0 0.0
  %991 = vmatprep.subr.mxu0 0.0
  %992 = vmatpush1.msra.mxu0 0.0
  %993 = vmatprep.subr.mxu0 0.0
  %994 = vmatpush1.msra.mxu0 0.0
  %995 = vmatprep.subr.mxu0 0.0
  %996 = vmatpush1.msra.mxu0 0.0
  %997 = vmatprep.subr.mxu0 0.0
  %998 = vmatpush1.msra.mxu0 0.0
  %999 = vmatprep.subr.mxu0 0.0
  %1000 = vmatpush1.msra.mxu0 %v303
  %1001 = vmatprep.subr.mxu0 0.0
  %1002 = vmatpush1.msra.mxu0 %v302
  %1003 = vmatprep.subr.mxu0 0.0
  %1004 = vmatpush1.msra.mxu0 %v301
  %1005 = vmatprep.subr.mxu0 0.0
  %1006 = vmatpush1.msra.mxu0 %v300
  %1007 = vmatprep.subr.mxu0 0.0
  %1008 = vmatpush2.msra.mxu0 0.0
  %1009 = vmatprep.subr.mxu0 0.0
  %1010 = vmatpush2.msra.mxu0 0.0
  %1011 = vmatprep.subr.mxu0 0.0
  %1012 = vmatpush2.msra.mxu0 0.0
  %1013 = vmatprep.subr.mxu0 0.0
  %1014 = vmatpush2.msra.mxu0 0.0
  %1015 = vmatprep.subr.mxu0 0.0
  %1016 = vmatpush2.msra.mxu0 0.0
  %1017 = vmatprep.subr.mxu0 0.0
  %1018 = vmatpush2.msra.mxu0 0.0
  %1019 = vmatprep.subr.mxu0 0.0
  %1020 = vmatpush2.msra.mxu0 0.0
  %1021 = vmatprep.subr.mxu0 0.0
  %1022 = vmatpush2.msra.mxu0 0.0
  %1023 = vmatprep.subr.mxu0 0.0
  %1024 = vmatpush2.msra.mxu0 0.0
  %1025 = vmatprep.subr.mxu0 0.0
  %1026 = vmatpush2.msra.mxu0 0.0
  %1027 = vmatprep.subr.mxu0 0.0
  %1028 = vmatpush2.msra.mxu0 0.0
  %1029 = vmatprep.subr.mxu0 0.0
  %1030 = vmatpush2.msra.mxu0 0.0
  %1031 = vmatprep.subr.mxu0 0.0
  %1032 = vmatpush2.msra.mxu0 0.0
  %1033 = vmatprep.subr.mxu0 0.0
  %1034 = vmatpush2.msra.mxu0 0.0
  %1035 = vmatprep.subr.mxu0 0.0
  %1036 = vmatpush2.msra.mxu0 0.0
  %1037 = vmatprep.subr.mxu0 0.0
  %1038 = vmatpush2.msra.mxu0 0.0
  %1039 = vmatprep.mubr.f32.mxu0 0.0
  %1040 = vmatmul.mubr.f32.gmra.mxu0 %v973
  %v1041 = vpop.f32.mrf.mxu0
  %v1042 = vadd.f32 0.0, %v1041
  %v1043 = vpop.f32.mrf.mxu0
  %1044 = vdwg.mxu0
  %1046 = vrot.lane.b32.xlu0 %v969, 32
  %v1047 = vpop.permute.xlu0 %1046
  %v1048 = vsel %vm317, %v1047, 0
  %1050 = vmatprep.subr.mxu0 0.0
  %1051 = vmatpush1.msra.mxu0 0.0
  %1052 = vmatprep.subr.mxu0 0.0
  %1053 = vmatpush1.msra.mxu0 0.0
  %1054 = vmatprep.subr.mxu0 0.0
  %1055 = vmatpush1.msra.mxu0 0.0
  %1056 = vmatprep.subr.mxu0 0.0
  %1057 = vmatpush1.msra.mxu0 0.0
  %1058 = vmatprep.subr.mxu0 0.0
  %1059 = vmatpush1.msra.mxu0 0.0
  %1060 = vmatprep.subr.mxu0 0.0
  %1061 = vmatpush1.msra.mxu0 0.0
  %1062 = vmatprep.subr.mxu0 0.0
  %1063 = vmatpush1.msra.mxu0 0.0
  %1064 = vmatprep.subr.mxu0 0.0
  %1065 = vmatpush1.msra.mxu0 0.0
  %1066 = vmatprep.subr.mxu0 0.0
  %1067 = vmatpush1.msra.mxu0 0.0
  %1068 = vmatprep.subr.mxu0 0.0
  %1069 = vmatpush1.msra.mxu0 0.0
  %1070 = vmatprep.subr.mxu0 0.0
  %1071 = vmatpush1.msra.mxu0 0.0
  %1072 = vmatprep.subr.mxu0 0.0
  %1073 = vmatpush1.msra.mxu0 0.0
  %1074 = vmatprep.subr.mxu0 0.0
  %1075 = vmatpush1.msra.mxu0 %v307
  %1076 = vmatprep.subr.mxu0 0.0
  %1077 = vmatpush1.msra.mxu0 %v306
  %1078 = vmatprep.subr.mxu0 0.0
  %1079 = vmatpush1.msra.mxu0 %v305
  %1080 = vmatprep.subr.mxu0 0.0
  %1081 = vmatpush1.msra.mxu0 %v304
  %1082 = vmatprep.subr.mxu0 0.0
  %1083 = vmatpush2.msra.mxu0 0.0
  %1084 = vmatprep.subr.mxu0 0.0
  %1085 = vmatpush2.msra.mxu0 0.0
  %1086 = vmatprep.subr.mxu0 0.0
  %1087 = vmatpush2.msra.mxu0 0.0
  %1088 = vmatprep.subr.mxu0 0.0
  %1089 = vmatpush2.msra.mxu0 0.0
  %1090 = vmatprep.subr.mxu0 0.0
  %1091 = vmatpush2.msra.mxu0 0.0
  %1092 = vmatprep.subr.mxu0 0.0
  %1093 = vmatpush2.msra.mxu0 0.0
  %1094 = vmatprep.subr.mxu0 0.0
  %1095 = vmatpush2.msra.mxu0 0.0
  %1096 = vmatprep.subr.mxu0 0.0
  %1097 = vmatpush2.msra.mxu0 0.0
  %1098 = vmatprep.subr.mxu0 0.0
  %1099 = vmatpush2.msra.mxu0 0.0
  %1100 = vmatprep.subr.mxu0 0.0
  %1101 = vmatpush2.msra.mxu0 0.0
  %1102 = vmatprep.subr.mxu0 0.0
  %1103 = vmatpush2.msra.mxu0 0.0
  %1104 = vmatprep.subr.mxu0 0.0
  %1105 = vmatpush2.msra.mxu0 0.0
  %1106 = vmatprep.subr.mxu0 0.0
  %1107 = vmatpush2.msra.mxu0 0.0
  %1108 = vmatprep.subr.mxu0 0.0
  %1109 = vmatpush2.msra.mxu0 0.0
  %1110 = vmatprep.subr.mxu0 0.0
  %1111 = vmatpush2.msra.mxu0 0.0
  %1112 = vmatprep.subr.mxu0 0.0
  %1113 = vmatpush2.msra.mxu0 0.0
  %1114 = vmatprep.mubr.f32.mxu0 0.0
  %1115 = vmatmul.mubr.f32.gmra.mxu0 %v1048
  %v1116 = vpop.f32.mrf.mxu0
  %v1117 = vadd.f32 %v1042, %v1116
  %v1118 = vpop.f32.mrf.mxu0
  %1119 = vdwg.mxu0
  %v1120 = vadd.f32 %v1117, %v572
  %v1121 = vxor.u32 %v1120, 2147483648
  %v1122 = vmul.f32 %v1121, 1.442695
  %v1123 = vpow.pop %v1122
  %v1124 = vadd.f32 %v1123, 1.0
  %v1125 = vrcp.pop %v1124
  %v1126 = vmul.f32 1.0, %v1125
  %v1127 = vtanh.pop %v1120
  %v1128 = vmul.f32 %v1126, %v867
  %1130 = vrot.lane.b32.xlu0 %v1127, 64
  %v1131 = vpop.permute.xlu0 %1130
  %v1133 = vmul.f32 %v1126, %v1131
  %1135 = vrot.lane.b32.xlu0 %v1133, 32
  %v1136 = vpop.permute.xlu0 %1135
  %v1138 = vadd.f32 %v1128, %v1136
  %v1139 = vtanh.pop %v1138
  %1141 = vrot.lane.b32.xlu0 %v1139, 64
  %v1142 = vpop.permute.xlu0 %1141
  %v1144 = vmul.f32 %v1126, %v1142
  %v1145 = vld [vmem:[#allocation2 + $0x18] sm:$0xff]
  %1146 = vmatprep.subr.mxu0 0.0
  %1147 = vmatpush1.msra.mxu0 0.0
  %1148 = vmatprep.subr.mxu0 0.0
  %1149 = vmatpush1.msra.mxu0 0.0
  %1150 = vmatprep.subr.mxu0 0.0
  %1151 = vmatpush1.msra.mxu0 0.0
  %1152 = vmatprep.subr.mxu0 0.0
  %1153 = vmatpush1.msra.mxu0 0.0
  %1154 = vmatprep.subr.mxu0 0.0
  %1155 = vmatpush1.msra.mxu0 0.0
  %1156 = vmatprep.subr.mxu0 0.0
  %1157 = vmatpush1.msra.mxu0 0.0
  %1158 = vmatprep.subr.mxu0 0.0
  %1159 = vmatpush1.msra.mxu0 0.0
  %1160 = vmatprep.subr.mxu0 0.0
  %1161 = vmatpush1.msra.mxu0 0.0
  %1162 = vmatprep.subr.mxu0 0.0
  %1163 = vmatpush1.msra.mxu0 0.0
  %1164 = vmatprep.subr.mxu0 0.0
  %1165 = vmatpush1.msra.mxu0 0.0
  %1166 = vmatprep.subr.mxu0 0.0
  %1167 = vmatpush1.msra.mxu0 0.0
  %1168 = vmatprep.subr.mxu0 0.0
  %1169 = vmatpush1.msra.mxu0 0.0
  %1170 = vmatprep.subr.mxu0 0.0
  %1171 = vmatpush1.msra.mxu0 %v298
  %1172 = vmatprep.subr.mxu0 0.0
  %1173 = vmatpush1.msra.mxu0 %v297
  %1174 = vmatprep.subr.mxu0 0.0
  %1175 = vmatpush1.msra.mxu0 %v296
  %1176 = vmatprep.subr.mxu0 0.0
  %1177 = vmatpush1.msra.mxu0 %v295
  %1178 = vmatprep.subr.mxu0 0.0
  %1179 = vmatpush2.msra.mxu0 0.0
  %1180 = vmatprep.subr.mxu0 0.0
  %1181 = vmatpush2.msra.mxu0 0.0
  %1182 = vmatprep.subr.mxu0 0.0
  %1183 = vmatpush2.msra.mxu0 0.0
  %1184 = vmatprep.subr.mxu0 0.0
  %1185 = vmatpush2.msra.mxu0 0.0
  %1186 = vmatprep.subr.mxu0 0.0
  %1187 = vmatpush2.msra.mxu0 0.0
  %1188 = vmatprep.subr.mxu0 0.0
  %1189 = vmatpush2.msra.mxu0 0.0
  %1190 = vmatprep.subr.mxu0 0.0
  %1191 = vmatpush2.msra.mxu0 0.0
  %1192 = vmatprep.subr.mxu0 0.0
  %1193 = vmatpush2.msra.mxu0 0.0
  %1194 = vmatprep.subr.mxu0 0.0
  %1195 = vmatpush2.msra.mxu0 0.0
  %1196 = vmatprep.subr.mxu0 0.0
  %1197 = vmatpush2.msra.mxu0 0.0
  %1198 = vmatprep.subr.mxu0 0.0
  %1199 = vmatpush2.msra.mxu0 0.0
  %1200 = vmatprep.subr.mxu0 0.0
  %1201 = vmatpush2.msra.mxu0 0.0
  %1202 = vmatprep.subr.mxu0 0.0
  %1203 = vmatpush2.msra.mxu0 0.0
  %1204 = vmatprep.subr.mxu0 0.0
  %1205 = vmatpush2.msra.mxu0 0.0
  %1206 = vmatprep.subr.mxu0 0.0
  %1207 = vmatpush2.msra.mxu0 0.0
  %1208 = vmatprep.subr.mxu0 0.0
  %1209 = vmatpush2.msra.mxu0 0.0
  %1210 = vmatprep.mubr.f32.mxu0 0.0
  %1211 = vmatmul.mubr.f32.gmra.mxu0 %v1048
  %v1212 = vpop.f32.mrf.mxu0
  %v1213 = vadd.f32 0.0, %v1212
  %v1214 = vpop.f32.mrf.mxu0
  %1215 = vdwg.mxu0
  %v1216 = vadd.f32 %v1145, %v1213
  %v1217 = vxor.u32 %v1216, 2147483648
  %v1218 = vmul.f32 %v1217, 1.442695
  %v1219 = vpow.pop %v1218
  %v1220 = vadd.f32 %v1219, 1.0
  %v1221 = vrcp.pop %v1220
  %v1222 = vmul.f32 1.0, %v1221
  %v1223 = vtanh.pop %v1216
  %v1224 = vmul.f32 %v1222, %v963
  %1226 = vrot.lane.b32.xlu0 %v1223, 64
  %v1227 = vpop.permute.xlu0 %1226
  %v1229 = vmul.f32 %v1222, %v1227
  %1231 = vrot.lane.b32.xlu0 %v1229, 32
  %v1232 = vpop.permute.xlu0 %1231
  %v1234 = vadd.f32 %v1224, %v1232
  %v1235 = vtanh.pop %v1234
  %1237 = vrot.lane.b32.xlu0 %v1235, 64
  %v1238 = vpop.permute.xlu0 %1237
  %v1240 = vmul.f32 %v1222, %v1238
  %1242 = vrot.lane.b32.xlu0 %v1144, 32
  %v1243 = vpop.permute.xlu0 %1242
  %v1244 = vsel %vm317, %v1243, 0
  %1246 = vmatprep.subr.mxu0 0.0
  %1247 = vmatpush1.msra.mxu0 0.0
  %1248 = vmatprep.subr.mxu0 0.0
  %1249 = vmatpush1.msra.mxu0 0.0
  %1250 = vmatprep.subr.mxu0 0.0
  %1251 = vmatpush1.msra.mxu0 0.0
  %1252 = vmatprep.subr.mxu0 0.0
  %1253 = vmatpush1.msra.mxu0 0.0
  %1254 = vmatprep.subr.mxu0 0.0
  %1255 = vmatpush1.msra.mxu0 0.0
  %1256 = vmatprep.subr.mxu0 0.0
  %1257 = vmatpush1.msra.mxu0 0.0
  %1258 = vmatprep.subr.mxu0 0.0
  %1259 = vmatpush1.msra.mxu0 0.0
  %1260 = vmatprep.subr.mxu0 0.0
  %1261 = vmatpush1.msra.mxu0 0.0
  %1262 = vmatprep.subr.mxu0 0.0
  %1263 = vmatpush1.msra.mxu0 0.0
  %1264 = vmatprep.subr.mxu0 0.0
  %1265 = vmatpush1.msra.mxu0 0.0
  %1266 = vmatprep.subr.mxu0 0.0
  %1267 = vmatpush1.msra.mxu0 0.0
  %1268 = vmatprep.subr.mxu0 0.0
  %1269 = vmatpush1.msra.mxu0 0.0
  %1270 = vmatprep.subr.mxu0 0.0
  %1271 = vmatpush1.msra.mxu0 %v303
  %1272 = vmatprep.subr.mxu0 0.0
  %1273 = vmatpush1.msra.mxu0 %v302
  %1274 = vmatprep.subr.mxu0 0.0
  %1275 = vmatpush1.msra.mxu0 %v301
  %1276 = vmatprep.subr.mxu0 0.0
  %1277 = vmatpush1.msra.mxu0 %v300
  %1278 = vmatprep.subr.mxu0 0.0
  %1279 = vmatpush2.msra.mxu0 0.0
  %1280 = vmatprep.subr.mxu0 0.0
  %1281 = vmatpush2.msra.mxu0 0.0
  %1282 = vmatprep.subr.mxu0 0.0
  %1283 = vmatpush2.msra.mxu0 0.0
  %1284 = vmatprep.subr.mxu0 0.0
  %1285 = vmatpush2.msra.mxu0 0.0
  %1286 = vmatprep.subr.mxu0 0.0
  %1287 = vmatpush2.msra.mxu0 0.0
  %1288 = vmatprep.subr.mxu0 0.0
  %1289 = vmatpush2.msra.mxu0 0.0
  %1290 = vmatprep.subr.mxu0 0.0
  %1291 = vmatpush2.msra.mxu0 0.0
  %1292 = vmatprep.subr.mxu0 0.0
  %1293 = vmatpush2.msra.mxu0 0.0
  %1294 = vmatprep.subr.mxu0 0.0
  %1295 = vmatpush2.msra.mxu0 0.0
  %1296 = vmatprep.subr.mxu0 0.0
  %1297 = vmatpush2.msra.mxu0 0.0
  %1298 = vmatprep.subr.mxu0 0.0
  %1299 = vmatpush2.msra.mxu0 0.0
  %1300 = vmatprep.subr.mxu0 0.0
  %1301 = vmatpush2.msra.mxu0 0.0
  %1302 = vmatprep.subr.mxu0 0.0
  %1303 = vmatpush2.msra.mxu0 0.0
  %1304 = vmatprep.subr.mxu0 0.0
  %1305 = vmatpush2.msra.mxu0 0.0
  %1306 = vmatprep.subr.mxu0 0.0
  %1307 = vmatpush2.msra.mxu0 0.0
  %1308 = vmatprep.subr.mxu0 0.0
  %1309 = vmatpush2.msra.mxu0 0.0
  %1310 = vmatprep.mubr.f32.mxu0 0.0
  %1311 = vmatmul.mubr.f32.gmra.mxu0 %v1244
  %v1312 = vpop.f32.mrf.mxu0
  %v1313 = vadd.f32 0.0, %v1312
  %v1314 = vpop.f32.mrf.mxu0
  %1315 = vdwg.mxu0
  %1317 = vrot.lane.b32.xlu0 %v1240, 32
  %v1318 = vpop.permute.xlu0 %1317
  %v1319 = vsel %vm317, %v1318, 0
  %1321 = vmatprep.subr.mxu0 0.0
  %1322 = vmatpush1.msra.mxu0 0.0
  %1323 = vmatprep.subr.mxu0 0.0
  %1324 = vmatpush1.msra.mxu0 0.0
  %1325 = vmatprep.subr.mxu0 0.0
  %1326 = vmatpush1.msra.mxu0 0.0
  %1327 = vmatprep.subr.mxu0 0.0
  %1328 = vmatpush1.msra.mxu0 0.0
  %1329 = vmatprep.subr.mxu0 0.0
  %1330 = vmatpush1.msra.mxu0 0.0
  %1331 = vmatprep.subr.mxu0 0.0
  %1332 = vmatpush1.msra.mxu0 0.0
  %1333 = vmatprep.subr.mxu0 0.0
  %1334 = vmatpush1.msra.mxu0 0.0
  %1335 = vmatprep.subr.mxu0 0.0
  %1336 = vmatpush1.msra.mxu0 0.0
  %1337 = vmatprep.subr.mxu0 0.0
  %1338 = vmatpush1.msra.mxu0 0.0
  %1339 = vmatprep.subr.mxu0 0.0
  %1340 = vmatpush1.msra.mxu0 0.0
  %1341 = vmatprep.subr.mxu0 0.0
  %1342 = vmatpush1.msra.mxu0 0.0
  %1343 = vmatprep.subr.mxu0 0.0
  %1344 = vmatpush1.msra.mxu0 0.0
  %1345 = vmatprep.subr.mxu0 0.0
  %1346 = vmatpush1.msra.mxu0 %v307
  %1347 = vmatprep.subr.mxu0 0.0
  %1348 = vmatpush1.msra.mxu0 %v306
  %1349 = vmatprep.subr.mxu0 0.0
  %1350 = vmatpush1.msra.mxu0 %v305
  %1351 = vmatprep.subr.mxu0 0.0
  %1352 = vmatpush1.msra.mxu0 %v304
  %1353 = vmatprep.subr.mxu0 0.0
  %1354 = vmatpush2.msra.mxu0 0.0
  %1355 = vmatprep.subr.mxu0 0.0
  %1356 = vmatpush2.msra.mxu0 0.0
  %1357 = vmatprep.subr.mxu0 0.0
  %1358 = vmatpush2.msra.mxu0 0.0
  %1359 = vmatprep.subr.mxu0 0.0
  %1360 = vmatpush2.msra.mxu0 0.0
  %1361 = vmatprep.subr.mxu0 0.0
  %1362 = vmatpush2.msra.mxu0 0.0
  %1363 = vmatprep.subr.mxu0 0.0
  %1364 = vmatpush2.msra.mxu0 0.0
  %1365 = vmatprep.subr.mxu0 0.0
  %1366 = vmatpush2.msra.mxu0 0.0
  %1367 = vmatprep.subr.mxu0 0.0
  %1368 = vmatpush2.msra.mxu0 0.0
  %1369 = vmatprep.subr.mxu0 0.0
  %1370 = vmatpush2.msra.mxu0 0.0
  %1371 = vmatprep.subr.mxu0 0.0
  %1372 = vmatpush2.msra.mxu0 0.0
  %1373 = vmatprep.subr.mxu0 0.0
  %1374 = vmatpush2.msra.mxu0 0.0
  %1375 = vmatprep.subr.mxu0 0.0
  %1376 = vmatpush2.msra.mxu0 0.0
  %1377 = vmatprep.subr.mxu0 0.0
  %1378 = vmatpush2.msra.mxu0 0.0
  %1379 = vmatprep.subr.mxu0 0.0
  %1380 = vmatpush2.msra.mxu0 0.0
  %1381 = vmatprep.subr.mxu0 0.0
  %1382 = vmatpush2.msra.mxu0 0.0
  %1383 = vmatprep.subr.mxu0 0.0
  %1384 = vmatpush2.msra.mxu0 0.0
  %1385 = vmatprep.mubr.f32.mxu0 0.0
  %1386 = vmatmul.mubr.f32.gmra.mxu0 %v1319
  %v1387 = vpop.f32.mrf.mxu0
  %v1388 = vadd.f32 %v1313, %v1387
  %v1389 = vpop.f32.mrf.mxu0
  %1390 = vdwg.mxu0
  %v1391 = vadd.f32 %v1388, %v572
  %v1392 = vxor.u32 %v1391, 2147483648
  %v1393 = vmul.f32 %v1392, 1.442695
  %v1394 = vpow.pop %v1393
  %v1395 = vadd.f32 %v1394, 1.0
  %v1396 = vrcp.pop %v1395
  %v1397 = vmul.f32 1.0, %v1396
  %v1398 = vtanh.pop %v1391
  %v1399 = vmul.f32 %v1397, %v1138
  %1401 = vrot.lane.b32.xlu0 %v1398, 64
  %v1402 = vpop.permute.xlu0 %1401
  %v1404 = vmul.f32 %v1397, %v1402
  %1406 = vrot.lane.b32.xlu0 %v1404, 32
  %v1407 = vpop.permute.xlu0 %1406
  %v1409 = vadd.f32 %v1399, %v1407
  %v1410 = vtanh.pop %v1409
  %1412 = vrot.lane.b32.xlu0 %v1410, 64
  %v1413 = vpop.permute.xlu0 %1412
  %v1415 = vmul.f32 %v1397, %v1413
  %v1416 = vld [vmem:[#allocation2 + $0x20] sm:$0xff]
  %1417 = vmatprep.subr.mxu0 0.0
  %1418 = vmatpush1.msra.mxu0 0.0
  %1419 = vmatprep.subr.mxu0 0.0
  %1420 = vmatpush1.msra.mxu0 0.0
  %1421 = vmatprep.subr.mxu0 0.0
  %1422 = vmatpush1.msra.mxu0 0.0
  %1423 = vmatprep.subr.mxu0 0.0
  %1424 = vmatpush1.msra.mxu0 0.0
  %1425 = vmatprep.subr.mxu0 0.0
  %1426 = vmatpush1.msra.mxu0 0.0
  %1427 = vmatprep.subr.mxu0 0.0
  %1428 = vmatpush1.msra.mxu0 0.0
  %1429 = vmatprep.subr.mxu0 0.0
  %1430 = vmatpush1.msra.mxu0 0.0
  %1431 = vmatprep.subr.mxu0 0.0
  %1432 = vmatpush1.msra.mxu0 0.0
  %1433 = vmatprep.subr.mxu0 0.0
  %1434 = vmatpush1.msra.mxu0 0.0
  %1435 = vmatprep.subr.mxu0 0.0
  %1436 = vmatpush1.msra.mxu0 0.0
  %1437 = vmatprep.subr.mxu0 0.0
  %1438 = vmatpush1.msra.mxu0 0.0
  %1439 = vmatprep.subr.mxu0 0.0
  %1440 = vmatpush1.msra.mxu0 0.0
  %1441 = vmatprep.subr.mxu0 0.0
  %1442 = vmatpush1.msra.mxu0 %v298
  %1443 = vmatprep.subr.mxu0 0.0
  %1444 = vmatpush1.msra.mxu0 %v297
  %1445 = vmatprep.subr.mxu0 0.0
  %1446 = vmatpush1.msra.mxu0 %v296
  %1447 = vmatprep.subr.mxu0 0.0
  %1448 = vmatpush1.msra.mxu0 %v295
  %1449 = vmatprep.subr.mxu0 0.0
  %1450 = vmatpush2.msra.mxu0 0.0
  %1451 = vmatprep.subr.mxu0 0.0
  %1452 = vmatpush2.msra.mxu0 0.0
  %1453 = vmatprep.subr.mxu0 0.0
  %1454 = vmatpush2.msra.mxu0 0.0
  %1455 = vmatprep.subr.mxu0 0.0
  %1456 = vmatpush2.msra.mxu0 0.0
  %1457 = vmatprep.subr.mxu0 0.0
  %1458 = vmatpush2.msra.mxu0 0.0
  %1459 = vmatprep.subr.mxu0 0.0
  %1460 = vmatpush2.msra.mxu0 0.0
  %1461 = vmatprep.subr.mxu0 0.0
  %1462 = vmatpush2.msra.mxu0 0.0
  %1463 = vmatprep.subr.mxu0 0.0
  %1464 = vmatpush2.msra.mxu0 0.0
  %1465 = vmatprep.subr.mxu0 0.0
  %1466 = vmatpush2.msra.mxu0 0.0
  %1467 = vmatprep.subr.mxu0 0.0
  %1468 = vmatpush2.msra.mxu0 0.0
  %1469 = vmatprep.subr.mxu0 0.0
  %1470 = vmatpush2.msra.mxu0 0.0
  %1471 = vmatprep.subr.mxu0 0.0
  %1472 = vmatpush2.msra.mxu0 0.0
  %1473 = vmatprep.subr.mxu0 0.0
  %1474 = vmatpush2.msra.mxu0 0.0
  %1475 = vmatprep.subr.mxu0 0.0
  %1476 = vmatpush2.msra.mxu0 0.0
  %1477 = vmatprep.subr.mxu0 0.0
  %1478 = vmatpush2.msra.mxu0 0.0
  %1479 = vmatprep.subr.mxu0 0.0
  %1480 = vmatpush2.msra.mxu0 0.0
  %1481 = vmatprep.mubr.f32.mxu0 0.0
  %1482 = vmatmul.mubr.f32.gmra.mxu0 %v1319
  %v1483 = vpop.f32.mrf.mxu0
  %v1484 = vadd.f32 0.0, %v1483
  %v1485 = vpop.f32.mrf.mxu0
  %1486 = vdwg.mxu0
  %v1487 = vadd.f32 %v1416, %v1484
  %v1488 = vxor.u32 %v1487, 2147483648
  %v1489 = vmul.f32 %v1488, 1.442695
  %v1490 = vpow.pop %v1489
  %v1491 = vadd.f32 %v1490, 1.0
  %v1492 = vrcp.pop %v1491
  %v1493 = vmul.f32 1.0, %v1492
  %v1494 = vtanh.pop %v1487
  %v1495 = vmul.f32 %v1493, %v1234
  %1497 = vrot.lane.b32.xlu0 %v1494, 64
  %v1498 = vpop.permute.xlu0 %1497
  %v1500 = vmul.f32 %v1493, %v1498
  %1502 = vrot.lane.b32.xlu0 %v1500, 32
  %v1503 = vpop.permute.xlu0 %1502
  %v1505 = vadd.f32 %v1495, %v1503
  %v1506 = vtanh.pop %v1505
  %1508 = vrot.lane.b32.xlu0 %v1506, 64
  %v1509 = vpop.permute.xlu0 %1508
  %v1511 = vmul.f32 %v1493, %v1509
  %1513 = vrot.lane.b32.xlu0 %v1415, 32
  %v1514 = vpop.permute.xlu0 %1513
  %v1515 = vsel %vm317, %v1514, 0
  %1517 = vmatprep.subr.mxu0 0.0
  %1518 = vmatpush1.msra.mxu0 0.0
  %1519 = vmatprep.subr.mxu0 0.0
  %1520 = vmatpush1.msra.mxu0 0.0
  %1521 = vmatprep.subr.mxu0 0.0
  %1522 = vmatpush1.msra.mxu0 0.0
  %1523 = vmatprep.subr.mxu0 0.0
  %1524 = vmatpush1.msra.mxu0 0.0
  %1525 = vmatprep.subr.mxu0 0.0
  %1526 = vmatpush1.msra.mxu0 0.0
  %1527 = vmatprep.subr.mxu0 0.0
  %1528 = vmatpush1.msra.mxu0 0.0
  %1529 = vmatprep.subr.mxu0 0.0
  %1530 = vmatpush1.msra.mxu0 0.0
  %1531 = vmatprep.subr.mxu0 0.0
  %1532 = vmatpush1.msra.mxu0 0.0
  %1533 = vmatprep.subr.mxu0 0.0
  %1534 = vmatpush1.msra.mxu0 0.0
  %1535 = vmatprep.subr.mxu0 0.0
  %1536 = vmatpush1.msra.mxu0 0.0
  %1537 = vmatprep.subr.mxu0 0.0
  %1538 = vmatpush1.msra.mxu0 0.0
  %1539 = vmatprep.subr.mxu0 0.0
  %1540 = vmatpush1.msra.mxu0 0.0
  %1541 = vmatprep.subr.mxu0 0.0
  %1542 = vmatpush1.msra.mxu0 %v303
  %1543 = vmatprep.subr.mxu0 0.0
  %1544 = vmatpush1.msra.mxu0 %v302
  %1545 = vmatprep.subr.mxu0 0.0
  %1546 = vmatpush1.msra.mxu0 %v301
  %1547 = vmatprep.subr.mxu0 0.0
  %1548 = vmatpush1.msra.mxu0 %v300
  %1549 = vmatprep.subr.mxu0 0.0
  %1550 = vmatpush2.msra.mxu0 0.0
  %1551 = vmatprep.subr.mxu0 0.0
  %1552 = vmatpush2.msra.mxu0 0.0
  %1553 = vmatprep.subr.mxu0 0.0
  %1554 = vmatpush2.msra.mxu0 0.0
  %1555 = vmatprep.subr.mxu0 0.0
  %1556 = vmatpush2.msra.mxu0 0.0
  %1557 = vmatprep.subr.mxu0 0.0
  %1558 = vmatpush2.msra.mxu0 0.0
  %1559 = vmatprep.subr.mxu0 0.0
  %1560 = vmatpush2.msra.mxu0 0.0
  %1561 = vmatprep.subr.mxu0 0.0
  %1562 = vmatpush2.msra.mxu0 0.0
  %1563 = vmatprep.subr.mxu0 0.0
  %1564 = vmatpush2.msra.mxu0 0.0
  %1565 = vmatprep.subr.mxu0 0.0
  %1566 = vmatpush2.msra.mxu0 0.0
  %1567 = vmatprep.subr.mxu0 0.0
  %1568 = vmatpush2.msra.mxu0 0.0
  %1569 = vmatprep.subr.mxu0 0.0
  %1570 = vmatpush2.msra.mxu0 0.0
  %1571 = vmatprep.subr.mxu0 0.0
  %1572 = vmatpush2.msra.mxu0 0.0
  %1573 = vmatprep.subr.mxu0 0.0
  %1574 = vmatpush2.msra.mxu0 0.0
  %1575 = vmatprep.subr.mxu0 0.0
  %1576 = vmatpush2.msra.mxu0 0.0
  %1577 = vmatprep.subr.mxu0 0.0
  %1578 = vmatpush2.msra.mxu0 0.0
  %1579 = vmatprep.subr.mxu0 0.0
  %1580 = vmatpush2.msra.mxu0 0.0
  %1581 = vmatprep.mubr.f32.mxu0 0.0
  %1582 = vmatmul.mubr.f32.gmra.mxu0 %v1515
  %v1583 = vpop.f32.mrf.mxu0
  %v1584 = vadd.f32 0.0, %v1583
  %v1585 = vpop.f32.mrf.mxu0
  %1586 = vdwg.mxu0
  %1588 = vrot.lane.b32.xlu0 %v1511, 32
  %v1589 = vpop.permute.xlu0 %1588
  %v1590 = vsel %vm317, %v1589, 0
  %1592 = vmatprep.subr.mxu0 0.0
  %1593 = vmatpush1.msra.mxu0 0.0
  %1594 = vmatprep.subr.mxu0 0.0
  %1595 = vmatpush1.msra.mxu0 0.0
  %1596 = vmatprep.subr.mxu0 0.0
  %1597 = vmatpush1.msra.mxu0 0.0
  %1598 = vmatprep.subr.mxu0 0.0
  %1599 = vmatpush1.msra.mxu0 0.0
  %1600 = vmatprep.subr.mxu0 0.0
  %1601 = vmatpush1.msra.mxu0 0.0
  %1602 = vmatprep.subr.mxu0 0.0
  %1603 = vmatpush1.msra.mxu0 0.0
  %1604 = vmatprep.subr.mxu0 0.0
  %1605 = vmatpush1.msra.mxu0 0.0
  %1606 = vmatprep.subr.mxu0 0.0
  %1607 = vmatpush1.msra.mxu0 0.0
  %1608 = vmatprep.subr.mxu0 0.0
  %1609 = vmatpush1.msra.mxu0 0.0
  %1610 = vmatprep.subr.mxu0 0.0
  %1611 = vmatpush1.msra.mxu0 0.0
  %1612 = vmatprep.subr.mxu0 0.0
  %1613 = vmatpush1.msra.mxu0 0.0
  %1614 = vmatprep.subr.mxu0 0.0
  %1615 = vmatpush1.msra.mxu0 0.0
  %1616 = vmatprep.subr.mxu0 0.0
  %1617 = vmatpush1.msra.mxu0 %v307
  %1618 = vmatprep.subr.mxu0 0.0
  %1619 = vmatpush1.msra.mxu0 %v306
  %1620 = vmatprep.subr.mxu0 0.0
  %1621 = vmatpush1.msra.mxu0 %v305
  %1622 = vmatprep.subr.mxu0 0.0
  %1623 = vmatpush1.msra.mxu0 %v304
  %1624 = vmatprep.subr.mxu0 0.0
  %1625 = vmatpush2.msra.mxu0 0.0
  %1626 = vmatprep.subr.mxu0 0.0
  %1627 = vmatpush2.msra.mxu0 0.0
  %1628 = vmatprep.subr.mxu0 0.0
  %1629 = vmatpush2.msra.mxu0 0.0
  %1630 = vmatprep.subr.mxu0 0.0
  %1631 = vmatpush2.msra.mxu0 0.0
  %1632 = vmatprep.subr.mxu0 0.0
  %1633 = vmatpush2.msra.mxu0 0.0
  %1634 = vmatprep.subr.mxu0 0.0
  %1635 = vmatpush2.msra.mxu0 0.0
  %1636 = vmatprep.subr.mxu0 0.0
  %1637 = vmatpush2.msra.mxu0 0.0
  %1638 = vmatprep.subr.mxu0 0.0
  %1639 = vmatpush2.msra.mxu0 0.0
  %1640 = vmatprep.subr.mxu0 0.0
  %1641 = vmatpush2.msra.mxu0 0.0
  %1642 = vmatprep.subr.mxu0 0.0
  %1643 = vmatpush2.msra.mxu0 0.0
  %1644 = vmatprep.subr.mxu0 0.0
  %1645 = vmatpush2.msra.mxu0 0.0
  %1646 = vmatprep.subr.mxu0 0.0
  %1647 = vmatpush2.msra.mxu0 0.0
  %1648 = vmatprep.subr.mxu0 0.0
  %1649 = vmatpush2.msra.mxu0 0.0
  %1650 = vmatprep.subr.mxu0 0.0
  %1651 = vmatpush2.msra.mxu0 0.0
  %1652 = vmatprep.subr.mxu0 0.0
  %1653 = vmatpush2.msra.mxu0 0.0
  %1654 = vmatprep.subr.mxu0 0.0
  %1655 = vmatpush2.msra.mxu0 0.0
  %1656 = vmatprep.mubr.f32.mxu0 0.0
  %1657 = vmatmul.mubr.f32.gmra.mxu0 %v1590
  %v1658 = vpop.f32.mrf.mxu0
  %v1659 = vadd.f32 %v1584, %v1658
  %v1660 = vpop.f32.mrf.mxu0
  %1661 = vdwg.mxu0
  %v1662 = vadd.f32 %v1659, %v572
  %v1663 = vxor.u32 %v1662, 2147483648
  %v1664 = vmul.f32 %v1663, 1.442695
  %v1665 = vpow.pop %v1664
  %v1666 = vadd.f32 %v1665, 1.0
  %v1667 = vrcp.pop %v1666
  %v1668 = vmul.f32 1.0, %v1667
  %v1669 = vtanh.pop %v1662
  %v1670 = vmul.f32 %v1668, %v1409
  %1672 = vrot.lane.b32.xlu0 %v1669, 64
  %v1673 = vpop.permute.xlu0 %1672
  %v1675 = vmul.f32 %v1668, %v1673
  %1677 = vrot.lane.b32.xlu0 %v1675, 32
  %v1678 = vpop.permute.xlu0 %1677
  %v1680 = vadd.f32 %v1670, %v1678
  %v1681 = vtanh.pop %v1680
  %1683 = vrot.lane.b32.xlu0 %v1681, 64
  %v1684 = vpop.permute.xlu0 %1683
  %v1686 = vmul.f32 %v1668, %v1684
  %v1687 = vld [vmem:[#allocation2 + $0x28] sm:$0xff]
  %1688 = vmatprep.subr.mxu0 0.0
  %1689 = vmatpush1.msra.mxu0 0.0
  %1690 = vmatprep.subr.mxu0 0.0
  %1691 = vmatpush1.msra.mxu0 0.0
  %1692 = vmatprep.subr.mxu0 0.0
  %1693 = vmatpush1.msra.mxu0 0.0
  %1694 = vmatprep.subr.mxu0 0.0
  %1695 = vmatpush1.msra.mxu0 0.0
  %1696 = vmatprep.subr.mxu0 0.0
  %1697 = vmatpush1.msra.mxu0 0.0
  %1698 = vmatprep.subr.mxu0 0.0
  %1699 = vmatpush1.msra.mxu0 0.0
  %1700 = vmatprep.subr.mxu0 0.0
  %1701 = vmatpush1.msra.mxu0 0.0
  %1702 = vmatprep.subr.mxu0 0.0
  %1703 = vmatpush1.msra.mxu0 0.0
  %1704 = vmatprep.subr.mxu0 0.0
  %1705 = vmatpush1.msra.mxu0 0.0
  %1706 = vmatprep.subr.mxu0 0.0
  %1707 = vmatpush1.msra.mxu0 0.0
  %1708 = vmatprep.subr.mxu0 0.0
  %1709 = vmatpush1.msra.mxu0 0.0
  %1710 = vmatprep.subr.mxu0 0.0
  %1711 = vmatpush1.msra.mxu0 0.0
  %1712 = vmatprep.subr.mxu0 0.0
  %1713 = vmatpush1.msra.mxu0 %v298
  %1714 = vmatprep.subr.mxu0 0.0
  %1715 = vmatpush1.msra.mxu0 %v297
  %1716 = vmatprep.subr.mxu0 0.0
  %1717 = vmatpush1.msra.mxu0 %v296
  %1718 = vmatprep.subr.mxu0 0.0
  %1719 = vmatpush1.msra.mxu0 %v295
  %1720 = vmatprep.subr.mxu0 0.0
  %1721 = vmatpush2.msra.mxu0 0.0
  %1722 = vmatprep.subr.mxu0 0.0
  %1723 = vmatpush2.msra.mxu0 0.0
  %1724 = vmatprep.subr.mxu0 0.0
  %1725 = vmatpush2.msra.mxu0 0.0
  %1726 = vmatprep.subr.mxu0 0.0
  %1727 = vmatpush2.msra.mxu0 0.0
  %1728 = vmatprep.subr.mxu0 0.0
  %1729 = vmatpush2.msra.mxu0 0.0
  %1730 = vmatprep.subr.mxu0 0.0
  %1731 = vmatpush2.msra.mxu0 0.0
  %1732 = vmatprep.subr.mxu0 0.0
  %1733 = vmatpush2.msra.mxu0 0.0
  %1734 = vmatprep.subr.mxu0 0.0
  %1735 = vmatpush2.msra.mxu0 0.0
  %1736 = vmatprep.subr.mxu0 0.0
  %1737 = vmatpush2.msra.mxu0 0.0
  %1738 = vmatprep.subr.mxu0 0.0
  %1739 = vmatpush2.msra.mxu0 0.0
  %1740 = vmatprep.subr.mxu0 0.0
  %1741 = vmatpush2.msra.mxu0 0.0
  %1742 = vmatprep.subr.mxu0 0.0
  %1743 = vmatpush2.msra.mxu0 0.0
  %1744 = vmatprep.subr.mxu0 0.0
  %1745 = vmatpush2.msra.mxu0 0.0
  %1746 = vmatprep.subr.mxu0 0.0
  %1747 = vmatpush2.msra.mxu0 0.0
  %1748 = vmatprep.subr.mxu0 0.0
  %1749 = vmatpush2.msra.mxu0 0.0
  %1750 = vmatprep.subr.mxu0 0.0
  %1751 = vmatpush2.msra.mxu0 0.0
  %1752 = vmatprep.mubr.f32.mxu0 0.0
  %1753 = vmatmul.mubr.f32.gmra.mxu0 %v1590
  %v1754 = vpop.f32.mrf.mxu0
  %v1755 = vadd.f32 0.0, %v1754
  %v1756 = vpop.f32.mrf.mxu0
  %1757 = vdwg.mxu0
  %v1758 = vadd.f32 %v1687, %v1755
  %v1759 = vxor.u32 %v1758, 2147483648
  %v1760 = vmul.f32 %v1759, 1.442695
  %v1761 = vpow.pop %v1760
  %v1762 = vadd.f32 %v1761, 1.0
  %v1763 = vrcp.pop %v1762
  %v1764 = vmul.f32 1.0, %v1763
  %v1765 = vtanh.pop %v1758
  %v1766 = vmul.f32 %v1764, %v1505
  %1768 = vrot.lane.b32.xlu0 %v1765, 64
  %v1769 = vpop.permute.xlu0 %1768
  %v1771 = vmul.f32 %v1764, %v1769
  %1773 = vrot.lane.b32.xlu0 %v1771, 32
  %v1774 = vpop.permute.xlu0 %1773
  %v1776 = vadd.f32 %v1766, %v1774
  %v1777 = vtanh.pop %v1776
  %1779 = vrot.lane.b32.xlu0 %v1777, 64
  %v1780 = vpop.permute.xlu0 %1779
  %v1782 = vmul.f32 %v1764, %v1780
  %1784 = vrot.lane.b32.xlu0 %v1686, 32
  %v1785 = vpop.permute.xlu0 %1784
  %v1786 = vsel %vm317, %v1785, 0
  %1788 = vmatprep.subr.mxu0 0.0
  %1789 = vmatpush1.msra.mxu0 0.0
  %1790 = vmatprep.subr.mxu0 0.0
  %1791 = vmatpush1.msra.mxu0 0.0
  %1792 = vmatprep.subr.mxu0 0.0
  %1793 = vmatpush1.msra.mxu0 0.0
  %1794 = vmatprep.subr.mxu0 0.0
  %1795 = vmatpush1.msra.mxu0 0.0
  %1796 = vmatprep.subr.mxu0 0.0
  %1797 = vmatpush1.msra.mxu0 0.0
  %1798 = vmatprep.subr.mxu0 0.0
  %1799 = vmatpush1.msra.mxu0 0.0
  %1800 = vmatprep.subr.mxu0 0.0
  %1801 = vmatpush1.msra.mxu0 0.0
  %1802 = vmatprep.subr.mxu0 0.0
  %1803 = vmatpush1.msra.mxu0 0.0
  %1804 = vmatprep.subr.mxu0 0.0
  %1805 = vmatpush1.msra.mxu0 0.0
  %1806 = vmatprep.subr.mxu0 0.0
  %1807 = vmatpush1.msra.mxu0 0.0
  %1808 = vmatprep.subr.mxu0 0.0
  %1809 = vmatpush1.msra.mxu0 0.0
  %1810 = vmatprep.subr.mxu0 0.0
  %1811 = vmatpush1.msra.mxu0 0.0
  %1812 = vmatprep.subr.mxu0 0.0
  %1813 = vmatpush1.msra.mxu0 %v303
  %1814 = vmatprep.subr.mxu0 0.0
  %1815 = vmatpush1.msra.mxu0 %v302
  %1816 = vmatprep.subr.mxu0 0.0
  %1817 = vmatpush1.msra.mxu0 %v301
  %1818 = vmatprep.subr.mxu0 0.0
  %1819 = vmatpush1.msra.mxu0 %v300
  %1820 = vmatprep.subr.mxu0 0.0
  %1821 = vmatpush2.msra.mxu0 0.0
  %1822 = vmatprep.subr.mxu0 0.0
  %1823 = vmatpush2.msra.mxu0 0.0
  %1824 = vmatprep.subr.mxu0 0.0
  %1825 = vmatpush2.msra.mxu0 0.0
  %1826 = vmatprep.subr.mxu0 0.0
  %1827 = vmatpush2.msra.mxu0 0.0
  %1828 = vmatprep.subr.mxu0 0.0
  %1829 = vmatpush2.msra.mxu0 0.0
  %1830 = vmatprep.subr.mxu0 0.0
  %1831 = vmatpush2.msra.mxu0 0.0
  %1832 = vmatprep.subr.mxu0 0.0
  %1833 = vmatpush2.msra.mxu0 0.0
  %1834 = vmatprep.subr.mxu0 0.0
  %1835 = vmatpush2.msra.mxu0 0.0
  %1836 = vmatprep.subr.mxu0 0.0
  %1837 = vmatpush2.msra.mxu0 0.0
  %1838 = vmatprep.subr.mxu0 0.0
  %1839 = vmatpush2.msra.mxu0 0.0
  %1840 = vmatprep.subr.mxu0 0.0
  %1841 = vmatpush2.msra.mxu0 0.0
  %1842 = vmatprep.subr.mxu0 0.0
  %1843 = vmatpush2.msra.mxu0 0.0
  %1844 = vmatprep.subr.mxu0 0.0
  %1845 = vmatpush2.msra.mxu0 0.0
  %1846 = vmatprep.subr.mxu0 0.0
  %1847 = vmatpush2.msra.mxu0 0.0
  %1848 = vmatprep.subr.mxu0 0.0
  %1849 = vmatpush2.msra.mxu0 0.0
  %1850 = vmatprep.subr.mxu0 0.0
  %1851 = vmatpush2.msra.mxu0 0.0
  %1852 = vmatprep.mubr.f32.mxu0 0.0
  %1853 = vmatmul.mubr.f32.gmra.mxu0 %v1786
  %v1854 = vpop.f32.mrf.mxu0
  %v1855 = vadd.f32 0.0, %v1854
  %v1856 = vpop.f32.mrf.mxu0
  %1857 = vdwg.mxu0
  %1859 = vrot.lane.b32.xlu0 %v1782, 32
  %v1860 = vpop.permute.xlu0 %1859
  %v1861 = vsel %vm317, %v1860, 0
  %1863 = vmatprep.subr.mxu0 0.0
  %1864 = vmatpush1.msra.mxu0 0.0
  %1865 = vmatprep.subr.mxu0 0.0
  %1866 = vmatpush1.msra.mxu0 0.0
  %1867 = vmatprep.subr.mxu0 0.0
  %1868 = vmatpush1.msra.mxu0 0.0
  %1869 = vmatprep.subr.mxu0 0.0
  %1870 = vmatpush1.msra.mxu0 0.0
  %1871 = vmatprep.subr.mxu0 0.0
  %1872 = vmatpush1.msra.mxu0 0.0
  %1873 = vmatprep.subr.mxu0 0.0
  %1874 = vmatpush1.msra.mxu0 0.0
  %1875 = vmatprep.subr.mxu0 0.0
  %1876 = vmatpush1.msra.mxu0 0.0
  %1877 = vmatprep.subr.mxu0 0.0
  %1878 = vmatpush1.msra.mxu0 0.0
  %1879 = vmatprep.subr.mxu0 0.0
  %1880 = vmatpush1.msra.mxu0 0.0
  %1881 = vmatprep.subr.mxu0 0.0
  %1882 = vmatpush1.msra.mxu0 0.0
  %1883 = vmatprep.subr.mxu0 0.0
  %1884 = vmatpush1.msra.mxu0 0.0
  %1885 = vmatprep.subr.mxu0 0.0
  %1886 = vmatpush1.msra.mxu0 0.0
  %1887 = vmatprep.subr.mxu0 0.0
  %1888 = vmatpush1.msra.mxu0 %v307
  %1889 = vmatprep.subr.mxu0 0.0
  %1890 = vmatpush1.msra.mxu0 %v306
  %1891 = vmatprep.subr.mxu0 0.0
  %1892 = vmatpush1.msra.mxu0 %v305
  %1893 = vmatprep.subr.mxu0 0.0
  %1894 = vmatpush1.msra.mxu0 %v304
  %1895 = vmatprep.subr.mxu0 0.0
  %1896 = vmatpush2.msra.mxu0 0.0
  %1897 = vmatprep.subr.mxu0 0.0
  %1898 = vmatpush2.msra.mxu0 0.0
  %1899 = vmatprep.subr.mxu0 0.0
  %1900 = vmatpush2.msra.mxu0 0.0
  %1901 = vmatprep.subr.mxu0 0.0
  %1902 = vmatpush2.msra.mxu0 0.0
  %1903 = vmatprep.subr.mxu0 0.0
  %1904 = vmatpush2.msra.mxu0 0.0
  %1905 = vmatprep.subr.mxu0 0.0
  %1906 = vmatpush2.msra.mxu0 0.0
  %1907 = vmatprep.subr.mxu0 0.0
  %1908 = vmatpush2.msra.mxu0 0.0
  %1909 = vmatprep.subr.mxu0 0.0
  %1910 = vmatpush2.msra.mxu0 0.0
  %1911 = vmatprep.subr.mxu0 0.0
  %1912 = vmatpush2.msra.mxu0 0.0
  %1913 = vmatprep.subr.mxu0 0.0
  %1914 = vmatpush2.msra.mxu0 0.0
  %1915 = vmatprep.subr.mxu0 0.0
  %1916 = vmatpush2.msra.mxu0 0.0
  %1917 = vmatprep.subr.mxu0 0.0
  %1918 = vmatpush2.msra.mxu0 0.0
  %1919 = vmatprep.subr.mxu0 0.0
  %1920 = vmatpush2.msra.mxu0 0.0
  %1921 = vmatprep.subr.mxu0 0.0
  %1922 = vmatpush2.msra.mxu0 0.0
  %1923 = vmatprep.subr.mxu0 0.0
  %1924 = vmatpush2.msra.mxu0 0.0
  %1925 = vmatprep.subr.mxu0 0.0
  %1926 = vmatpush2.msra.mxu0 0.0
  %1927 = vmatprep.mubr.f32.mxu0 0.0
  %1928 = vmatmul.mubr.f32.gmra.mxu0 %v1861
  %v1929 = vpop.f32.mrf.mxu0
  %v1930 = vadd.f32 %v1855, %v1929
  %v1931 = vpop.f32.mrf.mxu0
  %1932 = vdwg.mxu0
  %v1933 = vadd.f32 %v1930, %v572
  %v1934 = vxor.u32 %v1933, 2147483648
  %v1935 = vmul.f32 %v1934, 1.442695
  %v1936 = vpow.pop %v1935
  %v1937 = vadd.f32 %v1936, 1.0
  %v1938 = vrcp.pop %v1937
  %v1939 = vmul.f32 1.0, %v1938
  %v1940 = vtanh.pop %v1933
  %v1941 = vmul.f32 %v1939, %v1680
  %1943 = vrot.lane.b32.xlu0 %v1940, 64
  %v1944 = vpop.permute.xlu0 %1943
  %v1946 = vmul.f32 %v1939, %v1944
  %1948 = vrot.lane.b32.xlu0 %v1946, 32
  %v1949 = vpop.permute.xlu0 %1948
  %v1951 = vadd.f32 %v1941, %v1949
  %v1952 = vtanh.pop %v1951
  %1954 = vrot.lane.b32.xlu0 %v1952, 64
  %v1955 = vpop.permute.xlu0 %1954
  %v1957 = vmul.f32 %v1939, %v1955
  %v1958 = vld [vmem:[#allocation2 + $0x30] sm:$0xff]
  %1959 = vmatprep.subr.mxu0 0.0
  %1960 = vmatpush1.msra.mxu0 0.0
  %1961 = vmatprep.subr.mxu0 0.0
  %1962 = vmatpush1.msra.mxu0 0.0
  %1963 = vmatprep.subr.mxu0 0.0
  %1964 = vmatpush1.msra.mxu0 0.0
  %1965 = vmatprep.subr.mxu0 0.0
  %1966 = vmatpush1.msra.mxu0 0.0
  %1967 = vmatprep.subr.mxu0 0.0
  %1968 = vmatpush1.msra.mxu0 0.0
  %1969 = vmatprep.subr.mxu0 0.0
  %1970 = vmatpush1.msra.mxu0 0.0
  %1971 = vmatprep.subr.mxu0 0.0
  %1972 = vmatpush1.msra.mxu0 0.0
  %1973 = vmatprep.subr.mxu0 0.0
  %1974 = vmatpush1.msra.mxu0 0.0
  %1975 = vmatprep.subr.mxu0 0.0
  %1976 = vmatpush1.msra.mxu0 0.0
  %1977 = vmatprep.subr.mxu0 0.0
  %1978 = vmatpush1.msra.mxu0 0.0
  %1979 = vmatprep.subr.mxu0 0.0
  %1980 = vmatpush1.msra.mxu0 0.0
  %1981 = vmatprep.subr.mxu0 0.0
  %1982 = vmatpush1.msra.mxu0 0.0
  %1983 = vmatprep.subr.mxu0 0.0
  %1984 = vmatpush1.msra.mxu0 %v298
  %1985 = vmatprep.subr.mxu0 0.0
  %1986 = vmatpush1.msra.mxu0 %v297
  %1987 = vmatprep.subr.mxu0 0.0
  %1988 = vmatpush1.msra.mxu0 %v296
  %1989 = vmatprep.subr.mxu0 0.0
  %1990 = vmatpush1.msra.mxu0 %v295
  %1991 = vmatprep.subr.mxu0 0.0
  %1992 = vmatpush2.msra.mxu0 0.0
  %1993 = vmatprep.subr.mxu0 0.0
  %1994 = vmatpush2.msra.mxu0 0.0
  %1995 = vmatprep.subr.mxu0 0.0
  %1996 = vmatpush2.msra.mxu0 0.0
  %1997 = vmatprep.subr.mxu0 0.0
  %1998 = vmatpush2.msra.mxu0 0.0
  %1999 = vmatprep.subr.mxu0 0.0
  %2000 = vmatpush2.msra.mxu0 0.0
  %2001 = vmatprep.subr.mxu0 0.0
  %2002 = vmatpush2.msra.mxu0 0.0
  %2003 = vmatprep.subr.mxu0 0.0
  %2004 = vmatpush2.msra.mxu0 0.0
  %2005 = vmatprep.subr.mxu0 0.0
  %2006 = vmatpush2.msra.mxu0 0.0
  %2007 = vmatprep.subr.mxu0 0.0
  %2008 = vmatpush2.msra.mxu0 0.0
  %2009 = vmatprep.subr.mxu0 0.0
  %2010 = vmatpush2.msra.mxu0 0.0
  %2011 = vmatprep.subr.mxu0 0.0
  %2012 = vmatpush2.msra.mxu0 0.0
  %2013 = vmatprep.subr.mxu0 0.0
  %2014 = vmatpush2.msra.mxu0 0.0
  %2015 = vmatprep.subr.mxu0 0.0
  %2016 = vmatpush2.msra.mxu0 0.0
  %2017 = vmatprep.subr.mxu0 0.0
  %2018 = vmatpush2.msra.mxu0 0.0
  %2019 = vmatprep.subr.mxu0 0.0
  %2020 = vmatpush2.msra.mxu0 0.0
  %2021 = vmatprep.subr.mxu0 0.0
  %2022 = vmatpush2.msra.mxu0 0.0
  %2023 = vmatprep.mubr.f32.mxu0 0.0
  %2024 = vmatmul.mubr.f32.gmra.mxu0 %v1861
  %v2025 = vpop.f32.mrf.mxu0
  %v2026 = vadd.f32 0.0, %v2025
  %v2027 = vpop.f32.mrf.mxu0
  %2028 = vdwg.mxu0
  %v2029 = vadd.f32 %v1958, %v2026
  %v2030 = vxor.u32 %v2029, 2147483648
  %v2031 = vmul.f32 %v2030, 1.442695
  %v2032 = vpow.pop %v2031
  %v2033 = vadd.f32 %v2032, 1.0
  %v2034 = vrcp.pop %v2033
  %v2035 = vmul.f32 1.0, %v2034
  %v2036 = vtanh.pop %v2029
  %v2037 = vmul.f32 %v2035, %v1776
  %2039 = vrot.lane.b32.xlu0 %v2036, 64
  %v2040 = vpop.permute.xlu0 %2039
  %v2042 = vmul.f32 %v2035, %v2040
  %2044 = vrot.lane.b32.xlu0 %v2042, 32
  %v2045 = vpop.permute.xlu0 %2044
  %v2047 = vadd.f32 %v2037, %v2045
  %v2048 = vtanh.pop %v2047
  %2050 = vrot.lane.b32.xlu0 %v2048, 64
  %v2051 = vpop.permute.xlu0 %2050
  %v2053 = vmul.f32 %v2035, %v2051
  %2055 = vrot.lane.b32.xlu0 %v1957, 32
  %v2056 = vpop.permute.xlu0 %2055
  %v2057 = vsel %vm317, %v2056, 0
  %2059 = vmatprep.subr.mxu0 0.0
  %2060 = vmatpush1.msra.mxu0 0.0
  %2061 = vmatprep.subr.mxu0 0.0
  %2062 = vmatpush1.msra.mxu0 0.0
  %2063 = vmatprep.subr.mxu0 0.0
  %2064 = vmatpush1.msra.mxu0 0.0
  %2065 = vmatprep.subr.mxu0 0.0
  %2066 = vmatpush1.msra.mxu0 0.0
  %2067 = vmatprep.subr.mxu0 0.0
  %2068 = vmatpush1.msra.mxu0 0.0
  %2069 = vmatprep.subr.mxu0 0.0
  %2070 = vmatpush1.msra.mxu0 0.0
  %2071 = vmatprep.subr.mxu0 0.0
  %2072 = vmatpush1.msra.mxu0 0.0
  %2073 = vmatprep.subr.mxu0 0.0
  %2074 = vmatpush1.msra.mxu0 0.0
  %2075 = vmatprep.subr.mxu0 0.0
  %2076 = vmatpush1.msra.mxu0 0.0
  %2077 = vmatprep.subr.mxu0 0.0
  %2078 = vmatpush1.msra.mxu0 0.0
  %2079 = vmatprep.subr.mxu0 0.0
  %2080 = vmatpush1.msra.mxu0 0.0
  %2081 = vmatprep.subr.mxu0 0.0
  %2082 = vmatpush1.msra.mxu0 0.0
  %2083 = vmatprep.subr.mxu0 0.0
  %2084 = vmatpush1.msra.mxu0 %v303
  %2085 = vmatprep.subr.mxu0 0.0
  %2086 = vmatpush1.msra.mxu0 %v302
  %2087 = vmatprep.subr.mxu0 0.0
  %2088 = vmatpush1.msra.mxu0 %v301
  %2089 = vmatprep.subr.mxu0 0.0
  %2090 = vmatpush1.msra.mxu0 %v300
  %2091 = vmatprep.subr.mxu0 0.0
  %2092 = vmatpush2.msra.mxu0 0.0
  %2093 = vmatprep.subr.mxu0 0.0
  %2094 = vmatpush2.msra.mxu0 0.0
  %2095 = vmatprep.subr.mxu0 0.0
  %2096 = vmatpush2.msra.mxu0 0.0
  %2097 = vmatprep.subr.mxu0 0.0
  %2098 = vmatpush2.msra.mxu0 0.0
  %2099 = vmatprep.subr.mxu0 0.0
  %2100 = vmatpush2.msra.mxu0 0.0
  %2101 = vmatprep.subr.mxu0 0.0
  %2102 = vmatpush2.msra.mxu0 0.0
  %2103 = vmatprep.subr.mxu0 0.0
  %2104 = vmatpush2.msra.mxu0 0.0
  %2105 = vmatprep.subr.mxu0 0.0
  %2106 = vmatpush2.msra.mxu0 0.0
  %2107 = vmatprep.subr.mxu0 0.0
  %2108 = vmatpush2.msra.mxu0 0.0
  %2109 = vmatprep.subr.mxu0 0.0
  %2110 = vmatpush2.msra.mxu0 0.0
  %2111 = vmatprep.subr.mxu0 0.0
  %2112 = vmatpush2.msra.mxu0 0.0
  %2113 = vmatprep.subr.mxu0 0.0
  %2114 = vmatpush2.msra.mxu0 0.0
  %2115 = vmatprep.subr.mxu0 0.0
  %2116 = vmatpush2.msra.mxu0 0.0
  %2117 = vmatprep.subr.mxu0 0.0
  %2118 = vmatpush2.msra.mxu0 0.0
  %2119 = vmatprep.subr.mxu0 0.0
  %2120 = vmatpush2.msra.mxu0 0.0
  %2121 = vmatprep.subr.mxu0 0.0
  %2122 = vmatpush2.msra.mxu0 0.0
  %2123 = vmatprep.mubr.f32.mxu0 0.0
  %2124 = vmatmul.mubr.f32.gmra.mxu0 %v2057
  %v2125 = vpop.f32.mrf.mxu0
  %v2126 = vadd.f32 0.0, %v2125
  %v2127 = vpop.f32.mrf.mxu0
  %2128 = vdwg.mxu0
  %2130 = vrot.lane.b32.xlu0 %v2053, 32
  %v2131 = vpop.permute.xlu0 %2130
  %v2132 = vsel %vm317, %v2131, 0
  %2134 = vmatprep.subr.mxu0 0.0
  %2135 = vmatpush1.msra.mxu0 0.0
  %2136 = vmatprep.subr.mxu0 0.0
  %2137 = vmatpush1.msra.mxu0 0.0
  %2138 = vmatprep.subr.mxu0 0.0
  %2139 = vmatpush1.msra.mxu0 0.0
  %2140 = vmatprep.subr.mxu0 0.0
  %2141 = vmatpush1.msra.mxu0 0.0
  %2142 = vmatprep.subr.mxu0 0.0
  %2143 = vmatpush1.msra.mxu0 0.0
  %2144 = vmatprep.subr.mxu0 0.0
  %2145 = vmatpush1.msra.mxu0 0.0
  %2146 = vmatprep.subr.mxu0 0.0
  %2147 = vmatpush1.msra.mxu0 0.0
  %2148 = vmatprep.subr.mxu0 0.0
  %2149 = vmatpush1.msra.mxu0 0.0
  %2150 = vmatprep.subr.mxu0 0.0
  %2151 = vmatpush1.msra.mxu0 0.0
  %2152 = vmatprep.subr.mxu0 0.0
  %2153 = vmatpush1.msra.mxu0 0.0
  %2154 = vmatprep.subr.mxu0 0.0
  %2155 = vmatpush1.msra.mxu0 0.0
  %2156 = vmatprep.subr.mxu0 0.0
  %2157 = vmatpush1.msra.mxu0 0.0
  %2158 = vmatprep.subr.mxu0 0.0
  %2159 = vmatpush1.msra.mxu0 %v307
  %2160 = vmatprep.subr.mxu0 0.0
  %2161 = vmatpush1.msra.mxu0 %v306
  %2162 = vmatprep.subr.mxu0 0.0
  %2163 = vmatpush1.msra.mxu0 %v305
  %2164 = vmatprep.subr.mxu0 0.0
  %2165 = vmatpush1.msra.mxu0 %v304
  %2166 = vmatprep.subr.mxu0 0.0
  %2167 = vmatpush2.msra.mxu0 0.0
  %2168 = vmatprep.subr.mxu0 0.0
  %2169 = vmatpush2.msra.mxu0 0.0
  %2170 = vmatprep.subr.mxu0 0.0
  %2171 = vmatpush2.msra.mxu0 0.0
  %2172 = vmatprep.subr.mxu0 0.0
  %2173 = vmatpush2.msra.mxu0 0.0
  %2174 = vmatprep.subr.mxu0 0.0
  %2175 = vmatpush2.msra.mxu0 0.0
  %2176 = vmatprep.subr.mxu0 0.0
  %2177 = vmatpush2.msra.mxu0 0.0
  %2178 = vmatprep.subr.mxu0 0.0
  %2179 = vmatpush2.msra.mxu0 0.0
  %2180 = vmatprep.subr.mxu0 0.0
  %2181 = vmatpush2.msra.mxu0 0.0
  %2182 = vmatprep.subr.mxu0 0.0
  %2183 = vmatpush2.msra.mxu0 0.0
  %2184 = vmatprep.subr.mxu0 0.0
  %2185 = vmatpush2.msra.mxu0 0.0
  %2186 = vmatprep.subr.mxu0 0.0
  %2187 = vmatpush2.msra.mxu0 0.0
  %2188 = vmatprep.subr.mxu0 0.0
  %2189 = vmatpush2.msra.mxu0 0.0
  %2190 = vmatprep.subr.mxu0 0.0
  %2191 = vmatpush2.msra.mxu0 0.0
  %2192 = vmatprep.subr.mxu0 0.0
  %2193 = vmatpush2.msra.mxu0 0.0
  %2194 = vmatprep.subr.mxu0 0.0
  %2195 = vmatpush2.msra.mxu0 0.0
  %2196 = vmatprep.subr.mxu0 0.0
  %2197 = vmatpush2.msra.mxu0 0.0
  %2198 = vmatprep.mubr.f32.mxu0 0.0
  %2199 = vmatmul.mubr.f32.gmra.mxu0 %v2132
  %v2200 = vpop.f32.mrf.mxu0
  %v2201 = vadd.f32 %v2126, %v2200
  %v2202 = vpop.f32.mrf.mxu0
  %2203 = vdwg.mxu0
  %v2204 = vadd.f32 %v2201, %v572
  %v2205 = vxor.u32 %v2204, 2147483648
  %v2206 = vmul.f32 %v2205, 1.442695
  %v2207 = vpow.pop %v2206
  %v2208 = vadd.f32 %v2207, 1.0
  %v2209 = vrcp.pop %v2208
  %v2210 = vmul.f32 1.0, %v2209
  %v2211 = vtanh.pop %v2204
  %v2212 = vmul.f32 %v2210, %v1951
  %2214 = vrot.lane.b32.xlu0 %v2211, 64
  %v2215 = vpop.permute.xlu0 %2214
  %v2217 = vmul.f32 %v2210, %v2215
  %2219 = vrot.lane.b32.xlu0 %v2217, 32
  %v2220 = vpop.permute.xlu0 %2219
  %v2222 = vadd.f32 %v2212, %v2220
  %v2223 = vtanh.pop %v2222
  %2225 = vrot.lane.b32.xlu0 %v2223, 64
  %v2226 = vpop.permute.xlu0 %2225
  %v2228 = vmul.f32 %v2210, %v2226
  %v2229 = vld [vmem:[#allocation2 + $0x38] sm:$0xff]
  %2230 = vmatprep.subr.mxu0 0.0
  %2231 = vmatpush1.msra.mxu0 0.0
  %2232 = vmatprep.subr.mxu0 0.0
  %2233 = vmatpush1.msra.mxu0 0.0
  %2234 = vmatprep.subr.mxu0 0.0
  %2235 = vmatpush1.msra.mxu0 0.0
  %2236 = vmatprep.subr.mxu0 0.0
  %2237 = vmatpush1.msra.mxu0 0.0
  %2238 = vmatprep.subr.mxu0 0.0
  %2239 = vmatpush1.msra.mxu0 0.0
  %2240 = vmatprep.subr.mxu0 0.0
  %2241 = vmatpush1.msra.mxu0 0.0
  %2242 = vmatprep.subr.mxu0 0.0
  %2243 = vmatpush1.msra.mxu0 0.0
  %2244 = vmatprep.subr.mxu0 0.0
  %2245 = vmatpush1.msra.mxu0 0.0
  %2246 = vmatprep.subr.mxu0 0.0
  %2247 = vmatpush1.msra.mxu0 0.0
  %2248 = vmatprep.subr.mxu0 0.0
  %2249 = vmatpush1.msra.mxu0 0.0
  %2250 = vmatprep.subr.mxu0 0.0
  %2251 = vmatpush1.msra.mxu0 0.0
  %2252 = vmatprep.subr.mxu0 0.0
  %2253 = vmatpush1.msra.mxu0 0.0
  %2254 = vmatprep.subr.mxu0 0.0
  %2255 = vmatpush1.msra.mxu0 %v298
  %2256 = vmatprep.subr.mxu0 0.0
  %2257 = vmatpush1.msra.mxu0 %v297
  %2258 = vmatprep.subr.mxu0 0.0
  %2259 = vmatpush1.msra.mxu0 %v296
  %2260 = vmatprep.subr.mxu0 0.0
  %2261 = vmatpush1.msra.mxu0 %v295
  %2262 = vmatprep.subr.mxu0 0.0
  %2263 = vmatpush2.msra.mxu0 0.0
  %2264 = vmatprep.subr.mxu0 0.0
  %2265 = vmatpush2.msra.mxu0 0.0
  %2266 = vmatprep.subr.mxu0 0.0
  %2267 = vmatpush2.msra.mxu0 0.0
  %2268 = vmatprep.subr.mxu0 0.0
  %2269 = vmatpush2.msra.mxu0 0.0
  %2270 = vmatprep.subr.mxu0 0.0
  %2271 = vmatpush2.msra.mxu0 0.0
  %2272 = vmatprep.subr.mxu0 0.0
  %2273 = vmatpush2.msra.mxu0 0.0
  %2274 = vmatprep.subr.mxu0 0.0
  %2275 = vmatpush2.msra.mxu0 0.0
  %2276 = vmatprep.subr.mxu0 0.0
  %2277 = vmatpush2.msra.mxu0 0.0
  %2278 = vmatprep.subr.mxu0 0.0
  %2279 = vmatpush2.msra.mxu0 0.0
  %2280 = vmatprep.subr.mxu0 0.0
  %2281 = vmatpush2.msra.mxu0 0.0
  %2282 = vmatprep.subr.mxu0 0.0
  %2283 = vmatpush2.msra.mxu0 0.0
  %2284 = vmatprep.subr.mxu0 0.0
  %2285 = vmatpush2.msra.mxu0 0.0
  %2286 = vmatprep.subr.mxu0 0.0
  %2287 = vmatpush2.msra.mxu0 0.0
  %2288 = vmatprep.subr.mxu0 0.0
  %2289 = vmatpush2.msra.mxu0 0.0
  %2290 = vmatprep.subr.mxu0 0.0
  %2291 = vmatpush2.msra.mxu0 0.0
  %2292 = vmatprep.subr.mxu0 0.0
  %2293 = vmatpush2.msra.mxu0 0.0
  %2294 = vmatprep.mubr.f32.mxu0 0.0
  %2295 = vmatmul.mubr.f32.gmra.mxu0 %v2132
  %v2296 = vpop.f32.mrf.mxu0
  %v2297 = vadd.f32 0.0, %v2296
  %v2298 = vpop.f32.mrf.mxu0
  %2299 = vdwg.mxu0
  %v2300 = vadd.f32 %v2229, %v2297
  %v2301 = vxor.u32 %v2300, 2147483648
  %v2302 = vmul.f32 %v2301, 1.442695
  %v2303 = vpow.pop %v2302
  %v2304 = vadd.f32 %v2303, 1.0
  %v2305 = vrcp.pop %v2304
  %v2306 = vmul.f32 1.0, %v2305
  %v2307 = vtanh.pop %v2300
  %v2308 = vmul.f32 %v2306, %v2047
  %2310 = vrot.lane.b32.xlu0 %v2307, 64
  %v2311 = vpop.permute.xlu0 %2310
  %v2313 = vmul.f32 %v2306, %v2311
  %2315 = vrot.lane.b32.xlu0 %v2313, 32
  %v2316 = vpop.permute.xlu0 %2315
  %v2318 = vadd.f32 %v2308, %v2316
  %v2319 = vtanh.pop %v2318
  %2321 = vrot.lane.b32.xlu0 %v2319, 64
  %v2322 = vpop.permute.xlu0 %2321
  %v2324 = vmul.f32 %v2306, %v2322
  %2326 = vrot.lane.b32.xlu0 %v2228, 32
  %v2327 = vpop.permute.xlu0 %2326
  %v2328 = vsel %vm317, %v2327, 0
  %2330 = vmatprep.subr.mxu0 0.0
  %2331 = vmatpush1.msra.mxu0 0.0
  %2332 = vmatprep.subr.mxu0 0.0
  %2333 = vmatpush1.msra.mxu0 0.0
  %2334 = vmatprep.subr.mxu0 0.0
  %2335 = vmatpush1.msra.mxu0 0.0
  %2336 = vmatprep.subr.mxu0 0.0
  %2337 = vmatpush1.msra.mxu0 0.0
  %2338 = vmatprep.subr.mxu0 0.0
  %2339 = vmatpush1.msra.mxu0 0.0
  %2340 = vmatprep.subr.mxu0 0.0
  %2341 = vmatpush1.msra.mxu0 0.0
  %2342 = vmatprep.subr.mxu0 0.0
  %2343 = vmatpush1.msra.mxu0 0.0
  %2344 = vmatprep.subr.mxu0 0.0
  %2345 = vmatpush1.msra.mxu0 0.0
  %2346 = vmatprep.subr.mxu0 0.0
  %2347 = vmatpush1.msra.mxu0 0.0
  %2348 = vmatprep.subr.mxu0 0.0
  %2349 = vmatpush1.msra.mxu0 0.0
  %2350 = vmatprep.subr.mxu0 0.0
  %2351 = vmatpush1.msra.mxu0 0.0
  %2352 = vmatprep.subr.mxu0 0.0
  %2353 = vmatpush1.msra.mxu0 0.0
  %2354 = vmatprep.subr.mxu0 0.0
  %2355 = vmatpush1.msra.mxu0 %v303
  %2356 = vmatprep.subr.mxu0 0.0
  %2357 = vmatpush1.msra.mxu0 %v302
  %2358 = vmatprep.subr.mxu0 0.0
  %2359 = vmatpush1.msra.mxu0 %v301
  %2360 = vmatprep.subr.mxu0 0.0
  %2361 = vmatpush1.msra.mxu0 %v300
  %2362 = vmatprep.subr.mxu0 0.0
  %2363 = vmatpush2.msra.mxu0 0.0
  %2364 = vmatprep.subr.mxu0 0.0
  %2365 = vmatpush2.msra.mxu0 0.0
  %2366 = vmatprep.subr.mxu0 0.0
  %2367 = vmatpush2.msra.mxu0 0.0
  %2368 = vmatprep.subr.mxu0 0.0
  %2369 = vmatpush2.msra.mxu0 0.0
  %2370 = vmatprep.subr.mxu0 0.0
  %2371 = vmatpush2.msra.mxu0 0.0
  %2372 = vmatprep.subr.mxu0 0.0
  %2373 = vmatpush2.msra.mxu0 0.0
  %2374 = vmatprep.subr.mxu0 0.0
  %2375 = vmatpush2.msra.mxu0 0.0
  %2376 = vmatprep.subr.mxu0 0.0
  %2377 = vmatpush2.msra.mxu0 0.0
  %2378 = vmatprep.subr.mxu0 0.0
  %2379 = vmatpush2.msra.mxu0 0.0
  %2380 = vmatprep.subr.mxu0 0.0
  %2381 = vmatpush2.msra.mxu0 0.0
  %2382 = vmatprep.subr.mxu0 0.0
  %2383 = vmatpush2.msra.mxu0 0.0
  %2384 = vmatprep.subr.mxu0 0.0
  %2385 = vmatpush2.msra.mxu0 0.0
  %2386 = vmatprep.subr.mxu0 0.0
  %2387 = vmatpush2.msra.mxu0 0.0
  %2388 = vmatprep.subr.mxu0 0.0
  %2389 = vmatpush2.msra.mxu0 0.0
  %2390 = vmatprep.subr.mxu0 0.0
  %2391 = vmatpush2.msra.mxu0 0.0
  %2392 = vmatprep.subr.mxu0 0.0
  %2393 = vmatpush2.msra.mxu0 0.0
  %2394 = vmatprep.mubr.f32.mxu0 0.0
  %2395 = vmatmul.mubr.f32.gmra.mxu0 %v2328
  %v2396 = vpop.f32.mrf.mxu0
  %v2397 = vadd.f32 0.0, %v2396
  %v2398 = vpop.f32.mrf.mxu0
  %2399 = vdwg.mxu0
  %2401 = vrot.lane.b32.xlu0 %v2324, 32
  %v2402 = vpop.permute.xlu0 %2401
  %v2403 = vsel %vm317, %v2402, 0
  %2405 = vmatprep.subr.mxu0 0.0
  %2406 = vmatpush1.msra.mxu0 0.0
  %2407 = vmatprep.subr.mxu0 0.0
  %2408 = vmatpush1.msra.mxu0 0.0
  %2409 = vmatprep.subr.mxu0 0.0
  %2410 = vmatpush1.msra.mxu0 0.0
  %2411 = vmatprep.subr.mxu0 0.0
  %2412 = vmatpush1.msra.mxu0 0.0
  %2413 = vmatprep.subr.mxu0 0.0
  %2414 = vmatpush1.msra.mxu0 0.0
  %2415 = vmatprep.subr.mxu0 0.0
  %2416 = vmatpush1.msra.mxu0 0.0
  %2417 = vmatprep.subr.mxu0 0.0
  %2418 = vmatpush1.msra.mxu0 0.0
  %2419 = vmatprep.subr.mxu0 0.0
  %2420 = vmatpush1.msra.mxu0 0.0
  %2421 = vmatprep.subr.mxu0 0.0
  %2422 = vmatpush1.msra.mxu0 0.0
  %2423 = vmatprep.subr.mxu0 0.0
  %2424 = vmatpush1.msra.mxu0 0.0
  %2425 = vmatprep.subr.mxu0 0.0
  %2426 = vmatpush1.msra.mxu0 0.0
  %2427 = vmatprep.subr.mxu0 0.0
  %2428 = vmatpush1.msra.mxu0 0.0
  %2429 = vmatprep.subr.mxu0 0.0
  %2430 = vmatpush1.msra.mxu0 %v307
  %2431 = vmatprep.subr.mxu0 0.0
  %2432 = vmatpush1.msra.mxu0 %v306
  %2433 = vmatprep.subr.mxu0 0.0
  %2434 = vmatpush1.msra.mxu0 %v305
  %2435 = vmatprep.subr.mxu0 0.0
  %2436 = vmatpush1.msra.mxu0 %v304
  %2437 = vmatprep.subr.mxu0 0.0
  %2438 = vmatpush2.msra.mxu0 0.0
  %2439 = vmatprep.subr.mxu0 0.0
  %2440 = vmatpush2.msra.mxu0 0.0
  %2441 = vmatprep.subr.mxu0 0.0
  %2442 = vmatpush2.msra.mxu0 0.0
  %2443 = vmatprep.subr.mxu0 0.0
  %2444 = vmatpush2.msra.mxu0 0.0
  %2445 = vmatprep.subr.mxu0 0.0
  %2446 = vmatpush2.msra.mxu0 0.0
  %2447 = vmatprep.subr.mxu0 0.0
  %2448 = vmatpush2.msra.mxu0 0.0
  %2449 = vmatprep.subr.mxu0 0.0
  %2450 = vmatpush2.msra.mxu0 0.0
  %2451 = vmatprep.subr.mxu0 0.0
  %2452 = vmatpush2.msra.mxu0 0.0
  %2453 = vmatprep.subr.mxu0 0.0
  %2454 = vmatpush2.msra.mxu0 0.0
  %2455 = vmatprep.subr.mxu0 0.0
  %2456 = vmatpush2.msra.mxu0 0.0
  %2457 = vmatprep.subr.mxu0 0.0
  %2458 = vmatpush2.msra.mxu0 0.0
  %2459 = vmatprep.subr.mxu0 0.0
  %2460 = vmatpush2.msra.mxu0 0.0
  %2461 = vmatprep.subr.mxu0 0.0
  %2462 = vmatpush2.msra.mxu0 0.0
  %2463 = vmatprep.subr.mxu0 0.0
  %2464 = vmatpush2.msra.mxu0 0.0
  %2465 = vmatprep.subr.mxu0 0.0
  %2466 = vmatpush2.msra.mxu0 0.0
  %2467 = vmatprep.subr.mxu0 0.0
  %2468 = vmatpush2.msra.mxu0 0.0
  %2469 = vmatprep.mubr.f32.mxu0 0.0
  %2470 = vmatmul.mubr.f32.gmra.mxu0 %v2403
  %v2471 = vpop.f32.mrf.mxu0
  %v2472 = vadd.f32 %v2397, %v2471
  %v2473 = vpop.f32.mrf.mxu0
  %2474 = vdwg.mxu0
  %v2475 = vadd.f32 %v2472, %v572
  %v2476 = vxor.u32 %v2475, 2147483648
  %v2477 = vmul.f32 %v2476, 1.442695
  %v2478 = vpow.pop %v2477
  %v2479 = vadd.f32 %v2478, 1.0
  %v2480 = vrcp.pop %v2479
  %v2481 = vmul.f32 1.0, %v2480
  %v2482 = vtanh.pop %v2475
  %v2483 = vmul.f32 %v2481, %v2222
  %2485 = vrot.lane.b32.xlu0 %v2482, 64
  %v2486 = vpop.permute.xlu0 %2485
  %v2488 = vmul.f32 %v2481, %v2486
  %2490 = vrot.lane.b32.xlu0 %v2488, 32
  %v2491 = vpop.permute.xlu0 %2490
  %v2493 = vadd.f32 %v2483, %v2491
  %v2494 = vtanh.pop %v2493
  %2496 = vrot.lane.b32.xlu0 %v2494, 64
  %v2497 = vpop.permute.xlu0 %2496
  %v2499 = vmul.f32 %v2481, %v2497
  %v2500 = vld [vmem:[%s9] sm:$0x1]
  %v2501 = vld [vmem:[%s10] sm:$0x1]
  %v2503 = vsel %vm317, %v2402, 0.0
  %2504 = vadd.xlane.f32.xlu0 %v2503
  %v2505 = vpop.xlane.xlu0 %2504
  %v2506 = vrcp.pop 32.0
  %v2507 = vmul.f32 %v2505, %v2506
  %v2508 = vsub.f32 %v2324, %v2507
  %v2509 = vmul.f32 %v2508, %v2508
  %2511 = vrot.lane.b32.xlu0 %v2509, 32
  %v2512 = vpop.permute.xlu0 %2511
  %v2514 = vsel %vm317, %v2512, 0.0
  %2515 = vadd.xlane.f32.xlu0 %v2514
  %v2516 = vpop.xlane.xlu0 %2515
  %v2517 = vmul.f32 %v2516, %v2506
  %v2518 = vadd.f32 %v2517, 1e-05
  %v2519 = vrsqrt.pop %v2518
  %v2520 = vmul.f32 %v2508, %v2519
  %v2522 = vlaneseq
  %v2523 = vshrl.u32 %v2522, 7
  %v2524 = vsub.s32 0, %v2523
  %v2525 = vrot.slane %v2500, %v2524
  %2526 = vrot.lane.b32.xlu0 %v2525, 96
  %v2527 = vpop.permute.xlu0 %2526
  %v2529 = vmul.f32 %v2520, %v2527
  %v2531 = vlaneseq
  %v2532 = vshrl.u32 %v2531, 7
  %v2533 = vsub.s32 0, %v2532
  %v2534 = vrot.slane %v2501, %v2533
  %2535 = vrot.lane.b32.xlu0 %v2534, 96
  %v2536 = vpop.permute.xlu0 %2535
  %v2538 = vadd.f32 %v2529, %v2536
  %2540 = vrot.lane.b32.xlu0 %v2499, 32
  %v2541 = vpop.permute.xlu0 %2540
  %v2543 = vsel %vm317, %v2541, 0.0
  %2544 = vadd.xlane.f32.xlu0 %v2543
  %v2545 = vpop.xlane.xlu0 %2544
  %v2546 = vmul.f32 %v2545, %v2506
  %v2547 = vsub.f32 %v2499, %v2546
  %v2548 = vmul.f32 %v2547, %v2547
  %2550 = vrot.lane.b32.xlu0 %v2548, 32
  %v2551 = vpop.permute.xlu0 %2550
  %v2553 = vsel %vm317, %v2551, 0.0
  %2554 = vadd.xlane.f32.xlu0 %v2553
  %v2555 = vpop.xlane.xlu0 %2554
  %v2556 = vmul.f32 %v2555, %v2506
  %v2557 = vadd.f32 %v2556, 1e-05
  %v2558 = vrsqrt.pop %v2557
  %v2559 = vmul.f32 %v2547, %v2558
  %v2560 = vmul.f32 %v2559, %v2527
  %v2561 = vadd.f32 %v2560, %v2536
  %2563 = vrot.lane.b32.xlu0 %v2318, 96
  %v2564 = vpop.permute.xlu0 %2563
  %v2566 = vsel %vm317, %v2564, 0.0
  %2567 = vadd.xlane.f32.xlu0 %v2566
  %v2568 = vpop.xlane.xlu0 %2567
  %v2569 = vmul.f32 %v2568, %v2506
  %v2570 = vsub.f32 %v2318, %v2569
  %v2571 = vmul.f32 %v2570, %v2570
  %2573 = vrot.lane.b32.xlu0 %v2571, 96
  %v2574 = vpop.permute.xlu0 %2573
  %v2576 = vsel %vm317, %v2574, 0.0
  %2577 = vadd.xlane.f32.xlu0 %v2576
  %v2578 = vpop.xlane.xlu0 %2577
  %v2579 = vmul.f32 %v2578, %v2506
  %v2580 = vadd.f32 %v2579, 1e-05
  %v2581 = vrsqrt.pop %v2580
  %v2582 = vmul.f32 %v2570, %v2581
  %2583 = vrot.lane.b32.xlu0 %v2525, 32
  %v2584 = vpop.permute.xlu0 %2583
  %v2586 = vmul.f32 %v2582, %v2584
  %2587 = vrot.lane.b32.xlu0 %v2534, 32
  %v2588 = vpop.permute.xlu0 %2587
  %v2590 = vadd.f32 %v2586, %v2588
  %2592 = vrot.lane.b32.xlu0 %v2493, 96
  %v2593 = vpop.permute.xlu0 %2592
  %v2595 = vsel %vm317, %v2593, 0.0
  %2596 = vadd.xlane.f32.xlu0 %v2595
  %v2597 = vpop.xlane.xlu0 %2596
  %v2598 = vmul.f32 %v2597, %v2506
  %v2599 = vsub.f32 %v2493, %v2598
  %v2600 = vmul.f32 %v2599, %v2599
  %2602 = vrot.lane.b32.xlu0 %v2600, 96
  %v2603 = vpop.permute.xlu0 %2602
  %v2605 = vsel %vm317, %v2603, 0.0
  %2606 = vadd.xlane.f32.xlu0 %v2605
  %v2607 = vpop.xlane.xlu0 %2606
  %v2608 = vmul.f32 %v2607, %v2506
  %v2609 = vadd.f32 %v2608, 1e-05
  %v2610 = vrsqrt.pop %v2609
  %v2611 = vmul.f32 %v2599, %v2610
  %v2612 = vmul.f32 %v2611, %v2584
  %v2613 = vadd.f32 %v2612, %v2588
  %2615 = vrot.lane.b32.xlu0 %v2538, 32
  %v2616 = vpop.permute.xlu0 %2615
  %2619 = vrot.lane.b32.xlu0 %v2561, 64
  %v2620 = vpop.permute.xlu0 %2619
  %2623 = vrot.lane.b32.xlu0 %v2590, 32
  %v2624 = vpop.permute.xlu0 %2623
  %2627 = vrot.lane.b32.xlu0 %v2613, 64
  %v2628 = vpop.permute.xlu0 %2627
  %v2630 = vsel %vm317, %v2616, %v2620
  %vm2631 = vcmask 523264
  %v2632 = vsel %vm2631, %v2630, %v2624
  %vm2633 = vcmask 785408
  %v2634 = vsel %vm2633, %v2632, %v2628
  %2635 = vst [vmem:[%s11] sm:$0xff] %v2634
  // Predicated region
  $region46: #{encoder_forward.1} parent=0 // pred_check
    _
  $region47: #{encoder_forward.1} parent=0 // pred_check_branch
    %2637 = sbr.rel (0) target = $region49
  $region48: #{encoder_forward.1} parent=0 // pred_region
    _
  $region49: #{encoder_forward.1} parent=0 // pred_fallthru
    _
  // Predicated region
  $region50: #{encoder_forward.1} parent=0 // pred_check
    _
  $region51: #{encoder_forward.1} parent=0 // pred_check_branch
    %2639 = sbr.rel (0) target = $region53
  $region52: #{encoder_forward.1} parent=0 // pred_region
    _
  $region53: #{encoder_forward.1} parent=0 // pred_fallthru
    _

</llo_original>
